<compile_context>
chip_gen: v7x
topology: tpu7x:2x2x1
jax: 0.10.0
libtpu: 0.0.40
codegen_flags: <defaults>
</compile_context>

<pallas_src>
import functools

import jax
import jax.numpy as jnp
from jax import lax
from jax.experimental import pallas as pl
from jax.experimental.pallas import tpu as pltpu

_VMEM_LIMIT = 32 * 1024 * 1024


def _round_up(x, m):
    return (x + m - 1) // m * m


def _pick_tile(dim, target, mult):
    """Largest multiple of `mult` <= target that divides `dim` (dim % mult == 0)."""
    t = min(target, dim)
    t = max((t // mult) * mult, mult)
    while dim % t != 0:
        t -= mult
    return t


def _pad_gate_cols(w, hidden, hidden_p):
    """(R, 4*hidden) -> (R, 4*hidden_p): each gate padded to a 128-aligned slot."""
    rows = w.shape[0]
    w4 = w.reshape(rows, 4, hidden)
    out = jnp.zeros((rows, 4, hidden_p), w.dtype).at[:, :, :hidden].set(w4)
    return out.reshape(rows, 4 * hidden_p)


# ---------------------------------------------------------------------------
# Tiled GEMM + bias:  (M, K) @ (K, N) + (1, N) -> (M, N) f32.
# bf16 operands (MXU-native), f32 accumulation, bias added in f32.
# Grid (M/tm, N/tn, K/tk) with ("parallel", "parallel", "arbitrary").
# ---------------------------------------------------------------------------
def _gemm_bias_kernel(x_ref, w_ref, b_ref, o_ref, acc_ref):
    k = pl.program_id(2)

    @pl.when(k == 0)
    def _():
        acc_ref[...] = jnp.zeros_like(acc_ref)

    acc_ref[...] += jnp.dot(x_ref[...], w_ref[...],
                            preferred_element_type=jnp.float32)

    @pl.when(k == pl.num_programs(2) - 1)
    def _():
        o_ref[...] = (acc_ref[...] + b_ref[...]).astype(o_ref.dtype)


def _matmul_bias(x, w, b, *, tm=512, tn=512, tk=512):
    """x: (M, K) bf16 (or castable), w: (K, N) bf16, b: (1, N) f32.
    K and N must be multiples of 128; M is padded to a multiple of 16."""
    M, K = x.shape
    N = w.shape[1]
    Mp = _round_up(M, 16)
    if Mp != M:
        x = jnp.pad(x, ((0, Mp - M), (0, 0)))
    tm = _pick_tile(Mp, tm, 16)          # single M-block when Mp <= tm target
    tn = _pick_tile(N, tn, 128)
    tk = _pick_tile(K, tk, 128)

    out = pl.pallas_call(
        _gemm_bias_kernel,
        out_shape=jax.ShapeDtypeStruct((Mp, N), jnp.float32),
        grid_spec=pltpu.PrefetchScalarGridSpec(
            num_scalar_prefetch=0,
            grid=(Mp // tm, N // tn, K // tk),
            in_specs=[
                pl.BlockSpec((tm, tk), lambda i, j, k: (i, k)),
                pl.BlockSpec((tk, tn), lambda i, j, k: (k, j)),
                pl.BlockSpec((1, tn), lambda i, j, k: (0, j)),
            ],
            out_specs=pl.BlockSpec((tm, tn), lambda i, j, k: (i, j)),
            scratch_shapes=[pltpu.VMEM((tm, tn), jnp.float32)],
        ),
        compiler_params=pltpu.CompilerParams(
            dimension_semantics=("parallel", "parallel", "arbitrary"),
            vmem_limit_bytes=_VMEM_LIMIT),
    )(x.astype(jnp.bfloat16), w.astype(jnp.bfloat16), b.astype(jnp.float32))
    return out[:M]


# ---------------------------------------------------------------------------
# Recurrent LSTM scan, blocked over (batch, time):
#   grid = (Bp/B_BLK, T/T_BLK), ("parallel", "arbitrary")
#   xw streamed in per time-block, h streamed out per time-block (bf16),
#   h/c carried in f32 VMEM scratch across time blocks (init at t-block 0).
# Only h @ W_hh is on the serial critical path; gates use 128-aligned slots.
# ---------------------------------------------------------------------------
def _lstm_scan_kernel(xw_ref, whh_ref, h_ref, h_c, c_c, *, hidden_p, t_blk):
    Hp = hidden_p

    @pl.when(pl.program_id(1) == 0)
    def _():
        h_c[...] = jnp.zeros_like(h_c)
        c_c[...] = jnp.zeros_like(c_c)

    def step(t, carry):
        h, c = carry
        gates = xw_ref[t] + jnp.dot(h.astype(jnp.bfloat16), whh_ref[...],
                                    preferred_element_type=jnp.float32)
        i_g = jax.nn.sigmoid(gates[:, 0 * Hp:1 * Hp])
        f_g = jax.nn.sigmoid(gates[:, 1 * Hp:2 * Hp])
        g_g = jnp.tanh(gates[:, 2 * Hp:3 * Hp])
        o_g = jax.nn.sigmoid(gates[:, 3 * Hp:4 * Hp])
        c_new = f_g * c + i_g * g_g
        h_new = o_g * jnp.tanh(c_new)
        h_ref[t] = h_new.astype(h_ref.dtype)
        return (h_new, c_new)

    # t_blk is capped at 16 in the wrapper, so full unroll is bounded.
    h_fin, c_fin = lax.fori_loop(0, t_blk, step, (h_c[...], c_c[...]),
                                 unroll=True)
    h_c[...] = h_fin
    c_c[...] = c_fin


def _lstm_scan(xw_tm, w_hh_p, *, t_blk, b_blk):
    T, Bp, G = xw_tm.shape
    Hp = G // 4
    kernel = functools.partial(_lstm_scan_kernel, hidden_p=Hp, t_blk=t_blk)
    return pl.pallas_call(
        kernel,
        out_shape=jax.ShapeDtypeStruct((T, Bp, Hp), jnp.bfloat16),
        grid_spec=pltpu.PrefetchScalarGridSpec(
            num_scalar_prefetch=0,
            grid=(Bp // b_blk, T // t_blk),
            in_specs=[
                pl.BlockSpec((t_blk, b_blk, G), lambda bi, ti: (ti, bi, 0)),  # xw (f32)
                pl.BlockSpec((Hp, G), lambda bi, ti: (0, 0)),                 # W_hh (bf16)
            ],
            out_specs=pl.BlockSpec((t_blk, b_blk, Hp), lambda bi, ti: (ti, bi, 0)),
            scratch_shapes=[pltpu.VMEM((b_blk, Hp), jnp.float32),   # h carry
                            pltpu.VMEM((b_blk, Hp), jnp.float32)],  # c carry
        ),
        compiler_params=pltpu.CompilerParams(
            dimension_semantics=("parallel", "arbitrary"),
            vmem_limit_bytes=_VMEM_LIMIT),
    )(xw_tm, w_hh_p)


def decoder_rnn_forward(params, features, captions):
    """features: (B, E) float32, captions: (B, T) int32 -> (B, T, V) float32."""
    embed_tbl = params["embed"]          # (V, E)
    w_ih = params["w_ih"]                # (E, 4H)
    w_hh = params["w_hh"]                # (H, 4H)
    b = params["b"]                      # (1, 4H) = b_ih + b_hh
    w_fc = params["w_fc"]                # (H, V)
    b_fc = params["b_fc"]                # (1, V)

    B, E = features.shape
    H = w_hh.shape[0]
    V = w_fc.shape[1]

    # Glue (plain JAX): embedding gather + time-major sequence assembly, in bf16
    # directly (no separate wrapper-side cast passes over the sequence).
    cap_tm = captions[:, :-1].T                                    # (T-1, B) int32
    embeds_tm = embed_tbl[cap_tm].astype(jnp.bfloat16)             # (T-1, B, E)
    feats_tm = features[None, :, :].astype(jnp.bfloat16)           # (1, B, E)
    inputs_tm = jnp.concatenate([feats_tm, embeds_tm], axis=0)     # (T, B, E) bf16
    T = inputs_tm.shape[0]

    # Pad to vreg/MXU-friendly shapes (batch to 16 for bf16 sublane packing).
    Bp = _round_up(B, 16)
    Ep = _round_up(E, 128)
    Hp = _round_up(H, 128)
    Vp = _round_up(V, 128)

    # Time / batch blocking for the scan.
    T_BLK = min(T, 16)                   # bounds the in-kernel unroll
    T_pad = _round_up(T, T_BLK)
    B_BLK = Bp if Bp <= 16 else _pick_tile(Bp, Bp // 2, 16)   # >=2 blocks for megacore

    x_tm = jnp.zeros((T_pad, Bp, Ep), jnp.bfloat16).at[:T, :B, :E].set(inputs_tm)

    w_ih_p = jnp.zeros((Ep, 4 * Hp), jnp.bfloat16).at[:E].set(
        _pad_gate_cols(w_ih, H, Hp).astype(jnp.bfloat16))
    w_hh_p = jnp.zeros((Hp, 4 * Hp), jnp.bfloat16).at[:H].set(
        _pad_gate_cols(w_hh, H, Hp).astype(jnp.bfloat16))
    b_p = _pad_gate_cols(b, H, Hp).astype(jnp.float32)             # (1, 4Hp)
    w_fc_p = jnp.zeros((Hp, Vp), jnp.bfloat16).at[:H, :V].set(w_fc.astype(jnp.bfloat16))
    b_fc_p = jnp.zeros((1, Vp), jnp.float32).at[:, :V].set(b_fc.astype(jnp.float32))

    # 1) Input projection hoisted out of the recurrence: one big GEMM (bias folded in).
    xw = _matmul_bias(x_tm.reshape(T_pad * Bp, Ep), w_ih_p, b_p)   # (T_pad*Bp, 4Hp) f32
    xw_tm = xw.reshape(T_pad, Bp, 4 * Hp)

    # 2) Recurrent LSTM scan: blocked over (batch, time), h/c carried in scratch.
    h_tm = _lstm_scan(xw_tm, w_hh_p, t_blk=T_BLK, b_blk=B_BLK)     # (T_pad, Bp, Hp) bf16

    # 3) Vocab FC: transpose only the small h tensor to batch-major, then one
    #    GEMM that writes logits batch-major (no final (B,T,V) transpose).
    h_bm = jnp.transpose(h_tm, (1, 0, 2)).reshape(Bp * T_pad, Hp)  # bf16
    logits = _matmul_bias(h_bm, w_fc_p, b_fc_p)                    # (Bp*T_pad, Vp) f32
    logits = logits.reshape(Bp, T_pad, Vp)[:B, :T, :V]             # (B, T, V) batch_first
    return logits


def decoder_rnn_reference(params, features, captions):
    """Pure-JAX f32 reference of the same forward pass (for a sanity check)."""
    embed_tbl = params["embed"]
    w_ih, w_hh, b = params["w_ih"], params["w_hh"], params["b"]
    w_fc, b_fc = params["w_fc"], params["b_fc"]
    H = w_hh.shape[0]

    embeds = embed_tbl[captions[:, :-1]]
    inputs = jnp.concatenate([features[:, None, :], embeds], axis=1)  # (B, T, E)
    B = inputs.shape[0]

    def step(carry, x_t):
        h, c = carry
        gates = x_t @ w_ih + h @ w_hh + b[0]
        i_g = jax.nn.sigmoid(gates[:, 0 * H:1 * H])
        f_g = jax.nn.sigmoid(gates[:, 1 * H:2 * H])
        g_g = jnp.tanh(gates[:, 2 * H:3 * H])
        o_g = jax.nn.sigmoid(gates[:, 3 * H:4 * H])
        c_new = f_g * c + i_g * g_g
        h_new = o_g * jnp.tanh(c_new)
        return (h_new, c_new), h_new

    h0 = jnp.zeros((B, H), jnp.float32)
    c0 = jnp.zeros((B, H), jnp.float32)
    _, hs = jax.lax.scan(step, (h0, c0), jnp.transpose(inputs, (1, 0, 2)))
    out = hs @ w_fc + b_fc[0]                     # (T, B, V)
    return jnp.transpose(out, (1, 0, 2))


def init_params(key, embed_size, hidden_size, vocab_size):
    k = jax.random.split(key, 7)
    scale = 0.1
    return {
        "embed": scale * jax.random.normal(k[0], (vocab_size, embed_size), jnp.float32),
        # Stored already transposed for row-major matmuls: x @ (E,4H), h @ (H,4H)
        "w_ih": scale * jax.random.normal(k[1], (embed_size, 4 * hidden_size), jnp.float32),
        "w_hh": scale * jax.random.normal(k[2], (hidden_size, 4 * hidden_size), jnp.float32),
        # Combined bias b_ih + b_hh.
        "b": scale * jax.random.normal(k[3], (1, 4 * hidden_size), jnp.float32),
        "w_fc": scale * jax.random.normal(k[4], (hidden_size, vocab_size), jnp.float32),
        "b_fc": scale * jax.random.normal(k[5], (1, vocab_size), jnp.float32),
    }


if __name__ == "__main__":
    B = 2            # batch
    T_CAP = 8        # caption length (sequence length after concat)
    EMBED = 32
    HIDDEN = 32
    VOCAB = 64

    key = jax.random.PRNGKey(0)
    k_par, k_feat, k_cap = jax.random.split(key, 3)

    params = init_params(k_par, EMBED, HIDDEN, VOCAB)
    features = jax.random.normal(k_feat, (B, EMBED), jnp.float32)
    captions = jax.random.randint(k_cap, (B, T_CAP), 0, VOCAB, dtype=jnp.int32)

    fwd = jax.jit(decoder_rnn_forward)
    out = jax.block_until_ready(fwd(params, features, captions))

    ref = jax.block_until_ready(decoder_rnn_reference(params, features, captions))

    assert out.shape == (B, T_CAP, VOCAB), out.shape
    # bf16 MXU operands (f32 accumulation) vs the pure-f32 reference: allow ~2e-2.
    assert jnp.allclose(out, ref, atol=2e-2, rtol=2e-2), (
        float(jnp.max(jnp.abs(out - ref)))
    )

    print("KERNEL_OK")
</pallas_src>

<mosaic_0001>
module attributes {stable_mosaic.version = 11 : i64} {
  func.func @_gemm_bias_kernel(%arg0: i32, %arg1: i32, %arg2: i32, %arg3: memref<128x128xbf16, #tpu.memory_space<vmem>>, %arg4: memref<128x512xbf16, #tpu.memory_space<vmem>>, %arg5: memref<1x512xf32, #tpu.memory_space<vmem>>, %arg6: memref<128x512xf32, #tpu.memory_space<vmem>>, %arg7: memref<128x512xf32, #tpu.memory_space<vmem>>) attributes {dimension_semantics = [#tpu.dimension_semantics<parallel>, #tpu.dimension_semantics<parallel>, #tpu.dimension_semantics<arbitrary>], iteration_bounds = array<i64: 1, 1, 1>, scalar_prefetch = 0 : i64, scratch_operands = 1 : i64, tpu.core_type = #tpu.core_type<tc>, window_params = [{transform_indices = @transform_0, window_bounds = array<i64: 128, 128>}, {transform_indices = @transform_1, window_bounds = array<i64: 128, 512>}, {transform_indices = @transform_2, window_bounds = array<i64: 1, 512>}, {transform_indices = @transform_3, window_bounds = array<i64: 128, 512>}]} {
    %c0_i32 = arith.constant 0 : i32
    %0 = arith.cmpi eq, %arg2, %c0_i32 : i32
    %1 = arith.extui %0 : i1 to i32
    %c0_i32_0 = arith.constant 0 : i32
    %2 = arith.cmpi ne, %1, %c0_i32_0 : i32
    scf.if %2 {
      %cst_10 = arith.constant 0.000000e+00 : f32
      %12 = vector.broadcast %cst_10 : f32 to vector<128x512xf32>
      %c0_11 = arith.constant 0 : index
      %c0_12 = arith.constant 0 : index
      %13 = vector.load %arg7[%c0_11, %c0_12] : memref<128x512xf32, #tpu.memory_space<vmem>>, vector<128x512xf32>
      tpu.vector_store %arg7[%c0_11, %c0_12], %12 {strides = array<i32>} : memref<128x512xf32, #tpu.memory_space<vmem>>, vector<128x512xf32>,
    } else {
    }
    %c0 = arith.constant 0 : index
    %c0_1 = arith.constant 0 : index
    %3 = vector.load %arg7[%c0, %c0_1] : memref<128x512xf32, #tpu.memory_space<vmem>>, vector<128x512xf32>
    %c0_2 = arith.constant 0 : index
    %c0_3 = arith.constant 0 : index
    %4 = vector.load %arg3[%c0_2, %c0_3] : memref<128x128xbf16, #tpu.memory_space<vmem>>, vector<128x128xbf16>
    %c0_4 = arith.constant 0 : index
    %c0_5 = arith.constant 0 : index
    %5 = vector.load %arg4[%c0_4, %c0_5] : memref<128x512xbf16, #tpu.memory_space<vmem>>, vector<128x512xbf16>
    %cst = arith.constant dense<0.000000e+00> : vector<128x512xf32>
    %6 = tpu.matmul %4, %5, %cst {dimension_numbers = #tpu.dot_dimension_numbers<[1], [0], [0], [1], [0, 0, 1, 1], [], []>} : vector<128x128xbf16>, vector<128x512xbf16>, vector<128x512xf32> -> vector<128x512xf32>
    %7 = arith.addf %3, %6 : vector<128x512xf32>
    %c0_6 = arith.constant 0 : index
    %c0_7 = arith.constant 0 : index
    %8 = vector.load %arg7[%c0_6, %c0_7] : memref<128x512xf32, #tpu.memory_space<vmem>>, vector<128x512xf32>
    tpu.vector_store %arg7[%c0_6, %c0_7], %7 {strides = array<i32>} : memref<128x512xf32, #tpu.memory_space<vmem>>, vector<128x512xf32>,
    %c0_i32_8 = arith.constant 0 : i32
    %9 = arith.cmpi eq, %arg2, %c0_i32_8 : i32
    %10 = arith.extui %9 : i1 to i32
    %c0_i32_9 = arith.constant 0 : i32
    %11 = arith.cmpi ne, %10, %c0_i32_9 : i32
    scf.if %11 {
      %c0_10 = arith.constant 0 : index
      %c0_11 = arith.constant 0 : index
      %12 = vector.load %arg7[%c0_10, %c0_11] : memref<128x512xf32, #tpu.memory_space<vmem>>, vector<128x512xf32>
      %c0_12 = arith.constant 0 : index
      %c0_13 = arith.constant 0 : index
      %13 = vector.load %arg5[%c0_12, %c0_13] : memref<1x512xf32, #tpu.memory_space<vmem>>, vector<1x512xf32>
      %14 = vector.broadcast %13 : vector<1x512xf32> to vector<128x512xf32>
      %15 = arith.addf %12, %14 : vector<128x512xf32>
      %c0_14 = arith.constant 0 : index
      %c0_15 = arith.constant 0 : index
      %16 = vector.load %arg6[%c0_14, %c0_15] : memref<128x512xf32, #tpu.memory_space<vmem>>, vector<128x512xf32>
      tpu.vector_store %arg6[%c0_14, %c0_15], %15 {strides = array<i32>} : memref<128x512xf32, #tpu.memory_space<vmem>>, vector<128x512xf32>,
    } else {
    }
    return
  }
  func.func @transform_0(%arg0: i32, %arg1: i32, %arg2: i32) -> (i32, i32) {
    %c0_i32 = arith.constant 0 : i32
    return %arg0, %arg2 : i32, i32
  }
  func.func @transform_1(%arg0: i32, %arg1: i32, %arg2: i32) -> (i32, i32) {
    %c0_i32 = arith.constant 0 : i32
    return %arg2, %arg1 : i32, i32
  }
  func.func @transform_2(%arg0: i32, %arg1: i32, %arg2: i32) -> (i32, i32) {
    %c0_i32 = arith.constant 0 : i32
    %c0_i32_0 = arith.constant 0 : i32
    return %c0_i32, %arg1 : i32, i32
  }
  func.func @transform_3(%arg0: i32, %arg1: i32, %arg2: i32) -> (i32, i32) {
    %c0_i32 = arith.constant 0 : i32
    return %arg0, %arg1 : i32, i32
  }
}

module attributes {stable_mosaic.version = 11 : i64} {
  func.func @_lstm_scan_kernel(%arg0: i32, %arg1: i32, %arg2: memref<8x16x512xf32, #tpu.memory_space<vmem>>, %arg3: memref<128x512xbf16, #tpu.memory_space<vmem>>, %arg4: memref<8x16x128xbf16, #tpu.memory_space<vmem>>, %arg5: memref<16x128xf32, #tpu.memory_space<vmem>>, %arg6: memref<16x128xf32, #tpu.memory_space<vmem>>) attributes {dimension_semantics = [#tpu.dimension_semantics<parallel>, #tpu.dimension_semantics<arbitrary>], iteration_bounds = array<i64: 1, 1>, scalar_prefetch = 0 : i64, scratch_operands = 2 : i64, tpu.core_type = #tpu.core_type<tc>, window_params = [{transform_indices = @transform_0, window_bounds = array<i64: 8, 16, 512>}, {pipeline_mode = #tpu.pipeline_mode<synchronous>, transform_indices = @transform_1, window_bounds = array<i64: 128, 512>}, {transform_indices = @transform_2, window_bounds = array<i64: 8, 16, 128>}]} {
    %c0_i32 = arith.constant 0 : i32
    %0 = arith.cmpi eq, %arg1, %c0_i32 : i32
    %1 = arith.extui %0 : i1 to i32
    %c0_i32_0 = arith.constant 0 : i32
    %2 = arith.cmpi ne, %1, %c0_i32_0 : i32
    scf.if %2 {
      %cst_88 = arith.constant 0.000000e+00 : f32
      %303 = vector.broadcast %cst_88 : f32 to vector<16x128xf32>
      %c0_89 = arith.constant 0 : index
      %c0_90 = arith.constant 0 : index
      %304 = vector.load %arg5[%c0_89, %c0_90] : memref<16x128xf32, #tpu.memory_space<vmem>>, vector<16x128xf32>
      tpu.vector_store %arg5[%c0_89, %c0_90], %303 {strides = array<i32>} : memref<16x128xf32, #tpu.memory_space<vmem>>, vector<16x128xf32>,
      %cst_91 = arith.constant 0.000000e+00 : f32
      %305 = vector.broadcast %cst_91 : f32 to vector<16x128xf32>
      %c0_92 = arith.constant 0 : index
      %c0_93 = arith.constant 0 : index
      %306 = vector.load %arg6[%c0_92, %c0_93] : memref<16x128xf32, #tpu.memory_space<vmem>>, vector<16x128xf32>
      tpu.vector_store %arg6[%c0_92, %c0_93], %305 {strides = array<i32>} : memref<16x128xf32, #tpu.memory_space<vmem>>, vector<16x128xf32>,
    } else {
    }
    %c0 = arith.constant 0 : index
    %c0_1 = arith.constant 0 : index
    %3 = vector.load %arg5[%c0, %c0_1] : memref<16x128xf32, #tpu.memory_space<vmem>>, vector<16x128xf32>
    %c0_2 = arith.constant 0 : index
    %c0_3 = arith.constant 0 : index
    %4 = vector.load %arg6[%c0_2, %c0_3] : memref<16x128xf32, #tpu.memory_space<vmem>>, vector<16x128xf32>
    %c0_i32_4 = arith.constant 0 : i32
    %5 = arith.index_cast %c0_i32_4 : i32 to index
    %c0_5 = arith.constant 0 : index
    %c0_6 = arith.constant 0 : index
    %6 = vector.load %arg2[%5, %c0_5, %c0_6] : memref<8x16x512xf32, #tpu.memory_space<vmem>>, vector<1x16x512xf32>
    %7 = vector.shape_cast %6 : vector<1x16x512xf32> to vector<16x512xf32>
    %8 = arith.truncf %3 : vector<16x128xf32> to vector<16x128xbf16>
    %c0_7 = arith.constant 0 : index
    %c0_8 = arith.constant 0 : index
    %9 = vector.load %arg3[%c0_7, %c0_8] : memref<128x512xbf16, #tpu.memory_space<vmem>>, vector<128x512xbf16>
    %cst = arith.constant dense<0.000000e+00> : vector<16x512xf32>
    %10 = tpu.matmul %8, %9, %cst {dimension_numbers = #tpu.dot_dimension_numbers<[1], [0], [0], [1], [0, 0, 1, 1], [], []>} : vector<16x128xbf16>, vector<128x512xbf16>, vector<16x512xf32> -> vector<16x512xf32>
    %11 = arith.addf %7, %10 : vector<16x512xf32>
    %12 = vector.extract_strided_slice %11 {offsets = [0, 0], sizes = [16, 128], strides = [1, 1]} : vector<16x512xf32> to vector<16x128xf32>
    %13 = arith.negf %12 : vector<16x128xf32>
    %14 = math.exp %13 : vector<16x128xf32>
    %cst_9 = arith.constant 1.000000e+00 : f32
    %15 = vector.broadcast %cst_9 : f32 to vector<16x128xf32>
    %16 = arith.addf %15, %14 : vector<16x128xf32>
    %17 = arith.divf %15, %16 : vector<16x128xf32>
    %18 = vector.extract_strided_slice %11 {offsets = [0, 128], sizes = [16, 128], strides = [1, 1]} : vector<16x512xf32> to vector<16x128xf32>
    %19 = arith.negf %18 : vector<16x128xf32>
    %20 = math.exp %19 : vector<16x128xf32>
    %cst_10 = arith.constant 1.000000e+00 : f32
    %21 = vector.broadcast %cst_10 : f32 to vector<16x128xf32>
    %22 = arith.addf %21, %20 : vector<16x128xf32>
    %23 = arith.divf %21, %22 : vector<16x128xf32>
    %24 = vector.extract_strided_slice %11 {offsets = [0, 256], sizes = [16, 128], strides = [1, 1]} : vector<16x512xf32> to vector<16x128xf32>
    %25 = math.tanh %24 : vector<16x128xf32>
    %26 = vector.extract_strided_slice %11 {offsets = [0, 384], sizes = [16, 128], strides = [1, 1]} : vector<16x512xf32> to vector<16x128xf32>
    %27 = arith.negf %26 : vector<16x128xf32>
    %28 = math.exp %27 : vector<16x128xf32>
    %cst_11 = arith.constant 1.000000e+00 : f32
    %29 = vector.broadcast %cst_11 : f32 to vector<16x128xf32>
    %30 = arith.addf %29, %28 : vector<16x128xf32>
    %31 = arith.divf %29, %30 : vector<16x128xf32>
    %32 = arith.mulf %23, %4 : vector<16x128xf32>
    %33 = arith.mulf %17, %25 : vector<16x128xf32>
    %34 = arith.addf %32, %33 : vector<16x128xf32>
    %35 = math.tanh %34 : vector<16x128xf32>
    %36 = arith.mulf %31, %35 : vector<16x128xf32>
    %37 = arith.truncf %36 : vector<16x128xf32> to vector<16x128xbf16>
    %38 = arith.index_cast %c0_i32_4 : i32 to index
    %c0_12 = arith.constant 0 : index
    %c0_13 = arith.constant 0 : index
    %39 = vector.load %arg4[%38, %c0_12, %c0_13] : memref<8x16x128xbf16, #tpu.memory_space<vmem>>, vector<1x16x128xbf16>
    %40 = vector.shape_cast %39 : vector<1x16x128xbf16> to vector<16x128xbf16>
    %41 = vector.shape_cast %37 : vector<16x128xbf16> to vector<1x16x128xbf16>
    tpu.vector_store %arg4[%38, %c0_12, %c0_13], %41 {strides = array<i32>} : memref<8x16x128xbf16, #tpu.memory_space<vmem>>, vector<1x16x128xbf16>,
    %c1_i32 = arith.constant 1 : i32
    %42 = arith.index_cast %c1_i32 : i32 to index
    %c0_14 = arith.constant 0 : index
    %c0_15 = arith.constant 0 : index
    %43 = vector.load %arg2[%42, %c0_14, %c0_15] : memref<8x16x512xf32, #tpu.memory_space<vmem>>, vector<1x16x512xf32>
    %44 = vector.shape_cast %43 : vector<1x16x512xf32> to vector<16x512xf32>
    %45 = arith.truncf %36 : vector<16x128xf32> to vector<16x128xbf16>
    %c0_16 = arith.constant 0 : index
    %c0_17 = arith.constant 0 : index
    %46 = vector.load %arg3[%c0_16, %c0_17] : memref<128x512xbf16, #tpu.memory_space<vmem>>, vector<128x512xbf16>
    %cst_18 = arith.constant dense<0.000000e+00> : vector<16x512xf32>
    %47 = tpu.matmul %45, %46, %cst_18 {dimension_numbers = #tpu.dot_dimension_numbers<[1], [0], [0], [1], [0, 0, 1, 1], [], []>} : vector<16x128xbf16>, vector<128x512xbf16>, vector<16x512xf32> -> vector<16x512xf32>
    %48 = arith.addf %44, %47 : vector<16x512xf32>
    %49 = vector.extract_strided_slice %48 {offsets = [0, 0], sizes = [16, 128], strides = [1, 1]} : vector<16x512xf32> to vector<16x128xf32>
    %50 = arith.negf %49 : vector<16x128xf32>
    %51 = math.exp %50 : vector<16x128xf32>
    %cst_19 = arith.constant 1.000000e+00 : f32
    %52 = vector.broadcast %cst_19 : f32 to vector<16x128xf32>
    %53 = arith.addf %52, %51 : vector<16x128xf32>
    %54 = arith.divf %52, %53 : vector<16x128xf32>
    %55 = vector.extract_strided_slice %48 {offsets = [0, 128], sizes = [16, 128], strides = [1, 1]} : vector<16x512xf32> to vector<16x128xf32>
    %56 = arith.negf %55 : vector<16x128xf32>
    %57 = math.exp %56 : vector<16x128xf32>
    %cst_20 = arith.constant 1.000000e+00 : f32
    %58 = vector.broadcast %cst_20 : f32 to vector<16x128xf32>
    %59 = arith.addf %58, %57 : vector<16x128xf32>
    %60 = arith.divf %58, %59 : vector<16x128xf32>
    %61 = vector.extract_strided_slice %48 {offsets = [0, 256], sizes = [16, 128], strides = [1, 1]} : vector<16x512xf32> to vector<16x128xf32>
    %62 = math.tanh %61 : vector<16x128xf32>
    %63 = vector.extract_strided_slice %48 {offsets = [0, 384], sizes = [16, 128], strides = [1, 1]} : vector<16x512xf32> to vector<16x128xf32>
    %64 = arith.negf %63 : vector<16x128xf32>
    %65 = math.exp %64 : vector<16x128xf32>
    %cst_21 = arith.constant 1.000000e+00 : f32
    %66 = vector.broadcast %cst_21 : f32 to vector<16x128xf32>
    %67 = arith.addf %66, %65 : vector<16x128xf32>
    %68 = arith.divf %66, %67 : vector<16x128xf32>
    %69 = arith.mulf %60, %34 : vector<16x128xf32>
    %70 = arith.mulf %54, %62 : vector<16x128xf32>
    %71 = arith.addf %69, %70 : vector<16x128xf32>
    %72 = math.tanh %71 : vector<16x128xf32>
    %73 = arith.mulf %68, %72 : vector<16x128xf32>
    %74 = arith.truncf %73 : vector<16x128xf32> to vector<16x128xbf16>
    %75 = arith.index_cast %c1_i32 : i32 to index
    %c0_22 = arith.constant 0 : index
    %c0_23 = arith.constant 0 : index
    %76 = vector.load %arg4[%75, %c0_22, %c0_23] : memref<8x16x128xbf16, #tpu.memory_space<vmem>>, vector<1x16x128xbf16>
    %77 = vector.shape_cast %76 : vector<1x16x128xbf16> to vector<16x128xbf16>
    %78 = vector.shape_cast %74 : vector<16x128xbf16> to vector<1x16x128xbf16>
    tpu.vector_store %arg4[%75, %c0_22, %c0_23], %78 {strides = array<i32>} : memref<8x16x128xbf16, #tpu.memory_space<vmem>>, vector<1x16x128xbf16>,
    %c2_i32 = arith.constant 2 : i32
    %79 = arith.index_cast %c2_i32 : i32 to index
    %c0_24 = arith.constant 0 : index
    %c0_25 = arith.constant 0 : index
    %80 = vector.load %arg2[%79, %c0_24, %c0_25] : memref<8x16x512xf32, #tpu.memory_space<vmem>>, vector<1x16x512xf32>
    %81 = vector.shape_cast %80 : vector<1x16x512xf32> to vector<16x512xf32>
    %82 = arith.truncf %73 : vector<16x128xf32> to vector<16x128xbf16>
    %c0_26 = arith.constant 0 : index
    %c0_27 = arith.constant 0 : index
    %83 = vector.load %arg3[%c0_26, %c0_27] : memref<128x512xbf16, #tpu.memory_space<vmem>>, vector<128x512xbf16>
    %cst_28 = arith.constant dense<0.000000e+00> : vector<16x512xf32>
    %84 = tpu.matmul %82, %83, %cst_28 {dimension_numbers = #tpu.dot_dimension_numbers<[1], [0], [0], [1], [0, 0, 1, 1], [], []>} : vector<16x128xbf16>, vector<128x512xbf16>, vector<16x512xf32> -> vector<16x512xf32>
    %85 = arith.addf %81, %84 : vector<16x512xf32>
    %86 = vector.extract_strided_slice %85 {offsets = [0, 0], sizes = [16, 128], strides = [1, 1]} : vector<16x512xf32> to vector<16x128xf32>
    %87 = arith.negf %86 : vector<16x128xf32>
    %88 = math.exp %87 : vector<16x128xf32>
    %cst_29 = arith.constant 1.000000e+00 : f32
    %89 = vector.broadcast %cst_29 : f32 to vector<16x128xf32>
    %90 = arith.addf %89, %88 : vector<16x128xf32>
    %91 = arith.divf %89, %90 : vector<16x128xf32>
    %92 = vector.extract_strided_slice %85 {offsets = [0, 128], sizes = [16, 128], strides = [1, 1]} : vector<16x512xf32> to vector<16x128xf32>
    %93 = arith.negf %92 : vector<16x128xf32>
    %94 = math.exp %93 : vector<16x128xf32>
    %cst_30 = arith.constant 1.000000e+00 : f32
    %95 = vector.broadcast %cst_30 : f32 to vector<16x128xf32>
    %96 = arith.addf %95, %94 : vector<16x128xf32>
    %97 = arith.divf %95, %96 : vector<16x128xf32>
    %98 = vector.extract_strided_slice %85 {offsets = [0, 256], sizes = [16, 128], strides = [1, 1]} : vector<16x512xf32> to vector<16x128xf32>
    %99 = math.tanh %98 : vector<16x128xf32>
    %100 = vector.extract_strided_slice %85 {offsets = [0, 384], sizes = [16, 128], strides = [1, 1]} : vector<16x512xf32> to vector<16x128xf32>
    %101 = arith.negf %100 : vector<16x128xf32>
    %102 = math.exp %101 : vector<16x128xf32>
    %cst_31 = arith.constant 1.000000e+00 : f32
    %103 = vector.broadcast %cst_31 : f32 to vector<16x128xf32>
    %104 = arith.addf %103, %102 : vector<16x128xf32>
    %105 = arith.divf %103, %104 : vector<16x128xf32>
    %106 = arith.mulf %97, %71 : vector<16x128xf32>
    %107 = arith.mulf %91, %99 : vector<16x128xf32>
    %108 = arith.addf %106, %107 : vector<16x128xf32>
    %109 = math.tanh %108 : vector<16x128xf32>
    %110 = arith.mulf %105, %109 : vector<16x128xf32>
    %111 = arith.truncf %110 : vector<16x128xf32> to vector<16x128xbf16>
    %112 = arith.index_cast %c2_i32 : i32 to index
    %c0_32 = arith.constant 0 : index
    %c0_33 = arith.constant 0 : index
    %113 = vector.load %arg4[%112, %c0_32, %c0_33] : memref<8x16x128xbf16, #tpu.memory_space<vmem>>, vector<1x16x128xbf16>
    %114 = vector.shape_cast %113 : vector<1x16x128xbf16> to vector<16x128xbf16>
    %115 = vector.shape_cast %111 : vector<16x128xbf16> to vector<1x16x128xbf16>
    tpu.vector_store %arg4[%112, %c0_32, %c0_33], %115 {strides = array<i32>} : memref<8x16x128xbf16, #tpu.memory_space<vmem>>, vector<1x16x128xbf16>,
    %c3_i32 = arith.constant 3 : i32
    %116 = arith.index_cast %c3_i32 : i32 to index
    %c0_34 = arith.constant 0 : index
    %c0_35 = arith.constant 0 : index
    %117 = vector.load %arg2[%116, %c0_34, %c0_35] : memref<8x16x512xf32, #tpu.memory_space<vmem>>, vector<1x16x512xf32>
    %118 = vector.shape_cast %117 : vector<1x16x512xf32> to vector<16x512xf32>
    %119 = arith.truncf %110 : vector<16x128xf32> to vector<16x128xbf16>
    %c0_36 = arith.constant 0 : index
    %c0_37 = arith.constant 0 : index
    %120 = vector.load %arg3[%c0_36, %c0_37] : memref<128x512xbf16, #tpu.memory_space<vmem>>, vector<128x512xbf16>
    %cst_38 = arith.constant dense<0.000000e+00> : vector<16x512xf32>
    %121 = tpu.matmul %119, %120, %cst_38 {dimension_numbers = #tpu.dot_dimension_numbers<[1], [0], [0], [1], [0, 0, 1, 1], [], []>} : vector<16x128xbf16>, vector<128x512xbf16>, vector<16x512xf32> -> vector<16x512xf32>
    %122 = arith.addf %118, %121 : vector<16x512xf32>
    %123 = vector.extract_strided_slice %122 {offsets = [0, 0], sizes = [16, 128], strides = [1, 1]} : vector<16x512xf32> to vector<16x128xf32>
    %124 = arith.negf %123 : vector<16x128xf32>
    %125 = math.exp %124 : vector<16x128xf32>
    %cst_39 = arith.constant 1.000000e+00 : f32
    %126 = vector.broadcast %cst_39 : f32 to vector<16x128xf32>
    %127 = arith.addf %126, %125 : vector<16x128xf32>
    %128 = arith.divf %126, %127 : vector<16x128xf32>
    %129 = vector.extract_strided_slice %122 {offsets = [0, 128], sizes = [16, 128], strides = [1, 1]} : vector<16x512xf32> to vector<16x128xf32>
    %130 = arith.negf %129 : vector<16x128xf32>
    %131 = math.exp %130 : vector<16x128xf32>
    %cst_40 = arith.constant 1.000000e+00 : f32
    %132 = vector.broadcast %cst_40 : f32 to vector<16x128xf32>
    %133 = arith.addf %132, %131 : vector<16x128xf32>
    %134 = arith.divf %132, %133 : vector<16x128xf32>
    %135 = vector.extract_strided_slice %122 {offsets = [0, 256], sizes = [16, 128], strides = [1, 1]} : vector<16x512xf32> to vector<16x128xf32>
    %136 = math.tanh %135 : vector<16x128xf32>
    %137 = vector.extract_strided_slice %122 {offsets = [0, 384], sizes = [16, 128], strides = [1, 1]} : vector<16x512xf32> to vector<16x128xf32>
    %138 = arith.negf %137 : vector<16x128xf32>
    %139 = math.exp %138 : vector<16x128xf32>
    %cst_41 = arith.constant 1.000000e+00 : f32
    %140 = vector.broadcast %cst_41 : f32 to vector<16x128xf32>
    %141 = arith.addf %140, %139 : vector<16x128xf32>
    %142 = arith.divf %140, %141 : vector<16x128xf32>
    %143 = arith.mulf %134, %108 : vector<16x128xf32>
    %144 = arith.mulf %128, %136 : vector<16x128xf32>
    %145 = arith.addf %143, %144 : vector<16x128xf32>
    %146 = math.tanh %145 : vector<16x128xf32>
    %147 = arith.mulf %142, %146 : vector<16x128xf32>
    %148 = arith.truncf %147 : vector<16x128xf32> to vector<16x128xbf16>
    %149 = arith.index_cast %c3_i32 : i32 to index
    %c0_42 = arith.constant 0 : index
    %c0_43 = arith.constant 0 : index
    %150 = vector.load %arg4[%149, %c0_42, %c0_43] : memref<8x16x128xbf16, #tpu.memory_space<vmem>>, vector<1x16x128xbf16>
    %151 = vector.shape_cast %150 : vector<1x16x128xbf16> to vector<16x128xbf16>
    %152 = vector.shape_cast %148 : vector<16x128xbf16> to vector<1x16x128xbf16>
    tpu.vector_store %arg4[%149, %c0_42, %c0_43], %152 {strides = array<i32>} : memref<8x16x128xbf16, #tpu.memory_space<vmem>>, vector<1x16x128xbf16>,
    %c4_i32 = arith.constant 4 : i32
    %153 = arith.index_cast %c4_i32 : i32 to index
    %c0_44 = arith.constant 0 : index
    %c0_45 = arith.constant 0 : index
    %154 = vector.load %arg2[%153, %c0_44, %c0_45] : memref<8x16x512xf32, #tpu.memory_space<vmem>>, vector<1x16x512xf32>
    %155 = vector.shape_cast %154 : vector<1x16x512xf32> to vector<16x512xf32>
    %156 = arith.truncf %147 : vector<16x128xf32> to vector<16x128xbf16>
    %c0_46 = arith.constant 0 : index
    %c0_47 = arith.constant 0 : index
    %157 = vector.load %arg3[%c0_46, %c0_47] : memref<128x512xbf16, #tpu.memory_space<vmem>>, vector<128x512xbf16>
    %cst_48 = arith.constant dense<0.000000e+00> : vector<16x512xf32>
    %158 = tpu.matmul %156, %157, %cst_48 {dimension_numbers = #tpu.dot_dimension_numbers<[1], [0], [0], [1], [0, 0, 1, 1], [], []>} : vector<16x128xbf16>, vector<128x512xbf16>, vector<16x512xf32> -> vector<16x512xf32>
    %159 = arith.addf %155, %158 : vector<16x512xf32>
    %160 = vector.extract_strided_slice %159 {offsets = [0, 0], sizes = [16, 128], strides = [1, 1]} : vector<16x512xf32> to vector<16x128xf32>
    %161 = arith.negf %160 : vector<16x128xf32>
    %162 = math.exp %161 : vector<16x128xf32>
    %cst_49 = arith.constant 1.000000e+00 : f32
    %163 = vector.broadcast %cst_49 : f32 to vector<16x128xf32>
    %164 = arith.addf %163, %162 : vector<16x128xf32>
    %165 = arith.divf %163, %164 : vector<16x128xf32>
    %166 = vector.extract_strided_slice %159 {offsets = [0, 128], sizes = [16, 128], strides = [1, 1]} : vector<16x512xf32> to vector<16x128xf32>
    %167 = arith.negf %166 : vector<16x128xf32>
    %168 = math.exp %167 : vector<16x128xf32>
    %cst_50 = arith.constant 1.000000e+00 : f32
    %169 = vector.broadcast %cst_50 : f32 to vector<16x128xf32>
    %170 = arith.addf %169, %168 : vector<16x128xf32>
    %171 = arith.divf %169, %170 : vector<16x128xf32>
    %172 = vector.extract_strided_slice %159 {offsets = [0, 256], sizes = [16, 128], strides = [1, 1]} : vector<16x512xf32> to vector<16x128xf32>
    %173 = math.tanh %172 : vector<16x128xf32>
    %174 = vector.extract_strided_slice %159 {offsets = [0, 384], sizes = [16, 128], strides = [1, 1]} : vector<16x512xf32> to vector<16x128xf32>
    %175 = arith.negf %174 : vector<16x128xf32>
    %176 = math.exp %175 : vector<16x128xf32>
    %cst_51 = arith.constant 1.000000e+00 : f32
    %177 = vector.broadcast %cst_51 : f32 to vector<16x128xf32>
    %178 = arith.addf %177, %176 : vector<16x128xf32>
    %179 = arith.divf %177, %178 : vector<16x128xf32>
    %180 = arith.mulf %171, %145 : vector<16x128xf32>
    %181 = arith.mulf %165, %173 : vector<16x128xf32>
    %182 = arith.addf %180, %181 : vector<16x128xf32>
    %183 = math.tanh %182 : vector<16x128xf32>
    %184 = arith.mulf %179, %183 : vector<16x128xf32>
    %185 = arith.truncf %184 : vector<16x128xf32> to vector<16x128xbf16>
    %186 = arith.index_cast %c4_i32 : i32 to index
    %c0_52 = arith.constant 0 : index
    %c0_53 = arith.constant 0 : index
    %187 = vector.load %arg4[%186, %c0_52, %c0_53] : memref<8x16x128xbf16, #tpu.memory_space<vmem>>, vector<1x16x128xbf16>
    %188 = vector.shape_cast %187 : vector<1x16x128xbf16> to vector<16x128xbf16>
    %189 = vector.shape_cast %185 : vector<16x128xbf16> to vector<1x16x128xbf16>
    tpu.vector_store %arg4[%186, %c0_52, %c0_53], %189 {strides = array<i32>} : memref<8x16x128xbf16, #tpu.memory_space<vmem>>, vector<1x16x128xbf16>,
    %c5_i32 = arith.constant 5 : i32
    %190 = arith.index_cast %c5_i32 : i32 to index
    %c0_54 = arith.constant 0 : index
    %c0_55 = arith.constant 0 : index
    %191 = vector.load %arg2[%190, %c0_54, %c0_55] : memref<8x16x512xf32, #tpu.memory_space<vmem>>, vector<1x16x512xf32>
    %192 = vector.shape_cast %191 : vector<1x16x512xf32> to vector<16x512xf32>
    %193 = arith.truncf %184 : vector<16x128xf32> to vector<16x128xbf16>
    %c0_56 = arith.constant 0 : index
    %c0_57 = arith.constant 0 : index
    %194 = vector.load %arg3[%c0_56, %c0_57] : memref<128x512xbf16, #tpu.memory_space<vmem>>, vector<128x512xbf16>
    %cst_58 = arith.constant dense<0.000000e+00> : vector<16x512xf32>
    %195 = tpu.matmul %193, %194, %cst_58 {dimension_numbers = #tpu.dot_dimension_numbers<[1], [0], [0], [1], [0, 0, 1, 1], [], []>} : vector<16x128xbf16>, vector<128x512xbf16>, vector<16x512xf32> -> vector<16x512xf32>
    %196 = arith.addf %192, %195 : vector<16x512xf32>
    %197 = vector.extract_strided_slice %196 {offsets = [0, 0], sizes = [16, 128], strides = [1, 1]} : vector<16x512xf32> to vector<16x128xf32>
    %198 = arith.negf %197 : vector<16x128xf32>
    %199 = math.exp %198 : vector<16x128xf32>
    %cst_59 = arith.constant 1.000000e+00 : f32
    %200 = vector.broadcast %cst_59 : f32 to vector<16x128xf32>
    %201 = arith.addf %200, %199 : vector<16x128xf32>
    %202 = arith.divf %200, %201 : vector<16x128xf32>
    %203 = vector.extract_strided_slice %196 {offsets = [0, 128], sizes = [16, 128], strides = [1, 1]} : vector<16x512xf32> to vector<16x128xf32>
    %204 = arith.negf %203 : vector<16x128xf32>
    %205 = math.exp %204 : vector<16x128xf32>
    %cst_60 = arith.constant 1.000000e+00 : f32
    %206 = vector.broadcast %cst_60 : f32 to vector<16x128xf32>
    %207 = arith.addf %206, %205 : vector<16x128xf32>
    %208 = arith.divf %206, %207 : vector<16x128xf32>
    %209 = vector.extract_strided_slice %196 {offsets = [0, 256], sizes = [16, 128], strides = [1, 1]} : vector<16x512xf32> to vector<16x128xf32>
    %210 = math.tanh %209 : vector<16x128xf32>
    %211 = vector.extract_strided_slice %196 {offsets = [0, 384], sizes = [16, 128], strides = [1, 1]} : vector<16x512xf32> to vector<16x128xf32>
    %212 = arith.negf %211 : vector<16x128xf32>
    %213 = math.exp %212 : vector<16x128xf32>
    %cst_61 = arith.constant 1.000000e+00 : f32
    %214 = vector.broadcast %cst_61 : f32 to vector<16x128xf32>
    %215 = arith.addf %214, %213 : vector<16x128xf32>
    %216 = arith.divf %214, %215 : vector<16x128xf32>
    %217 = arith.mulf %208, %182 : vector<16x128xf32>
    %218 = arith.mulf %202, %210 : vector<16x128xf32>
    %219 = arith.addf %217, %218 : vector<16x128xf32>
    %220 = math.tanh %219 : vector<16x128xf32>
    %221 = arith.mulf %216, %220 : vector<16x128xf32>
    %222 = arith.truncf %221 : vector<16x128xf32> to vector<16x128xbf16>
    %223 = arith.index_cast %c5_i32 : i32 to index
    %c0_62 = arith.constant 0 : index
    %c0_63 = arith.constant 0 : index
    %224 = vector.load %arg4[%223, %c0_62, %c0_63] : memref<8x16x128xbf16, #tpu.memory_space<vmem>>, vector<1x16x128xbf16>
    %225 = vector.shape_cast %224 : vector<1x16x128xbf16> to vector<16x128xbf16>
    %226 = vector.shape_cast %222 : vector<16x128xbf16> to vector<1x16x128xbf16>
    tpu.vector_store %arg4[%223, %c0_62, %c0_63], %226 {strides = array<i32>} : memref<8x16x128xbf16, #tpu.memory_space<vmem>>, vector<1x16x128xbf16>,
    %c6_i32 = arith.constant 6 : i32
    %227 = arith.index_cast %c6_i32 : i32 to index
    %c0_64 = arith.constant 0 : index
    %c0_65 = arith.constant 0 : index
    %228 = vector.load %arg2[%227, %c0_64, %c0_65] : memref<8x16x512xf32, #tpu.memory_space<vmem>>, vector<1x16x512xf32>
    %229 = vector.shape_cast %228 : vector<1x16x512xf32> to vector<16x512xf32>
    %230 = arith.truncf %221 : vector<16x128xf32> to vector<16x128xbf16>
    %c0_66 = arith.constant 0 : index
    %c0_67 = arith.constant 0 : index
    %231 = vector.load %arg3[%c0_66, %c0_67] : memref<128x512xbf16, #tpu.memory_space<vmem>>, vector<128x512xbf16>
    %cst_68 = arith.constant dense<0.000000e+00> : vector<16x512xf32>
    %232 = tpu.matmul %230, %231, %cst_68 {dimension_numbers = #tpu.dot_dimension_numbers<[1], [0], [0], [1], [0, 0, 1, 1], [], []>} : vector<16x128xbf16>, vector<128x512xbf16>, vector<16x512xf32> -> vector<16x512xf32>
    %233 = arith.addf %229, %232 : vector<16x512xf32>
    %234 = vector.extract_strided_slice %233 {offsets = [0, 0], sizes = [16, 128], strides = [1, 1]} : vector<16x512xf32> to vector<16x128xf32>
    %235 = arith.negf %234 : vector<16x128xf32>
    %236 = math.exp %235 : vector<16x128xf32>
    %cst_69 = arith.constant 1.000000e+00 : f32
    %237 = vector.broadcast %cst_69 : f32 to vector<16x128xf32>
    %238 = arith.addf %237, %236 : vector<16x128xf32>
    %239 = arith.divf %237, %238 : vector<16x128xf32>
    %240 = vector.extract_strided_slice %233 {offsets = [0, 128], sizes = [16, 128], strides = [1, 1]} : vector<16x512xf32> to vector<16x128xf32>
    %241 = arith.negf %240 : vector<16x128xf32>
    %242 = math.exp %241 : vector<16x128xf32>
    %cst_70 = arith.constant 1.000000e+00 : f32
    %243 = vector.broadcast %cst_70 : f32 to vector<16x128xf32>
    %244 = arith.addf %243, %242 : vector<16x128xf32>
    %245 = arith.divf %243, %244 : vector<16x128xf32>
    %246 = vector.extract_strided_slice %233 {offsets = [0, 256], sizes = [16, 128], strides = [1, 1]} : vector<16x512xf32> to vector<16x128xf32>
    %247 = math.tanh %246 : vector<16x128xf32>
    %248 = vector.extract_strided_slice %233 {offsets = [0, 384], sizes = [16, 128], strides = [1, 1]} : vector<16x512xf32> to vector<16x128xf32>
    %249 = arith.negf %248 : vector<16x128xf32>
    %250 = math.exp %249 : vector<16x128xf32>
    %cst_71 = arith.constant 1.000000e+00 : f32
    %251 = vector.broadcast %cst_71 : f32 to vector<16x128xf32>
    %252 = arith.addf %251, %250 : vector<16x128xf32>
    %253 = arith.divf %251, %252 : vector<16x128xf32>
    %254 = arith.mulf %245, %219 : vector<16x128xf32>
    %255 = arith.mulf %239, %247 : vector<16x128xf32>
    %256 = arith.addf %254, %255 : vector<16x128xf32>
    %257 = math.tanh %256 : vector<16x128xf32>
    %258 = arith.mulf %253, %257 : vector<16x128xf32>
    %259 = arith.truncf %258 : vector<16x128xf32> to vector<16x128xbf16>
    %260 = arith.index_cast %c6_i32 : i32 to index
    %c0_72 = arith.constant 0 : index
    %c0_73 = arith.constant 0 : index
    %261 = vector.load %arg4[%260, %c0_72, %c0_73] : memref<8x16x128xbf16, #tpu.memory_space<vmem>>, vector<1x16x128xbf16>
    %262 = vector.shape_cast %261 : vector<1x16x128xbf16> to vector<16x128xbf16>
    %263 = vector.shape_cast %259 : vector<16x128xbf16> to vector<1x16x128xbf16>
    tpu.vector_store %arg4[%260, %c0_72, %c0_73], %263 {strides = array<i32>} : memref<8x16x128xbf16, #tpu.memory_space<vmem>>, vector<1x16x128xbf16>,
    %c7_i32 = arith.constant 7 : i32
    %264 = arith.index_cast %c7_i32 : i32 to index
    %c0_74 = arith.constant 0 : index
    %c0_75 = arith.constant 0 : index
    %265 = vector.load %arg2[%264, %c0_74, %c0_75] : memref<8x16x512xf32, #tpu.memory_space<vmem>>, vector<1x16x512xf32>
    %266 = vector.shape_cast %265 : vector<1x16x512xf32> to vector<16x512xf32>
    %267 = arith.truncf %258 : vector<16x128xf32> to vector<16x128xbf16>
    %c0_76 = arith.constant 0 : index
    %c0_77 = arith.constant 0 : index
    %268 = vector.load %arg3[%c0_76, %c0_77] : memref<128x512xbf16, #tpu.memory_space<vmem>>, vector<128x512xbf16>
    %cst_78 = arith.constant dense<0.000000e+00> : vector<16x512xf32>
    %269 = tpu.matmul %267, %268, %cst_78 {dimension_numbers = #tpu.dot_dimension_numbers<[1], [0], [0], [1], [0, 0, 1, 1], [], []>} : vector<16x128xbf16>, vector<128x512xbf16>, vector<16x512xf32> -> vector<16x512xf32>
    %270 = arith.addf %266, %269 : vector<16x512xf32>
    %271 = vector.extract_strided_slice %270 {offsets = [0, 0], sizes = [16, 128], strides = [1, 1]} : vector<16x512xf32> to vector<16x128xf32>
    %272 = arith.negf %271 : vector<16x128xf32>
    %273 = math.exp %272 : vector<16x128xf32>
    %cst_79 = arith.constant 1.000000e+00 : f32
    %274 = vector.broadcast %cst_79 : f32 to vector<16x128xf32>
    %275 = arith.addf %274, %273 : vector<16x128xf32>
    %276 = arith.divf %274, %275 : vector<16x128xf32>
    %277 = vector.extract_strided_slice %270 {offsets = [0, 128], sizes = [16, 128], strides = [1, 1]} : vector<16x512xf32> to vector<16x128xf32>
    %278 = arith.negf %277 : vector<16x128xf32>
    %279 = math.exp %278 : vector<16x128xf32>
    %cst_80 = arith.constant 1.000000e+00 : f32
    %280 = vector.broadcast %cst_80 : f32 to vector<16x128xf32>
    %281 = arith.addf %280, %279 : vector<16x128xf32>
    %282 = arith.divf %280, %281 : vector<16x128xf32>
    %283 = vector.extract_strided_slice %270 {offsets = [0, 256], sizes = [16, 128], strides = [1, 1]} : vector<16x512xf32> to vector<16x128xf32>
    %284 = math.tanh %283 : vector<16x128xf32>
    %285 = vector.extract_strided_slice %270 {offsets = [0, 384], sizes = [16, 128], strides = [1, 1]} : vector<16x512xf32> to vector<16x128xf32>
    %286 = arith.negf %285 : vector<16x128xf32>
    %287 = math.exp %286 : vector<16x128xf32>
    %cst_81 = arith.constant 1.000000e+00 : f32
    %288 = vector.broadcast %cst_81 : f32 to vector<16x128xf32>
    %289 = arith.addf %288, %287 : vector<16x128xf32>
    %290 = arith.divf %288, %289 : vector<16x128xf32>
    %291 = arith.mulf %282, %256 : vector<16x128xf32>
    %292 = arith.mulf %276, %284 : vector<16x128xf32>
    %293 = arith.addf %291, %292 : vector<16x128xf32>
    %294 = math.tanh %293 : vector<16x128xf32>
    %295 = arith.mulf %290, %294 : vector<16x128xf32>
    %296 = arith.truncf %295 : vector<16x128xf32> to vector<16x128xbf16>
    %297 = arith.index_cast %c7_i32 : i32 to index
    %c0_82 = arith.constant 0 : index
    %c0_83 = arith.constant 0 : index
    %298 = vector.load %arg4[%297, %c0_82, %c0_83] : memref<8x16x128xbf16, #tpu.memory_space<vmem>>, vector<1x16x128xbf16>
    %299 = vector.shape_cast %298 : vector<1x16x128xbf16> to vector<16x128xbf16>
    %300 = vector.shape_cast %296 : vector<16x128xbf16> to vector<1x16x128xbf16>
    tpu.vector_store %arg4[%297, %c0_82, %c0_83], %300 {strides = array<i32>} : memref<8x16x128xbf16, #tpu.memory_space<vmem>>, vector<1x16x128xbf16>,
    %c8_i32 = arith.constant 8 : i32
    %c0_84 = arith.constant 0 : index
    %c0_85 = arith.constant 0 : index
    %301 = vector.load %arg5[%c0_84, %c0_85] : memref<16x128xf32, #tpu.memory_space<vmem>>, vector<16x128xf32>
    tpu.vector_store %arg5[%c0_84, %c0_85], %295 {strides = array<i32>} : memref<16x128xf32, #tpu.memory_space<vmem>>, vector<16x128xf32>,
    %c0_86 = arith.constant 0 : index
    %c0_87 = arith.constant 0 : index
    %302 = vector.load %arg6[%c0_86, %c0_87] : memref<16x128xf32, #tpu.memory_space<vmem>>, vector<16x128xf32>
    tpu.vector_store %arg6[%c0_86, %c0_87], %293 {strides = array<i32>} : memref<16x128xf32, #tpu.memory_space<vmem>>, vector<16x128xf32>,
    return
  }
  func.func @transform_0(%arg0: i32, %arg1: i32) -> (i32, i32, i32) {
    %c0_i32 = arith.constant 0 : i32
    %c0_i32_0 = arith.constant 0 : i32
    return %arg1, %arg0, %c0_i32 : i32, i32, i32
  }
  func.func @transform_1(%arg0: i32, %arg1: i32) -> (i32, i32) {
    %c0_i32 = arith.constant 0 : i32
    %c0_i32_0 = arith.constant 0 : i32
    %c0_i32_1 = arith.constant 0 : i32
    return %c0_i32, %c0_i32_0 : i32, i32
  }
  func.func @transform_2(%arg0: i32, %arg1: i32) -> (i32, i32, i32) {
    %c0_i32 = arith.constant 0 : i32
    %c0_i32_0 = arith.constant 0 : i32
    return %arg1, %arg0, %c0_i32 : i32, i32, i32
  }
}

module attributes {stable_mosaic.version = 11 : i64} {
  func.func @_gemm_bias_kernel(%arg0: i32, %arg1: i32, %arg2: i32, %arg3: memref<128x128xbf16, #tpu.memory_space<vmem>>, %arg4: memref<128x128xbf16, #tpu.memory_space<vmem>>, %arg5: memref<1x128xf32, #tpu.memory_space<vmem>>, %arg6: memref<128x128xf32, #tpu.memory_space<vmem>>, %arg7: memref<128x128xf32, #tpu.memory_space<vmem>>) attributes {dimension_semantics = [#tpu.dimension_semantics<parallel>, #tpu.dimension_semantics<parallel>, #tpu.dimension_semantics<arbitrary>], iteration_bounds = array<i64: 1, 1, 1>, scalar_prefetch = 0 : i64, scratch_operands = 1 : i64, tpu.core_type = #tpu.core_type<tc>, window_params = [{transform_indices = @transform_0, window_bounds = array<i64: 128, 128>}, {transform_indices = @transform_1, window_bounds = array<i64: 128, 128>}, {transform_indices = @transform_2, window_bounds = array<i64: 1, 128>}, {transform_indices = @transform_3, window_bounds = array<i64: 128, 128>}]} {
    %c0_i32 = arith.constant 0 : i32
    %0 = arith.cmpi eq, %arg2, %c0_i32 : i32
    %1 = arith.extui %0 : i1 to i32
    %c0_i32_0 = arith.constant 0 : i32
    %2 = arith.cmpi ne, %1, %c0_i32_0 : i32
    scf.if %2 {
      %cst_10 = arith.constant 0.000000e+00 : f32
      %12 = vector.broadcast %cst_10 : f32 to vector<128x128xf32>
      %c0_11 = arith.constant 0 : index
      %c0_12 = arith.constant 0 : index
      %13 = vector.load %arg7[%c0_11, %c0_12] : memref<128x128xf32, #tpu.memory_space<vmem>>, vector<128x128xf32>
      tpu.vector_store %arg7[%c0_11, %c0_12], %12 {strides = array<i32>} : memref<128x128xf32, #tpu.memory_space<vmem>>, vector<128x128xf32>,
    } else {
    }
    %c0 = arith.constant 0 : index
    %c0_1 = arith.constant 0 : index
    %3 = vector.load %arg7[%c0, %c0_1] : memref<128x128xf32, #tpu.memory_space<vmem>>, vector<128x128xf32>
    %c0_2 = arith.constant 0 : index
    %c0_3 = arith.constant 0 : index
    %4 = vector.load %arg3[%c0_2, %c0_3] : memref<128x128xbf16, #tpu.memory_space<vmem>>, vector<128x128xbf16>
    %c0_4 = arith.constant 0 : index
    %c0_5 = arith.constant 0 : index
    %5 = vector.load %arg4[%c0_4, %c0_5] : memref<128x128xbf16, #tpu.memory_space<vmem>>, vector<128x128xbf16>
    %cst = arith.constant dense<0.000000e+00> : vector<128x128xf32>
    %6 = tpu.matmul %4, %5, %cst {dimension_numbers = #tpu.dot_dimension_numbers<[1], [0], [0], [1], [0, 0, 1, 1], [], []>} : vector<128x128xbf16>, vector<128x128xbf16>, vector<128x128xf32> -> vector<128x128xf32>
    %7 = arith.addf %3, %6 : vector<128x128xf32>
    %c0_6 = arith.constant 0 : index
    %c0_7 = arith.constant 0 : index
    %8 = vector.load %arg7[%c0_6, %c0_7] : memref<128x128xf32, #tpu.memory_space<vmem>>, vector<128x128xf32>
    tpu.vector_store %arg7[%c0_6, %c0_7], %7 {strides = array<i32>} : memref<128x128xf32, #tpu.memory_space<vmem>>, vector<128x128xf32>,
    %c0_i32_8 = arith.constant 0 : i32
    %9 = arith.cmpi eq, %arg2, %c0_i32_8 : i32
    %10 = arith.extui %9 : i1 to i32
    %c0_i32_9 = arith.constant 0 : i32
    %11 = arith.cmpi ne, %10, %c0_i32_9 : i32
    scf.if %11 {
      %c0_10 = arith.constant 0 : index
      %c0_11 = arith.constant 0 : index
      %12 = vector.load %arg7[%c0_10, %c0_11] : memref<128x128xf32, #tpu.memory_space<vmem>>, vector<128x128xf32>
      %c0_12 = arith.constant 0 : index
      %c0_13 = arith.constant 0 : index
      %13 = vector.load %arg5[%c0_12, %c0_13] : memref<1x128xf32, #tpu.memory_space<vmem>>, vector<1x128xf32>
      %14 = vector.broadcast %13 : vector<1x128xf32> to vector<128x128xf32>
      %15 = arith.addf %12, %14 : vector<128x128xf32>
      %c0_14 = arith.constant 0 : index
      %c0_15 = arith.constant 0 : index
      %16 = vector.load %arg6[%c0_14, %c0_15] : memref<128x128xf32, #tpu.memory_space<vmem>>, vector<128x128xf32>
      tpu.vector_store %arg6[%c0_14, %c0_15], %15 {strides = array<i32>} : memref<128x128xf32, #tpu.memory_space<vmem>>, vector<128x128xf32>,
    } else {
    }
    return
  }
  func.func @transform_0(%arg0: i32, %arg1: i32, %arg2: i32) -> (i32, i32) {
    %c0_i32 = arith.constant 0 : i32
    return %arg0, %arg2 : i32, i32
  }
  func.func @transform_1(%arg0: i32, %arg1: i32, %arg2: i32) -> (i32, i32) {
    %c0_i32 = arith.constant 0 : i32
    return %arg2, %arg1 : i32, i32
  }
  func.func @transform_2(%arg0: i32, %arg1: i32, %arg2: i32) -> (i32, i32) {
    %c0_i32 = arith.constant 0 : i32
    %c0_i32_0 = arith.constant 0 : i32
    return %c0_i32, %arg1 : i32, i32
  }
  func.func @transform_3(%arg0: i32, %arg1: i32, %arg2: i32) -> (i32, i32) {
    %c0_i32 = arith.constant 0 : i32
    return %arg0, %arg1 : i32, i32
  }
}

</mosaic_0001>

<llo_original>
// kernel: decoder_rnn_forward.5
$region0: #{decoder_rnn_forward.5}
  #allocation0 [shape = 'u32[]', space=smem, size = 0x4, offset = 0x4, fixed_abs, tag = 'smem constant byte address 0x4 - core index']
  #allocation1 [shape = 'u32[144,128]{1,0:T(1,128)}', space=vmem, size = 0x12000, scoped, tag = 'internal scratch']
  #allocation2 [shape = 'f32[128,128]{1,0:T(8,128)}', space=vmem, size = 0x10000, scoped, tag = 'scratch operand']
  %s0 = inlined_call_operand.vmem [shape: bf16[128,128], index: 0, kind: input, shape index: {}]
  %s1 = inlined_call_operand.vmem [shape: bf16[128,128], index: 1, kind: input, shape index: {}]
  %s2 = inlined_call_operand.vmem [shape: f32[1,128], index: 2, kind: input, shape index: {}]
  %s3 = inlined_call_operand.vmem [shape: f32[128,128], index: 3, kind: output, shape index: {}]
  %s4 = sld [smem:[#allocation0]]
  $region30: #{decoder_rnn_forward.5} parent=0
    _
  %s6 = ssub.s32 1, %s4
  %s7 = scalar_select 0, %s6, %s4
  // Predicated region
  $region2: #{decoder_rnn_forward.5} parent=0 // pred_check
    _
  $region3: #{decoder_rnn_forward.5} parent=0 // pred_check_branch
    %9 = sbr.rel (0) target = $region5
  $region4: #{decoder_rnn_forward.5} parent=0 // pred_region
    _
  $region5: #{decoder_rnn_forward.5} parent=0 // pred_fallthru
    _
  // Predicated region
  $region6: #{decoder_rnn_forward.5} parent=0 // pred_check
    _
  $region7: #{decoder_rnn_forward.5} parent=0 // pred_check_branch
    %11 = sbr.rel (0) target = $region9
  $region8: #{decoder_rnn_forward.5} parent=0 // pred_region
    _
  $region9: #{decoder_rnn_forward.5} parent=0 // pred_fallthru
    _
  // Predicated region
  $region10: #{decoder_rnn_forward.5} parent=0 // pred_check
    _
  $region11: #{decoder_rnn_forward.5} parent=0 // pred_check_branch
    %13 = sbr.rel (0) target = $region13
  $region12: #{decoder_rnn_forward.5} parent=0 // pred_region
    _
  $region13: #{decoder_rnn_forward.5} parent=0 // pred_fallthru
    _
  %p15 = scmp.eq.s32.totalorder 0, 0
  // Predicated region
  $region14: #{decoder_rnn_forward.5} parent=0 // pred_check
    %p16 = pneg %p15
  $region15: #{decoder_rnn_forward.5} parent=0 // pred_check_branch
    %18 = sbr.rel (%p16) target = $region17
  $region16: #{decoder_rnn_forward.5} parent=0 // pred_region
    %19 = vst [vmem:[#allocation2] sm:$0xff] 0.0
    %20 = vst [vmem:[#allocation2 + $0x8] sm:$0xff] 0.0
    %21 = vst [vmem:[#allocation2 + $0x10] sm:$0xff] 0.0
    %22 = vst [vmem:[#allocation2 + $0x18] sm:$0xff] 0.0
    %23 = vst [vmem:[#allocation2 + $0x20] sm:$0xff] 0.0
    %24 = vst [vmem:[#allocation2 + $0x28] sm:$0xff] 0.0
    %25 = vst [vmem:[#allocation2 + $0x30] sm:$0xff] 0.0
    %26 = vst [vmem:[#allocation2 + $0x38] sm:$0xff] 0.0
    %27 = vst [vmem:[#allocation2 + $0x40] sm:$0xff] 0.0
    %28 = vst [vmem:[#allocation2 + $0x48] sm:$0xff] 0.0
    %29 = vst [vmem:[#allocation2 + $0x50] sm:$0xff] 0.0
    %30 = vst [vmem:[#allocation2 + $0x58] sm:$0xff] 0.0
    %31 = vst [vmem:[#allocation2 + $0x60] sm:$0xff] 0.0
    %32 = vst [vmem:[#allocation2 + $0x68] sm:$0xff] 0.0
    %33 = vst [vmem:[#allocation2 + $0x70] sm:$0xff] 0.0
    %34 = vst [vmem:[#allocation2 + $0x78] sm:$0xff] 0.0
  $region17: #{decoder_rnn_forward.5} parent=0 // pred_fallthru
    _
  %v35 = vld [vmem:[#allocation2] sm:$0xff]
  %v36 = vld [vmem:[#allocation2 + $0x8] sm:$0xff]
  %v37 = vld [vmem:[#allocation2 + $0x10] sm:$0xff]
  %v38 = vld [vmem:[#allocation2 + $0x18] sm:$0xff]
  %v39 = vld [vmem:[#allocation2 + $0x20] sm:$0xff]
  %v40 = vld [vmem:[#allocation2 + $0x28] sm:$0xff]
  %v41 = vld [vmem:[#allocation2 + $0x30] sm:$0xff]
  %v42 = vld [vmem:[#allocation2 + $0x38] sm:$0xff]
  %v43 = vld [vmem:[#allocation2 + $0x40] sm:$0xff]
  %v44 = vld [vmem:[#allocation2 + $0x48] sm:$0xff]
  %v45 = vld [vmem:[#allocation2 + $0x50] sm:$0xff]
  %v46 = vld [vmem:[#allocation2 + $0x58] sm:$0xff]
  %v47 = vld [vmem:[#allocation2 + $0x60] sm:$0xff]
  %v48 = vld [vmem:[#allocation2 + $0x68] sm:$0xff]
  %v49 = vld [vmem:[#allocation2 + $0x70] sm:$0xff]
  %v50 = vld [vmem:[#allocation2 + $0x78] sm:$0xff]
  %v51 = vld [vmem:[%s0] sm:$0xf]
  %v52 = vld [vmem:[%s0 + $0x4] sm:$0xf]
  %v53 = vld [vmem:[%s0 + $0x8] sm:$0xf]
  %v54 = vld [vmem:[%s0 + $0xc] sm:$0xf]
  %v55 = vld [vmem:[%s0 + $0x10] sm:$0xf]
  %v56 = vld [vmem:[%s0 + $0x14] sm:$0xf]
  %v57 = vld [vmem:[%s0 + $0x18] sm:$0xf]
  %v58 = vld [vmem:[%s0 + $0x1c] sm:$0xf]
  %v59 = vld [vmem:[%s0 + $0x20] sm:$0xf]
  %v60 = vld [vmem:[%s0 + $0x24] sm:$0xf]
  %v61 = vld [vmem:[%s0 + $0x28] sm:$0xf]
  %v62 = vld [vmem:[%s0 + $0x2c] sm:$0xf]
  %v63 = vld [vmem:[%s0 + $0x30] sm:$0xf]
  %v64 = vld [vmem:[%s0 + $0x34] sm:$0xf]
  %v65 = vld [vmem:[%s0 + $0x38] sm:$0xf]
  %v66 = vld [vmem:[%s0 + $0x3c] sm:$0xf]
  %v67 = vld [vmem:[%s1] sm:$0xf]
  %v68 = vld [vmem:[%s1 + $0x4] sm:$0xf]
  %v69 = vld [vmem:[%s1 + $0x8] sm:$0xf]
  %v70 = vld [vmem:[%s1 + $0xc] sm:$0xf]
  %v71 = vld [vmem:[%s1 + $0x10] sm:$0xf]
  %v72 = vld [vmem:[%s1 + $0x14] sm:$0xf]
  %v73 = vld [vmem:[%s1 + $0x18] sm:$0xf]
  %v74 = vld [vmem:[%s1 + $0x1c] sm:$0xf]
  %v75 = vld [vmem:[%s1 + $0x20] sm:$0xf]
  %v76 = vld [vmem:[%s1 + $0x24] sm:$0xf]
  %v77 = vld [vmem:[%s1 + $0x28] sm:$0xf]
  %v78 = vld [vmem:[%s1 + $0x2c] sm:$0xf]
  %v79 = vld [vmem:[%s1 + $0x30] sm:$0xf]
  %v80 = vld [vmem:[%s1 + $0x34] sm:$0xf]
  %v81 = vld [vmem:[%s1 + $0x38] sm:$0xf]
  %v82 = vld [vmem:[%s1 + $0x3c] sm:$0xf]
  %v99 = vunpack.c.l.b16 %v51
  %v100 = vunpack.c.l.b16 %v52
  %v101 = vunpack.c.l.b16 %v53
  %v102 = vunpack.c.l.b16 %v54
  %v103 = vunpack.c.l.b16 %v55
  %v104 = vunpack.c.l.b16 %v56
  %v105 = vunpack.c.l.b16 %v57
  %v106 = vunpack.c.l.b16 %v58
  %v107 = vunpack.c.l.b16 %v59
  %v108 = vunpack.c.l.b16 %v60
  %v109 = vunpack.c.l.b16 %v61
  %v110 = vunpack.c.l.b16 %v62
  %v111 = vunpack.c.l.b16 %v63
  %v112 = vunpack.c.l.b16 %v64
  %v113 = vunpack.c.l.b16 %v65
  %v114 = vunpack.c.l.b16 %v66
  %v115 = vpack.c.b16 %v100, %v99
  %v116 = vpack.c.b16 %v102, %v101
  %v117 = vpack.c.b16 %v104, %v103
  %v118 = vpack.c.b16 %v106, %v105
  %v119 = vpack.c.b16 %v108, %v107
  %v120 = vpack.c.b16 %v110, %v109
  %v121 = vpack.c.b16 %v112, %v111
  %v122 = vpack.c.b16 %v114, %v113
  %v147 = vunpack.c.l.b16 %v67
  %v148 = vunpack.c.l.b16 %v68
  %v149 = vunpack.c.l.b16 %v69
  %v150 = vunpack.c.l.b16 %v70
  %v151 = vunpack.c.l.b16 %v71
  %v152 = vunpack.c.l.b16 %v72
  %v153 = vunpack.c.l.b16 %v73
  %v154 = vunpack.c.l.b16 %v74
  %v155 = vunpack.c.l.b16 %v75
  %v156 = vunpack.c.l.b16 %v76
  %v157 = vunpack.c.l.b16 %v77
  %v158 = vunpack.c.l.b16 %v78
  %v159 = vunpack.c.l.b16 %v79
  %v160 = vunpack.c.l.b16 %v80
  %v161 = vunpack.c.l.b16 %v81
  %v162 = vunpack.c.l.b16 %v82
  %v163 = vpack.c.b16 %v148, %v147
  %v164 = vpack.c.b16 %v150, %v149
  %v165 = vpack.c.b16 %v152, %v151
  %v166 = vpack.c.b16 %v154, %v153
  %v167 = vpack.c.b16 %v156, %v155
  %v168 = vpack.c.b16 %v158, %v157
  %v169 = vpack.c.b16 %v160, %v159
  %v170 = vpack.c.b16 %v162, %v161
  %179 = vmatprep.subr.bf16.mxu0 0
  %180 = vmatpush1.bf16.msra.mxu0 %v163
  %181 = vmatprep.subr.bf16.mxu0 0
  %182 = vmatpush1.bf16.msra.mxu0 %v164
  %183 = vmatprep.subr.bf16.mxu0 0
  %184 = vmatpush1.bf16.msra.mxu0 %v165
  %185 = vmatprep.subr.bf16.mxu0 0
  %186 = vmatpush1.bf16.msra.mxu0 %v166
  %187 = vmatprep.subr.bf16.mxu0 0
  %188 = vmatpush1.bf16.msra.mxu0 %v167
  %189 = vmatprep.subr.bf16.mxu0 0
  %190 = vmatpush1.bf16.msra.mxu0 %v168
  %191 = vmatprep.subr.bf16.mxu0 0
  %192 = vmatpush1.bf16.msra.mxu0 %v169
  %193 = vmatprep.subr.bf16.mxu0 0
  %194 = vmatpush1.bf16.msra.mxu0 %v170
  %195 = vmatprep.subr.bf16.mxu0 0
  %196 = vmatpush1.bf16.msra.mxu0 0
  %197 = vmatprep.subr.bf16.mxu0 0
  %198 = vmatpush1.bf16.msra.mxu0 0
  %199 = vmatprep.subr.bf16.mxu0 0
  %200 = vmatpush1.bf16.msra.mxu0 0
  %201 = vmatprep.subr.bf16.mxu0 0
  %202 = vmatpush1.bf16.msra.mxu0 0
  %203 = vmatprep.subr.bf16.mxu0 0
  %204 = vmatpush1.bf16.msra.mxu0 0
  %205 = vmatprep.subr.bf16.mxu0 0
  %206 = vmatpush1.bf16.msra.mxu0 0
  %207 = vmatprep.subr.bf16.mxu0 0
  %208 = vmatpush1.bf16.msra.mxu0 0
  %209 = vmatprep.subr.bf16.mxu0 0
  %210 = vmatpush1.bf16.msra.mxu0 0
  %211 = vmatprep.mubr.bf16.mxu0 0
  %212 = vmatmul.mubr.bf16.gmra.mrb[0].mxu0 %v115
  %v213 = vpop.f32.mrb[0].mxu0
  %v214 = vadd.f32 0.0, %v213
  %v215 = vpop.f32.mrb[0].mxu0
  %v216 = vpop.f32.mrb[0].mxu0
  %v217 = vadd.f32 0.0, %v216
  %v218 = vpop.f32.mrb[0].mxu0
  %219 = vmatprep.mubr.bf16.mxu0 0
  %220 = vmatmul.mubr.bf16.gmra.mrb[0].mxu0 %v116
  %v221 = vpop.f32.mrb[0].mxu0
  %v222 = vadd.f32 0.0, %v221
  %v223 = vpop.f32.mrb[0].mxu0
  %v224 = vpop.f32.mrb[0].mxu0
  %v225 = vadd.f32 0.0, %v224
  %v226 = vpop.f32.mrb[0].mxu0
  %227 = vmatprep.mubr.bf16.mxu0 0
  %228 = vmatmul.mubr.bf16.gmra.mrb[0].mxu0 %v117
  %v229 = vpop.f32.mrb[0].mxu0
  %v230 = vadd.f32 0.0, %v229
  %v231 = vpop.f32.mrb[0].mxu0
  %v232 = vpop.f32.mrb[0].mxu0
  %v233 = vadd.f32 0.0, %v232
  %v234 = vpop.f32.mrb[0].mxu0
  %235 = vmatprep.mubr.bf16.mxu0 0
  %236 = vmatmul.mubr.bf16.gmra.mrb[0].mxu0 %v118
  %v237 = vpop.f32.mrb[0].mxu0
  %v238 = vadd.f32 0.0, %v237
  %v239 = vpop.f32.mrb[0].mxu0
  %v240 = vpop.f32.mrb[0].mxu0
  %v241 = vadd.f32 0.0, %v240
  %v242 = vpop.f32.mrb[0].mxu0
  %243 = vmatprep.mubr.bf16.mxu0 0
  %244 = vmatmul.mubr.bf16.gmra.mrb[0].mxu0 %v119
  %v245 = vpop.f32.mrb[0].mxu0
  %v246 = vadd.f32 0.0, %v245
  %v247 = vpop.f32.mrb[0].mxu0
  %v248 = vpop.f32.mrb[0].mxu0
  %v249 = vadd.f32 0.0, %v248
  %v250 = vpop.f32.mrb[0].mxu0
  %251 = vmatprep.mubr.bf16.mxu0 0
  %252 = vmatmul.mubr.bf16.gmra.mrb[0].mxu0 %v120
  %v253 = vpop.f32.mrb[0].mxu0
  %v254 = vadd.f32 0.0, %v253
  %v255 = vpop.f32.mrb[0].mxu0
  %v256 = vpop.f32.mrb[0].mxu0
  %v257 = vadd.f32 0.0, %v256
  %v258 = vpop.f32.mrb[0].mxu0
  %259 = vmatprep.mubr.bf16.mxu0 0
  %260 = vmatmul.mubr.bf16.gmra.mrb[0].mxu0 %v121
  %v261 = vpop.f32.mrb[0].mxu0
  %v262 = vadd.f32 0.0, %v261
  %v263 = vpop.f32.mrb[0].mxu0
  %v264 = vpop.f32.mrb[0].mxu0
  %v265 = vadd.f32 0.0, %v264
  %v266 = vpop.f32.mrb[0].mxu0
  %267 = vmatprep.mubr.bf16.mxu0 0
  %268 = vmatmul.mubr.bf16.gmra.mrb[0].mxu0 %v122
  %v269 = vpop.f32.mrb[0].mxu0
  %v270 = vadd.f32 0.0, %v269
  %v271 = vpop.f32.mrb[0].mxu0
  %v272 = vpop.f32.mrb[0].mxu0
  %v273 = vadd.f32 0.0, %v272
  %v274 = vpop.f32.mrb[0].mxu0
  %275 = vdwg.mxu0
  %v276 = vadd.f32 %v35, %v214
  %v277 = vadd.f32 %v36, %v217
  %v278 = vadd.f32 %v37, %v222
  %v279 = vadd.f32 %v38, %v225
  %v280 = vadd.f32 %v39, %v230
  %v281 = vadd.f32 %v40, %v233
  %v282 = vadd.f32 %v41, %v238
  %v283 = vadd.f32 %v42, %v241
  %v284 = vadd.f32 %v43, %v246
  %v285 = vadd.f32 %v44, %v249
  %v286 = vadd.f32 %v45, %v254
  %v287 = vadd.f32 %v46, %v257
  %v288 = vadd.f32 %v47, %v262
  %v289 = vadd.f32 %v48, %v265
  %v290 = vadd.f32 %v49, %v270
  %v291 = vadd.f32 %v50, %v273
  %292 = vst [vmem:[#allocation2] sm:$0xff] %v276
  %293 = vst [vmem:[#allocation2 + $0x8] sm:$0xff] %v277
  %294 = vst [vmem:[#allocation2 + $0x10] sm:$0xff] %v278
  %295 = vst [vmem:[#allocation2 + $0x18] sm:$0xff] %v279
  %296 = vst [vmem:[#allocation2 + $0x20] sm:$0xff] %v280
  %297 = vst [vmem:[#allocation2 + $0x28] sm:$0xff] %v281
  %298 = vst [vmem:[#allocation2 + $0x30] sm:$0xff] %v282
  %299 = vst [vmem:[#allocation2 + $0x38] sm:$0xff] %v283
  %300 = vst [vmem:[#allocation2 + $0x40] sm:$0xff] %v284
  %301 = vst [vmem:[#allocation2 + $0x48] sm:$0xff] %v285
  %302 = vst [vmem:[#allocation2 + $0x50] sm:$0xff] %v286
  %303 = vst [vmem:[#allocation2 + $0x58] sm:$0xff] %v287
  %304 = vst [vmem:[#allocation2 + $0x60] sm:$0xff] %v288
  %305 = vst [vmem:[#allocation2 + $0x68] sm:$0xff] %v289
  %306 = vst [vmem:[#allocation2 + $0x70] sm:$0xff] %v290
  %307 = vst [vmem:[#allocation2 + $0x78] sm:$0xff] %v291
  // Predicated region
  $region18: #{decoder_rnn_forward.5} parent=0 // pred_check
    %p308 = pneg %p15
  $region19: #{decoder_rnn_forward.5} parent=0 // pred_check_branch
    %310 = sbr.rel (%p308) target = $region21
  $region20: #{decoder_rnn_forward.5} parent=0 // pred_region
    %v311 = vld [vmem:[#allocation2] sm:$0xff]
    %v312 = vld [vmem:[#allocation2 + $0x8] sm:$0xff]
    %v313 = vld [vmem:[#allocation2 + $0x10] sm:$0xff]
    %v314 = vld [vmem:[#allocation2 + $0x18] sm:$0xff]
    %v315 = vld [vmem:[#allocation2 + $0x20] sm:$0xff]
    %v316 = vld [vmem:[#allocation2 + $0x28] sm:$0xff]
    %v317 = vld [vmem:[#allocation2 + $0x30] sm:$0xff]
    %v318 = vld [vmem:[#allocation2 + $0x38] sm:$0xff]
    %v319 = vld [vmem:[#allocation2 + $0x40] sm:$0xff]
    %v320 = vld [vmem:[#allocation2 + $0x48] sm:$0xff]
    %v321 = vld [vmem:[#allocation2 + $0x50] sm:$0xff]
    %v322 = vld [vmem:[#allocation2 + $0x58] sm:$0xff]
    %v323 = vld [vmem:[#allocation2 + $0x60] sm:$0xff]
    %v324 = vld [vmem:[#allocation2 + $0x68] sm:$0xff]
    %v325 = vld [vmem:[#allocation2 + $0x70] sm:$0xff]
    %v326 = vld [vmem:[#allocation2 + $0x78] sm:$0xff]
    %v327 = vld [vmem:[%s2] sm:$0x1]
    %v329 = vlaneseq
    %v330 = vshrl.u32 %v329, 7
    %v331 = vsub.s32 0, %v330
    %v332 = vrot.slane %v327, %v331
    %v334 = vadd.f32 %v311, %v332
    %v335 = vadd.f32 %v312, %v332
    %v336 = vadd.f32 %v313, %v332
    %v337 = vadd.f32 %v314, %v332
    %v338 = vadd.f32 %v315, %v332
    %v339 = vadd.f32 %v316, %v332
    %v340 = vadd.f32 %v317, %v332
    %v341 = vadd.f32 %v318, %v332
    %v342 = vadd.f32 %v319, %v332
    %v343 = vadd.f32 %v320, %v332
    %v344 = vadd.f32 %v321, %v332
    %v345 = vadd.f32 %v322, %v332
    %v346 = vadd.f32 %v323, %v332
    %v347 = vadd.f32 %v324, %v332
    %v348 = vadd.f32 %v325, %v332
    %v349 = vadd.f32 %v326, %v332
    %350 = vst [vmem:[%s3] sm:$0xff] %v334
    %351 = vst [vmem:[%s3 + $0x8] sm:$0xff] %v335
    %352 = vst [vmem:[%s3 + $0x10] sm:$0xff] %v336
    %353 = vst [vmem:[%s3 + $0x18] sm:$0xff] %v337
    %354 = vst [vmem:[%s3 + $0x20] sm:$0xff] %v338
    %355 = vst [vmem:[%s3 + $0x28] sm:$0xff] %v339
    %356 = vst [vmem:[%s3 + $0x30] sm:$0xff] %v340
    %357 = vst [vmem:[%s3 + $0x38] sm:$0xff] %v341
    %358 = vst [vmem:[%s3 + $0x40] sm:$0xff] %v342
    %359 = vst [vmem:[%s3 + $0x48] sm:$0xff] %v343
    %360 = vst [vmem:[%s3 + $0x50] sm:$0xff] %v344
    %361 = vst [vmem:[%s3 + $0x58] sm:$0xff] %v345
    %362 = vst [vmem:[%s3 + $0x60] sm:$0xff] %v346
    %363 = vst [vmem:[%s3 + $0x68] sm:$0xff] %v347
    %364 = vst [vmem:[%s3 + $0x70] sm:$0xff] %v348
    %365 = vst [vmem:[%s3 + $0x78] sm:$0xff] %v349
  $region21: #{decoder_rnn_forward.5} parent=0 // pred_fallthru
    _
  // Predicated region
  $region22: #{decoder_rnn_forward.5} parent=0 // pred_check
    _
  $region23: #{decoder_rnn_forward.5} parent=0 // pred_check_branch
    %367 = sbr.rel (0) target = $region25
  $region24: #{decoder_rnn_forward.5} parent=0 // pred_region
    _
  $region25: #{decoder_rnn_forward.5} parent=0 // pred_fallthru
    _
  // Predicated region
  $region26: #{decoder_rnn_forward.5} parent=0 // pred_check
    _
  $region27: #{decoder_rnn_forward.5} parent=0 // pred_check_branch
    %369 = sbr.rel (0) target = $region29
  $region28: #{decoder_rnn_forward.5} parent=0 // pred_region
    _
  $region29: #{decoder_rnn_forward.5} parent=0 // pred_fallthru
    _

// kernel: decoder_rnn_forward.3
$region0: #{decoder_rnn_forward.3}
  #allocation0 [shape = 'u32[]', space=smem, size = 0x4, offset = 0x4, fixed_abs, tag = 'smem constant byte address 0x4 - core index']
  #allocation1 [shape = 'u32[144,128]{1,0:T(1,128)}', space=vmem, size = 0x12000, scoped, tag = 'internal scratch']
  #allocation2 [shape = 'f32[128,512]{1,0:T(8,128)}', space=vmem, size = 0x40000, scoped, tag = 'scratch operand']
  %s0 = inlined_call_operand.vmem [shape: bf16[128,128], index: 0, kind: input, shape index: {}]
  %s1 = inlined_call_operand.vmem [shape: bf16[128,512], index: 1, kind: input, shape index: {}]
  %s2 = inlined_call_operand.vmem [shape: f32[1,512], index: 2, kind: input, shape index: {}]
  %s3 = inlined_call_operand.vmem [shape: f32[128,512], index: 3, kind: output, shape index: {}]
  %s4 = sld [smem:[#allocation0]]
  $region30: #{decoder_rnn_forward.3} parent=0
    _
  %s6 = ssub.s32 1, %s4
  %s7 = scalar_select 0, %s6, %s4
  // Predicated region
  $region2: #{decoder_rnn_forward.3} parent=0 // pred_check
    _
  $region3: #{decoder_rnn_forward.3} parent=0 // pred_check_branch
    %9 = sbr.rel (0) target = $region5
  $region4: #{decoder_rnn_forward.3} parent=0 // pred_region
    _
  $region5: #{decoder_rnn_forward.3} parent=0 // pred_fallthru
    _
  // Predicated region
  $region6: #{decoder_rnn_forward.3} parent=0 // pred_check
    _
  $region7: #{decoder_rnn_forward.3} parent=0 // pred_check_branch
    %11 = sbr.rel (0) target = $region9
  $region8: #{decoder_rnn_forward.3} parent=0 // pred_region
    _
  $region9: #{decoder_rnn_forward.3} parent=0 // pred_fallthru
    _
  // Predicated region
  $region10: #{decoder_rnn_forward.3} parent=0 // pred_check
    _
  $region11: #{decoder_rnn_forward.3} parent=0 // pred_check_branch
    %13 = sbr.rel (0) target = $region13
  $region12: #{decoder_rnn_forward.3} parent=0 // pred_region
    _
  $region13: #{decoder_rnn_forward.3} parent=0 // pred_fallthru
    _
  %p15 = scmp.eq.s32.totalorder 0, 0
  // Predicated region
  $region14: #{decoder_rnn_forward.3} parent=0 // pred_check
    %p16 = pneg %p15
  $region15: #{decoder_rnn_forward.3} parent=0 // pred_check_branch
    %18 = sbr.rel (%p16) target = $region17
  $region16: #{decoder_rnn_forward.3} parent=0 // pred_region
    %19 = vst [vmem:[#allocation2] sm:$0xff] 0.0
    %20 = vst [vmem:[#allocation2 + $0x8] sm:$0xff] 0.0
    %21 = vst [vmem:[#allocation2 + $0x10] sm:$0xff] 0.0
    %22 = vst [vmem:[#allocation2 + $0x18] sm:$0xff] 0.0
    %23 = vst [vmem:[#allocation2 + $0x20] sm:$0xff] 0.0
    %24 = vst [vmem:[#allocation2 + $0x28] sm:$0xff] 0.0
    %25 = vst [vmem:[#allocation2 + $0x30] sm:$0xff] 0.0
    %26 = vst [vmem:[#allocation2 + $0x38] sm:$0xff] 0.0
    %27 = vst [vmem:[#allocation2 + $0x40] sm:$0xff] 0.0
    %28 = vst [vmem:[#allocation2 + $0x48] sm:$0xff] 0.0
    %29 = vst [vmem:[#allocation2 + $0x50] sm:$0xff] 0.0
    %30 = vst [vmem:[#allocation2 + $0x58] sm:$0xff] 0.0
    %31 = vst [vmem:[#allocation2 + $0x60] sm:$0xff] 0.0
    %32 = vst [vmem:[#allocation2 + $0x68] sm:$0xff] 0.0
    %33 = vst [vmem:[#allocation2 + $0x70] sm:$0xff] 0.0
    %34 = vst [vmem:[#allocation2 + $0x78] sm:$0xff] 0.0
    %35 = vst [vmem:[#allocation2 + $0x80] sm:$0xff] 0.0
    %36 = vst [vmem:[#allocation2 + $0x88] sm:$0xff] 0.0
    %37 = vst [vmem:[#allocation2 + $0x90] sm:$0xff] 0.0
    %38 = vst [vmem:[#allocation2 + $0x98] sm:$0xff] 0.0
    %39 = vst [vmem:[#allocation2 + $0xa0] sm:$0xff] 0.0
    %40 = vst [vmem:[#allocation2 + $0xa8] sm:$0xff] 0.0
    %41 = vst [vmem:[#allocation2 + $0xb0] sm:$0xff] 0.0
    %42 = vst [vmem:[#allocation2 + $0xb8] sm:$0xff] 0.0
    %43 = vst [vmem:[#allocation2 + $0xc0] sm:$0xff] 0.0
    %44 = vst [vmem:[#allocation2 + $0xc8] sm:$0xff] 0.0
    %45 = vst [vmem:[#allocation2 + $0xd0] sm:$0xff] 0.0
    %46 = vst [vmem:[#allocation2 + $0xd8] sm:$0xff] 0.0
    %47 = vst [vmem:[#allocation2 + $0xe0] sm:$0xff] 0.0
    %48 = vst [vmem:[#allocation2 + $0xe8] sm:$0xff] 0.0
    %49 = vst [vmem:[#allocation2 + $0xf0] sm:$0xff] 0.0
    %50 = vst [vmem:[#allocation2 + $0xf8] sm:$0xff] 0.0
    %51 = vst [vmem:[#allocation2 + $0x100] sm:$0xff] 0.0
    %52 = vst [vmem:[#allocation2 + $0x108] sm:$0xff] 0.0
    %53 = vst [vmem:[#allocation2 + $0x110] sm:$0xff] 0.0
    %54 = vst [vmem:[#allocation2 + $0x118] sm:$0xff] 0.0
    %55 = vst [vmem:[#allocation2 + $0x120] sm:$0xff] 0.0
    %56 = vst [vmem:[#allocation2 + $0x128] sm:$0xff] 0.0
    %57 = vst [vmem:[#allocation2 + $0x130] sm:$0xff] 0.0
    %58 = vst [vmem:[#allocation2 + $0x138] sm:$0xff] 0.0
    %59 = vst [vmem:[#allocation2 + $0x140] sm:$0xff] 0.0
    %60 = vst [vmem:[#allocation2 + $0x148] sm:$0xff] 0.0
    %61 = vst [vmem:[#allocation2 + $0x150] sm:$0xff] 0.0
    %62 = vst [vmem:[#allocation2 + $0x158] sm:$0xff] 0.0
    %63 = vst [vmem:[#allocation2 + $0x160] sm:$0xff] 0.0
    %64 = vst [vmem:[#allocation2 + $0x168] sm:$0xff] 0.0
    %65 = vst [vmem:[#allocation2 + $0x170] sm:$0xff] 0.0
    %66 = vst [vmem:[#allocation2 + $0x178] sm:$0xff] 0.0
    %67 = vst [vmem:[#allocation2 + $0x180] sm:$0xff] 0.0
    %68 = vst [vmem:[#allocation2 + $0x188] sm:$0xff] 0.0
    %69 = vst [vmem:[#allocation2 + $0x190] sm:$0xff] 0.0
    %70 = vst [vmem:[#allocation2 + $0x198] sm:$0xff] 0.0
    %71 = vst [vmem:[#allocation2 + $0x1a0] sm:$0xff] 0.0
    %72 = vst [vmem:[#allocation2 + $0x1a8] sm:$0xff] 0.0
    %73 = vst [vmem:[#allocation2 + $0x1b0] sm:$0xff] 0.0
    %74 = vst [vmem:[#allocation2 + $0x1b8] sm:$0xff] 0.0
    %75 = vst [vmem:[#allocation2 + $0x1c0] sm:$0xff] 0.0
    %76 = vst [vmem:[#allocation2 + $0x1c8] sm:$0xff] 0.0
    %77 = vst [vmem:[#allocation2 + $0x1d0] sm:$0xff] 0.0
    %78 = vst [vmem:[#allocation2 + $0x1d8] sm:$0xff] 0.0
    %79 = vst [vmem:[#allocation2 + $0x1e0] sm:$0xff] 0.0
    %80 = vst [vmem:[#allocation2 + $0x1e8] sm:$0xff] 0.0
    %81 = vst [vmem:[#allocation2 + $0x1f0] sm:$0xff] 0.0
    %82 = vst [vmem:[#allocation2 + $0x1f8] sm:$0xff] 0.0
  $region17: #{decoder_rnn_forward.3} parent=0 // pred_fallthru
    _
  %v83 = vld [vmem:[#allocation2] sm:$0xff]
  %v84 = vld [vmem:[#allocation2 + $0x8] sm:$0xff]
  %v85 = vld [vmem:[#allocation2 + $0x10] sm:$0xff]
  %v86 = vld [vmem:[#allocation2 + $0x18] sm:$0xff]
  %v87 = vld [vmem:[#allocation2 + $0x20] sm:$0xff]
  %v88 = vld [vmem:[#allocation2 + $0x28] sm:$0xff]
  %v89 = vld [vmem:[#allocation2 + $0x30] sm:$0xff]
  %v90 = vld [vmem:[#allocation2 + $0x38] sm:$0xff]
  %v91 = vld [vmem:[#allocation2 + $0x40] sm:$0xff]
  %v92 = vld [vmem:[#allocation2 + $0x48] sm:$0xff]
  %v93 = vld [vmem:[#allocation2 + $0x50] sm:$0xff]
  %v94 = vld [vmem:[#allocation2 + $0x58] sm:$0xff]
  %v95 = vld [vmem:[#allocation2 + $0x60] sm:$0xff]
  %v96 = vld [vmem:[#allocation2 + $0x68] sm:$0xff]
  %v97 = vld [vmem:[#allocation2 + $0x70] sm:$0xff]
  %v98 = vld [vmem:[#allocation2 + $0x78] sm:$0xff]
  %v99 = vld [vmem:[#allocation2 + $0x80] sm:$0xff]
  %v100 = vld [vmem:[#allocation2 + $0x88] sm:$0xff]
  %v101 = vld [vmem:[#allocation2 + $0x90] sm:$0xff]
  %v102 = vld [vmem:[#allocation2 + $0x98] sm:$0xff]
  %v103 = vld [vmem:[#allocation2 + $0xa0] sm:$0xff]
  %v104 = vld [vmem:[#allocation2 + $0xa8] sm:$0xff]
  %v105 = vld [vmem:[#allocation2 + $0xb0] sm:$0xff]
  %v106 = vld [vmem:[#allocation2 + $0xb8] sm:$0xff]
  %v107 = vld [vmem:[#allocation2 + $0xc0] sm:$0xff]
  %v108 = vld [vmem:[#allocation2 + $0xc8] sm:$0xff]
  %v109 = vld [vmem:[#allocation2 + $0xd0] sm:$0xff]
  %v110 = vld [vmem:[#allocation2 + $0xd8] sm:$0xff]
  %v111 = vld [vmem:[#allocation2 + $0xe0] sm:$0xff]
  %v112 = vld [vmem:[#allocation2 + $0xe8] sm:$0xff]
  %v113 = vld [vmem:[#allocation2 + $0xf0] sm:$0xff]
  %v114 = vld [vmem:[#allocation2 + $0xf8] sm:$0xff]
  %v115 = vld [vmem:[#allocation2 + $0x100] sm:$0xff]
  %v116 = vld [vmem:[#allocation2 + $0x108] sm:$0xff]
  %v117 = vld [vmem:[#allocation2 + $0x110] sm:$0xff]
  %v118 = vld [vmem:[#allocation2 + $0x118] sm:$0xff]
  %v119 = vld [vmem:[#allocation2 + $0x120] sm:$0xff]
  %v120 = vld [vmem:[#allocation2 + $0x128] sm:$0xff]
  %v121 = vld [vmem:[#allocation2 + $0x130] sm:$0xff]
  %v122 = vld [vmem:[#allocation2 + $0x138] sm:$0xff]
  %v123 = vld [vmem:[#allocation2 + $0x140] sm:$0xff]
  %v124 = vld [vmem:[#allocation2 + $0x148] sm:$0xff]
  %v125 = vld [vmem:[#allocation2 + $0x150] sm:$0xff]
  %v126 = vld [vmem:[#allocation2 + $0x158] sm:$0xff]
  %v127 = vld [vmem:[#allocation2 + $0x160] sm:$0xff]
  %v128 = vld [vmem:[#allocation2 + $0x168] sm:$0xff]
  %v129 = vld [vmem:[#allocation2 + $0x170] sm:$0xff]
  %v130 = vld [vmem:[#allocation2 + $0x178] sm:$0xff]
  %v131 = vld [vmem:[#allocation2 + $0x180] sm:$0xff]
  %v132 = vld [vmem:[#allocation2 + $0x188] sm:$0xff]
  %v133 = vld [vmem:[#allocation2 + $0x190] sm:$0xff]
  %v134 = vld [vmem:[#allocation2 + $0x198] sm:$0xff]
  %v135 = vld [vmem:[#allocation2 + $0x1a0] sm:$0xff]
  %v136 = vld [vmem:[#allocation2 + $0x1a8] sm:$0xff]
  %v137 = vld [vmem:[#allocation2 + $0x1b0] sm:$0xff]
  %v138 = vld [vmem:[#allocation2 + $0x1b8] sm:$0xff]
  %v139 = vld [vmem:[#allocation2 + $0x1c0] sm:$0xff]
  %v140 = vld [vmem:[#allocation2 + $0x1c8] sm:$0xff]
  %v141 = vld [vmem:[#allocation2 + $0x1d0] sm:$0xff]
  %v142 = vld [vmem:[#allocation2 + $0x1d8] sm:$0xff]
  %v143 = vld [vmem:[#allocation2 + $0x1e0] sm:$0xff]
  %v144 = vld [vmem:[#allocation2 + $0x1e8] sm:$0xff]
  %v145 = vld [vmem:[#allocation2 + $0x1f0] sm:$0xff]
  %v146 = vld [vmem:[#allocation2 + $0x1f8] sm:$0xff]
  %v147 = vld [vmem:[%s0] sm:$0xf]
  %v148 = vld [vmem:[%s0 + $0x4] sm:$0xf]
  %v149 = vld [vmem:[%s0 + $0x8] sm:$0xf]
  %v150 = vld [vmem:[%s0 + $0xc] sm:$0xf]
  %v151 = vld [vmem:[%s0 + $0x10] sm:$0xf]
  %v152 = vld [vmem:[%s0 + $0x14] sm:$0xf]
  %v153 = vld [vmem:[%s0 + $0x18] sm:$0xf]
  %v154 = vld [vmem:[%s0 + $0x1c] sm:$0xf]
  %v155 = vld [vmem:[%s0 + $0x20] sm:$0xf]
  %v156 = vld [vmem:[%s0 + $0x24] sm:$0xf]
  %v157 = vld [vmem:[%s0 + $0x28] sm:$0xf]
  %v158 = vld [vmem:[%s0 + $0x2c] sm:$0xf]
  %v159 = vld [vmem:[%s0 + $0x30] sm:$0xf]
  %v160 = vld [vmem:[%s0 + $0x34] sm:$0xf]
  %v161 = vld [vmem:[%s0 + $0x38] sm:$0xf]
  %v162 = vld [vmem:[%s0 + $0x3c] sm:$0xf]
  %v163 = vld [vmem:[%s1] sm:$0xff]
  %v164 = vld [vmem:[%s1 + $0x8] sm:$0xff]
  %v165 = vld [vmem:[%s1 + $0x10] sm:$0xff]
  %v166 = vld [vmem:[%s1 + $0x18] sm:$0xff]
  %v167 = vld [vmem:[%s1 + $0x20] sm:$0xff]
  %v168 = vld [vmem:[%s1 + $0x28] sm:$0xff]
  %v169 = vld [vmem:[%s1 + $0x30] sm:$0xff]
  %v170 = vld [vmem:[%s1 + $0x38] sm:$0xff]
  %v171 = vld [vmem:[%s1 + $0x40] sm:$0xff]
  %v172 = vld [vmem:[%s1 + $0x48] sm:$0xff]
  %v173 = vld [vmem:[%s1 + $0x50] sm:$0xff]
  %v174 = vld [vmem:[%s1 + $0x58] sm:$0xff]
  %v175 = vld [vmem:[%s1 + $0x60] sm:$0xff]
  %v176 = vld [vmem:[%s1 + $0x68] sm:$0xff]
  %v177 = vld [vmem:[%s1 + $0x70] sm:$0xff]
  %v178 = vld [vmem:[%s1 + $0x78] sm:$0xff]
  %v179 = vld [vmem:[%s1 + $0x80] sm:$0xff]
  %v180 = vld [vmem:[%s1 + $0x88] sm:$0xff]
  %v181 = vld [vmem:[%s1 + $0x90] sm:$0xff]
  %v182 = vld [vmem:[%s1 + $0x98] sm:$0xff]
  %v183 = vld [vmem:[%s1 + $0xa0] sm:$0xff]
  %v184 = vld [vmem:[%s1 + $0xa8] sm:$0xff]
  %v185 = vld [vmem:[%s1 + $0xb0] sm:$0xff]
  %v186 = vld [vmem:[%s1 + $0xb8] sm:$0xff]
  %v187 = vld [vmem:[%s1 + $0xc0] sm:$0xff]
  %v188 = vld [vmem:[%s1 + $0xc8] sm:$0xff]
  %v189 = vld [vmem:[%s1 + $0xd0] sm:$0xff]
  %v190 = vld [vmem:[%s1 + $0xd8] sm:$0xff]
  %v191 = vld [vmem:[%s1 + $0xe0] sm:$0xff]
  %v192 = vld [vmem:[%s1 + $0xe8] sm:$0xff]
  %v193 = vld [vmem:[%s1 + $0xf0] sm:$0xff]
  %v194 = vld [vmem:[%s1 + $0xf8] sm:$0xff]
  %v211 = vunpack.c.l.b16 %v147
  %v212 = vunpack.c.l.b16 %v148
  %v213 = vunpack.c.l.b16 %v149
  %v214 = vunpack.c.l.b16 %v150
  %v215 = vunpack.c.l.b16 %v151
  %v216 = vunpack.c.l.b16 %v152
  %v217 = vunpack.c.l.b16 %v153
  %v218 = vunpack.c.l.b16 %v154
  %v219 = vunpack.c.l.b16 %v155
  %v220 = vunpack.c.l.b16 %v156
  %v221 = vunpack.c.l.b16 %v157
  %v222 = vunpack.c.l.b16 %v158
  %v223 = vunpack.c.l.b16 %v159
  %v224 = vunpack.c.l.b16 %v160
  %v225 = vunpack.c.l.b16 %v161
  %v226 = vunpack.c.l.b16 %v162
  %v227 = vpack.c.b16 %v212, %v211
  %v228 = vpack.c.b16 %v214, %v213
  %v229 = vpack.c.b16 %v216, %v215
  %v230 = vpack.c.b16 %v218, %v217
  %v231 = vpack.c.b16 %v220, %v219
  %v232 = vpack.c.b16 %v222, %v221
  %v233 = vpack.c.b16 %v224, %v223
  %v234 = vpack.c.b16 %v226, %v225
  %v275 = vunpack.c.l.b16 %v163
  %v276 = vunpack.c.h.b16 %v163
  %v277 = vunpack.c.l.b16 %v164
  %v278 = vunpack.c.h.b16 %v164
  %v279 = vunpack.c.l.b16 %v165
  %v280 = vunpack.c.h.b16 %v165
  %v281 = vunpack.c.l.b16 %v166
  %v282 = vunpack.c.h.b16 %v166
  %v283 = vunpack.c.l.b16 %v167
  %v284 = vunpack.c.h.b16 %v167
  %v285 = vunpack.c.l.b16 %v168
  %v286 = vunpack.c.h.b16 %v168
  %v287 = vunpack.c.l.b16 %v169
  %v288 = vunpack.c.h.b16 %v169
  %v289 = vunpack.c.l.b16 %v170
  %v290 = vunpack.c.h.b16 %v170
  %v291 = vunpack.c.l.b16 %v171
  %v292 = vunpack.c.h.b16 %v171
  %v293 = vunpack.c.l.b16 %v172
  %v294 = vunpack.c.h.b16 %v172
  %v295 = vunpack.c.l.b16 %v173
  %v296 = vunpack.c.h.b16 %v173
  %v297 = vunpack.c.l.b16 %v174
  %v298 = vunpack.c.h.b16 %v174
  %v299 = vunpack.c.l.b16 %v175
  %v300 = vunpack.c.h.b16 %v175
  %v301 = vunpack.c.l.b16 %v176
  %v302 = vunpack.c.h.b16 %v176
  %v303 = vunpack.c.l.b16 %v177
  %v304 = vunpack.c.h.b16 %v177
  %v305 = vunpack.c.l.b16 %v178
  %v306 = vunpack.c.h.b16 %v178
  %v307 = vunpack.c.l.b16 %v179
  %v308 = vunpack.c.h.b16 %v179
  %v309 = vunpack.c.l.b16 %v180
  %v310 = vunpack.c.h.b16 %v180
  %v311 = vunpack.c.l.b16 %v181
  %v312 = vunpack.c.h.b16 %v181
  %v313 = vunpack.c.l.b16 %v182
  %v314 = vunpack.c.h.b16 %v182
  %v315 = vunpack.c.l.b16 %v183
  %v316 = vunpack.c.h.b16 %v183
  %v317 = vunpack.c.l.b16 %v184
  %v318 = vunpack.c.h.b16 %v184
  %v319 = vunpack.c.l.b16 %v185
  %v320 = vunpack.c.h.b16 %v185
  %v321 = vunpack.c.l.b16 %v186
  %v322 = vunpack.c.h.b16 %v186
  %v323 = vunpack.c.l.b16 %v187
  %v324 = vunpack.c.h.b16 %v187
  %v325 = vunpack.c.l.b16 %v188
  %v326 = vunpack.c.h.b16 %v188
  %v327 = vunpack.c.l.b16 %v189
  %v328 = vunpack.c.h.b16 %v189
  %v329 = vunpack.c.l.b16 %v190
  %v330 = vunpack.c.h.b16 %v190
  %v331 = vunpack.c.l.b16 %v191
  %v332 = vunpack.c.h.b16 %v191
  %v333 = vunpack.c.l.b16 %v192
  %v334 = vunpack.c.h.b16 %v192
  %v335 = vunpack.c.l.b16 %v193
  %v336 = vunpack.c.h.b16 %v193
  %v337 = vunpack.c.l.b16 %v194
  %v338 = vunpack.c.h.b16 %v194
  %v339 = vpack.c.b16 %v279, %v275
  %v340 = vpack.c.b16 %v280, %v276
  %v341 = vpack.c.b16 %v281, %v277
  %v342 = vpack.c.b16 %v282, %v278
  %v343 = vpack.c.b16 %v287, %v283
  %v344 = vpack.c.b16 %v288, %v284
  %v345 = vpack.c.b16 %v289, %v285
  %v346 = vpack.c.b16 %v290, %v286
  %v347 = vpack.c.b16 %v295, %v291
  %v348 = vpack.c.b16 %v296, %v292
  %v349 = vpack.c.b16 %v297, %v293
  %v350 = vpack.c.b16 %v298, %v294
  %v351 = vpack.c.b16 %v303, %v299
  %v352 = vpack.c.b16 %v304, %v300
  %v353 = vpack.c.b16 %v305, %v301
  %v354 = vpack.c.b16 %v306, %v302
  %v355 = vpack.c.b16 %v311, %v307
  %v356 = vpack.c.b16 %v312, %v308
  %v357 = vpack.c.b16 %v313, %v309
  %v358 = vpack.c.b16 %v314, %v310
  %v359 = vpack.c.b16 %v319, %v315
  %v360 = vpack.c.b16 %v320, %v316
  %v361 = vpack.c.b16 %v321, %v317
  %v362 = vpack.c.b16 %v322, %v318
  %v363 = vpack.c.b16 %v327, %v323
  %v364 = vpack.c.b16 %v328, %v324
  %v365 = vpack.c.b16 %v329, %v325
  %v366 = vpack.c.b16 %v330, %v326
  %v367 = vpack.c.b16 %v335, %v331
  %v368 = vpack.c.b16 %v336, %v332
  %v369 = vpack.c.b16 %v337, %v333
  %v370 = vpack.c.b16 %v338, %v334
  %403 = vmatprep.subr.bf16.mxu0 %v340
  %404 = vmatpush1.bf16.msra.mxu0 %v339
  %405 = vmatprep.subr.bf16.mxu0 %v344
  %406 = vmatpush1.bf16.msra.mxu0 %v343
  %407 = vmatprep.subr.bf16.mxu0 %v348
  %408 = vmatpush1.bf16.msra.mxu0 %v347
  %409 = vmatprep.subr.bf16.mxu0 %v352
  %410 = vmatpush1.bf16.msra.mxu0 %v351
  %411 = vmatprep.subr.bf16.mxu0 %v356
  %412 = vmatpush1.bf16.msra.mxu0 %v355
  %413 = vmatprep.subr.bf16.mxu0 %v360
  %414 = vmatpush1.bf16.msra.mxu0 %v359
  %415 = vmatprep.subr.bf16.mxu0 %v364
  %416 = vmatpush1.bf16.msra.mxu0 %v363
  %417 = vmatprep.subr.bf16.mxu0 %v368
  %418 = vmatpush1.bf16.msra.mxu0 %v367
  %419 = vmatprep.subr.bf16.mxu0 0
  %420 = vmatpush1.bf16.msra.mxu0 0
  %421 = vmatprep.subr.bf16.mxu0 0
  %422 = vmatpush1.bf16.msra.mxu0 0
  %423 = vmatprep.subr.bf16.mxu0 0
  %424 = vmatpush1.bf16.msra.mxu0 0
  %425 = vmatprep.subr.bf16.mxu0 0
  %426 = vmatpush1.bf16.msra.mxu0 0
  %427 = vmatprep.subr.bf16.mxu0 0
  %428 = vmatpush1.bf16.msra.mxu0 0
  %429 = vmatprep.subr.bf16.mxu0 0
  %430 = vmatpush1.bf16.msra.mxu0 0
  %431 = vmatprep.subr.bf16.mxu0 0
  %432 = vmatpush1.bf16.msra.mxu0 0
  %433 = vmatprep.subr.bf16.mxu0 0
  %434 = vmatpush1.bf16.msra.mxu0 0
  %435 = vmatprep.mubr.bf16.mxu0 0
  %436 = vmatmul.mubr.bf16.gmra.mrb[0].mxu0 %v227
  %v437 = vpop.f32.mrb[0].mxu0
  %v438 = vadd.f32 0.0, %v437
  %v439 = vpop.f32.mrb[0].mxu0
  %v440 = vadd.f32 0.0, %v439
  %v441 = vpop.f32.mrb[0].mxu0
  %v442 = vadd.f32 0.0, %v441
  %v443 = vpop.f32.mrb[0].mxu0
  %v444 = vadd.f32 0.0, %v443
  %445 = vmatprep.mubr.bf16.mxu0 0
  %446 = vmatmul.mubr.bf16.gmra.mrb[0].mxu0 %v228
  %v447 = vpop.f32.mrb[0].mxu0
  %v448 = vadd.f32 0.0, %v447
  %v449 = vpop.f32.mrb[0].mxu0
  %v450 = vadd.f32 0.0, %v449
  %v451 = vpop.f32.mrb[0].mxu0
  %v452 = vadd.f32 0.0, %v451
  %v453 = vpop.f32.mrb[0].mxu0
  %v454 = vadd.f32 0.0, %v453
  %455 = vmatprep.mubr.bf16.mxu0 0
  %456 = vmatmul.mubr.bf16.gmra.mrb[0].mxu0 %v229
  %v457 = vpop.f32.mrb[0].mxu0
  %v458 = vadd.f32 0.0, %v457
  %v459 = vpop.f32.mrb[0].mxu0
  %v460 = vadd.f32 0.0, %v459
  %v461 = vpop.f32.mrb[0].mxu0
  %v462 = vadd.f32 0.0, %v461
  %v463 = vpop.f32.mrb[0].mxu0
  %v464 = vadd.f32 0.0, %v463
  %465 = vmatprep.mubr.bf16.mxu0 0
  %466 = vmatmul.mubr.bf16.gmra.mrb[0].mxu0 %v230
  %v467 = vpop.f32.mrb[0].mxu0
  %v468 = vadd.f32 0.0, %v467
  %v469 = vpop.f32.mrb[0].mxu0
  %v470 = vadd.f32 0.0, %v469
  %v471 = vpop.f32.mrb[0].mxu0
  %v472 = vadd.f32 0.0, %v471
  %v473 = vpop.f32.mrb[0].mxu0
  %v474 = vadd.f32 0.0, %v473
  %475 = vmatprep.mubr.bf16.mxu0 0
  %476 = vmatmul.mubr.bf16.gmra.mrb[0].mxu0 %v231
  %v477 = vpop.f32.mrb[0].mxu0
  %v478 = vadd.f32 0.0, %v477
  %v479 = vpop.f32.mrb[0].mxu0
  %v480 = vadd.f32 0.0, %v479
  %v481 = vpop.f32.mrb[0].mxu0
  %v482 = vadd.f32 0.0, %v481
  %v483 = vpop.f32.mrb[0].mxu0
  %v484 = vadd.f32 0.0, %v483
  %485 = vmatprep.mubr.bf16.mxu0 0
  %486 = vmatmul.mubr.bf16.gmra.mrb[0].mxu0 %v232
  %v487 = vpop.f32.mrb[0].mxu0
  %v488 = vadd.f32 0.0, %v487
  %v489 = vpop.f32.mrb[0].mxu0
  %v490 = vadd.f32 0.0, %v489
  %v491 = vpop.f32.mrb[0].mxu0
  %v492 = vadd.f32 0.0, %v491
  %v493 = vpop.f32.mrb[0].mxu0
  %v494 = vadd.f32 0.0, %v493
  %495 = vmatprep.mubr.bf16.mxu0 0
  %496 = vmatmul.mubr.bf16.gmra.mrb[0].mxu0 %v233
  %v497 = vpop.f32.mrb[0].mxu0
  %v498 = vadd.f32 0.0, %v497
  %v499 = vpop.f32.mrb[0].mxu0
  %v500 = vadd.f32 0.0, %v499
  %v501 = vpop.f32.mrb[0].mxu0
  %v502 = vadd.f32 0.0, %v501
  %v503 = vpop.f32.mrb[0].mxu0
  %v504 = vadd.f32 0.0, %v503
  %505 = vmatprep.mubr.bf16.mxu0 0
  %506 = vmatmul.mubr.bf16.gmra.mrb[0].mxu0 %v234
  %v507 = vpop.f32.mrb[0].mxu0
  %v508 = vadd.f32 0.0, %v507
  %v509 = vpop.f32.mrb[0].mxu0
  %v510 = vadd.f32 0.0, %v509
  %v511 = vpop.f32.mrb[0].mxu0
  %v512 = vadd.f32 0.0, %v511
  %v513 = vpop.f32.mrb[0].mxu0
  %v514 = vadd.f32 0.0, %v513
  %515 = vdwg.mxu0
  %516 = vmatprep.subr.bf16.mxu0 %v342
  %517 = vmatpush1.bf16.msra.mxu0 %v341
  %518 = vmatprep.subr.bf16.mxu0 %v346
  %519 = vmatpush1.bf16.msra.mxu0 %v345
  %520 = vmatprep.subr.bf16.mxu0 %v350
  %521 = vmatpush1.bf16.msra.mxu0 %v349
  %522 = vmatprep.subr.bf16.mxu0 %v354
  %523 = vmatpush1.bf16.msra.mxu0 %v353
  %524 = vmatprep.subr.bf16.mxu0 %v358
  %525 = vmatpush1.bf16.msra.mxu0 %v357
  %526 = vmatprep.subr.bf16.mxu0 %v362
  %527 = vmatpush1.bf16.msra.mxu0 %v361
  %528 = vmatprep.subr.bf16.mxu0 %v366
  %529 = vmatpush1.bf16.msra.mxu0 %v365
  %530 = vmatprep.subr.bf16.mxu0 %v370
  %531 = vmatpush1.bf16.msra.mxu0 %v369
  %532 = vmatprep.subr.bf16.mxu0 0
  %533 = vmatpush1.bf16.msra.mxu0 0
  %534 = vmatprep.subr.bf16.mxu0 0
  %535 = vmatpush1.bf16.msra.mxu0 0
  %536 = vmatprep.subr.bf16.mxu0 0
  %537 = vmatpush1.bf16.msra.mxu0 0
  %538 = vmatprep.subr.bf16.mxu0 0
  %539 = vmatpush1.bf16.msra.mxu0 0
  %540 = vmatprep.subr.bf16.mxu0 0
  %541 = vmatpush1.bf16.msra.mxu0 0
  %542 = vmatprep.subr.bf16.mxu0 0
  %543 = vmatpush1.bf16.msra.mxu0 0
  %544 = vmatprep.subr.bf16.mxu0 0
  %545 = vmatpush1.bf16.msra.mxu0 0
  %546 = vmatprep.subr.bf16.mxu0 0
  %547 = vmatpush1.bf16.msra.mxu0 0
  %548 = vmatprep.mubr.bf16.mxu0 0
  %549 = vmatmul.mubr.bf16.gmra.mrb[0].mxu0 %v227
  %v550 = vpop.f32.mrb[0].mxu0
  %v551 = vadd.f32 0.0, %v550
  %v552 = vpop.f32.mrb[0].mxu0
  %v553 = vadd.f32 0.0, %v552
  %v554 = vpop.f32.mrb[0].mxu0
  %v555 = vadd.f32 0.0, %v554
  %v556 = vpop.f32.mrb[0].mxu0
  %v557 = vadd.f32 0.0, %v556
  %558 = vmatprep.mubr.bf16.mxu0 0
  %559 = vmatmul.mubr.bf16.gmra.mrb[0].mxu0 %v228
  %v560 = vpop.f32.mrb[0].mxu0
  %v561 = vadd.f32 0.0, %v560
  %v562 = vpop.f32.mrb[0].mxu0
  %v563 = vadd.f32 0.0, %v562
  %v564 = vpop.f32.mrb[0].mxu0
  %v565 = vadd.f32 0.0, %v564
  %v566 = vpop.f32.mrb[0].mxu0
  %v567 = vadd.f32 0.0, %v566
  %568 = vmatprep.mubr.bf16.mxu0 0
  %569 = vmatmul.mubr.bf16.gmra.mrb[0].mxu0 %v229
  %v570 = vpop.f32.mrb[0].mxu0
  %v571 = vadd.f32 0.0, %v570
  %v572 = vpop.f32.mrb[0].mxu0
  %v573 = vadd.f32 0.0, %v572
  %v574 = vpop.f32.mrb[0].mxu0
  %v575 = vadd.f32 0.0, %v574
  %v576 = vpop.f32.mrb[0].mxu0
  %v577 = vadd.f32 0.0, %v576
  %578 = vmatprep.mubr.bf16.mxu0 0
  %579 = vmatmul.mubr.bf16.gmra.mrb[0].mxu0 %v230
  %v580 = vpop.f32.mrb[0].mxu0
  %v581 = vadd.f32 0.0, %v580
  %v582 = vpop.f32.mrb[0].mxu0
  %v583 = vadd.f32 0.0, %v582
  %v584 = vpop.f32.mrb[0].mxu0
  %v585 = vadd.f32 0.0, %v584
  %v586 = vpop.f32.mrb[0].mxu0
  %v587 = vadd.f32 0.0, %v586
  %588 = vmatprep.mubr.bf16.mxu0 0
  %589 = vmatmul.mubr.bf16.gmra.mrb[0].mxu0 %v231
  %v590 = vpop.f32.mrb[0].mxu0
  %v591 = vadd.f32 0.0, %v590
  %v592 = vpop.f32.mrb[0].mxu0
  %v593 = vadd.f32 0.0, %v592
  %v594 = vpop.f32.mrb[0].mxu0
  %v595 = vadd.f32 0.0, %v594
  %v596 = vpop.f32.mrb[0].mxu0
  %v597 = vadd.f32 0.0, %v596
  %598 = vmatprep.mubr.bf16.mxu0 0
  %599 = vmatmul.mubr.bf16.gmra.mrb[0].mxu0 %v232
  %v600 = vpop.f32.mrb[0].mxu0
  %v601 = vadd.f32 0.0, %v600
  %v602 = vpop.f32.mrb[0].mxu0
  %v603 = vadd.f32 0.0, %v602
  %v604 = vpop.f32.mrb[0].mxu0
  %v605 = vadd.f32 0.0, %v604
  %v606 = vpop.f32.mrb[0].mxu0
  %v607 = vadd.f32 0.0, %v606
  %608 = vmatprep.mubr.bf16.mxu0 0
  %609 = vmatmul.mubr.bf16.gmra.mrb[0].mxu0 %v233
  %v610 = vpop.f32.mrb[0].mxu0
  %v611 = vadd.f32 0.0, %v610
  %v612 = vpop.f32.mrb[0].mxu0
  %v613 = vadd.f32 0.0, %v612
  %v614 = vpop.f32.mrb[0].mxu0
  %v615 = vadd.f32 0.0, %v614
  %v616 = vpop.f32.mrb[0].mxu0
  %v617 = vadd.f32 0.0, %v616
  %618 = vmatprep.mubr.bf16.mxu0 0
  %619 = vmatmul.mubr.bf16.gmra.mrb[0].mxu0 %v234
  %v620 = vpop.f32.mrb[0].mxu0
  %v621 = vadd.f32 0.0, %v620
  %v622 = vpop.f32.mrb[0].mxu0
  %v623 = vadd.f32 0.0, %v622
  %v624 = vpop.f32.mrb[0].mxu0
  %v625 = vadd.f32 0.0, %v624
  %v626 = vpop.f32.mrb[0].mxu0
  %v627 = vadd.f32 0.0, %v626
  %628 = vdwg.mxu0
  %v629 = vadd.f32 %v83, %v438
  %v630 = vadd.f32 %v84, %v440
  %v631 = vadd.f32 %v85, %v551
  %v632 = vadd.f32 %v86, %v553
  %v633 = vadd.f32 %v87, %v442
  %v634 = vadd.f32 %v88, %v444
  %v635 = vadd.f32 %v89, %v555
  %v636 = vadd.f32 %v90, %v557
  %v637 = vadd.f32 %v91, %v448
  %v638 = vadd.f32 %v92, %v450
  %v639 = vadd.f32 %v93, %v561
  %v640 = vadd.f32 %v94, %v563
  %v641 = vadd.f32 %v95, %v452
  %v642 = vadd.f32 %v96, %v454
  %v643 = vadd.f32 %v97, %v565
  %v644 = vadd.f32 %v98, %v567
  %v645 = vadd.f32 %v99, %v458
  %v646 = vadd.f32 %v100, %v460
  %v647 = vadd.f32 %v101, %v571
  %v648 = vadd.f32 %v102, %v573
  %v649 = vadd.f32 %v103, %v462
  %v650 = vadd.f32 %v104, %v464
  %v651 = vadd.f32 %v105, %v575
  %v652 = vadd.f32 %v106, %v577
  %v653 = vadd.f32 %v107, %v468
  %v654 = vadd.f32 %v108, %v470
  %v655 = vadd.f32 %v109, %v581
  %v656 = vadd.f32 %v110, %v583
  %v657 = vadd.f32 %v111, %v472
  %v658 = vadd.f32 %v112, %v474
  %v659 = vadd.f32 %v113, %v585
  %v660 = vadd.f32 %v114, %v587
  %v661 = vadd.f32 %v115, %v478
  %v662 = vadd.f32 %v116, %v480
  %v663 = vadd.f32 %v117, %v591
  %v664 = vadd.f32 %v118, %v593
  %v665 = vadd.f32 %v119, %v482
  %v666 = vadd.f32 %v120, %v484
  %v667 = vadd.f32 %v121, %v595
  %v668 = vadd.f32 %v122, %v597
  %v669 = vadd.f32 %v123, %v488
  %v670 = vadd.f32 %v124, %v490
  %v671 = vadd.f32 %v125, %v601
  %v672 = vadd.f32 %v126, %v603
  %v673 = vadd.f32 %v127, %v492
  %v674 = vadd.f32 %v128, %v494
  %v675 = vadd.f32 %v129, %v605
  %v676 = vadd.f32 %v130, %v607
  %v677 = vadd.f32 %v131, %v498
  %v678 = vadd.f32 %v132, %v500
  %v679 = vadd.f32 %v133, %v611
  %v680 = vadd.f32 %v134, %v613
  %v681 = vadd.f32 %v135, %v502
  %v682 = vadd.f32 %v136, %v504
  %v683 = vadd.f32 %v137, %v615
  %v684 = vadd.f32 %v138, %v617
  %v685 = vadd.f32 %v139, %v508
  %v686 = vadd.f32 %v140, %v510
  %v687 = vadd.f32 %v141, %v621
  %v688 = vadd.f32 %v142, %v623
  %v689 = vadd.f32 %v143, %v512
  %v690 = vadd.f32 %v144, %v514
  %v691 = vadd.f32 %v145, %v625
  %v692 = vadd.f32 %v146, %v627
  %693 = vst [vmem:[#allocation2] sm:$0xff] %v629
  %694 = vst [vmem:[#allocation2 + $0x8] sm:$0xff] %v630
  %695 = vst [vmem:[#allocation2 + $0x10] sm:$0xff] %v631
  %696 = vst [vmem:[#allocation2 + $0x18] sm:$0xff] %v632
  %697 = vst [vmem:[#allocation2 + $0x20] sm:$0xff] %v633
  %698 = vst [vmem:[#allocation2 + $0x28] sm:$0xff] %v634
  %699 = vst [vmem:[#allocation2 + $0x30] sm:$0xff] %v635
  %700 = vst [vmem:[#allocation2 + $0x38] sm:$0xff] %v636
  %701 = vst [vmem:[#allocation2 + $0x40] sm:$0xff] %v637
  %702 = vst [vmem:[#allocation2 + $0x48] sm:$0xff] %v638
  %703 = vst [vmem:[#allocation2 + $0x50] sm:$0xff] %v639
  %704 = vst [vmem:[#allocation2 + $0x58] sm:$0xff] %v640
  %705 = vst [vmem:[#allocation2 + $0x60] sm:$0xff] %v641
  %706 = vst [vmem:[#allocation2 + $0x68] sm:$0xff] %v642
  %707 = vst [vmem:[#allocation2 + $0x70] sm:$0xff] %v643
  %708 = vst [vmem:[#allocation2 + $0x78] sm:$0xff] %v644
  %709 = vst [vmem:[#allocation2 + $0x80] sm:$0xff] %v645
  %710 = vst [vmem:[#allocation2 + $0x88] sm:$0xff] %v646
  %711 = vst [vmem:[#allocation2 + $0x90] sm:$0xff] %v647
  %712 = vst [vmem:[#allocation2 + $0x98] sm:$0xff] %v648
  %713 = vst [vmem:[#allocation2 + $0xa0] sm:$0xff] %v649
  %714 = vst [vmem:[#allocation2 + $0xa8] sm:$0xff] %v650
  %715 = vst [vmem:[#allocation2 + $0xb0] sm:$0xff] %v651
  %716 = vst [vmem:[#allocation2 + $0xb8] sm:$0xff] %v652
  %717 = vst [vmem:[#allocation2 + $0xc0] sm:$0xff] %v653
  %718 = vst [vmem:[#allocation2 + $0xc8] sm:$0xff] %v654
  %719 = vst [vmem:[#allocation2 + $0xd0] sm:$0xff] %v655
  %720 = vst [vmem:[#allocation2 + $0xd8] sm:$0xff] %v656
  %721 = vst [vmem:[#allocation2 + $0xe0] sm:$0xff] %v657
  %722 = vst [vmem:[#allocation2 + $0xe8] sm:$0xff] %v658
  %723 = vst [vmem:[#allocation2 + $0xf0] sm:$0xff] %v659
  %724 = vst [vmem:[#allocation2 + $0xf8] sm:$0xff] %v660
  %725 = vst [vmem:[#allocation2 + $0x100] sm:$0xff] %v661
  %726 = vst [vmem:[#allocation2 + $0x108] sm:$0xff] %v662
  %727 = vst [vmem:[#allocation2 + $0x110] sm:$0xff] %v663
  %728 = vst [vmem:[#allocation2 + $0x118] sm:$0xff] %v664
  %729 = vst [vmem:[#allocation2 + $0x120] sm:$0xff] %v665
  %730 = vst [vmem:[#allocation2 + $0x128] sm:$0xff] %v666
  %731 = vst [vmem:[#allocation2 + $0x130] sm:$0xff] %v667
  %732 = vst [vmem:[#allocation2 + $0x138] sm:$0xff] %v668
  %733 = vst [vmem:[#allocation2 + $0x140] sm:$0xff] %v669
  %734 = vst [vmem:[#allocation2 + $0x148] sm:$0xff] %v670
  %735 = vst [vmem:[#allocation2 + $0x150] sm:$0xff] %v671
  %736 = vst [vmem:[#allocation2 + $0x158] sm:$0xff] %v672
  %737 = vst [vmem:[#allocation2 + $0x160] sm:$0xff] %v673
  %738 = vst [vmem:[#allocation2 + $0x168] sm:$0xff] %v674
  %739 = vst [vmem:[#allocation2 + $0x170] sm:$0xff] %v675
  %740 = vst [vmem:[#allocation2 + $0x178] sm:$0xff] %v676
  %741 = vst [vmem:[#allocation2 + $0x180] sm:$0xff] %v677
  %742 = vst [vmem:[#allocation2 + $0x188] sm:$0xff] %v678
  %743 = vst [vmem:[#allocation2 + $0x190] sm:$0xff] %v679
  %744 = vst [vmem:[#allocation2 + $0x198] sm:$0xff] %v680
  %745 = vst [vmem:[#allocation2 + $0x1a0] sm:$0xff] %v681
  %746 = vst [vmem:[#allocation2 + $0x1a8] sm:$0xff] %v682
  %747 = vst [vmem:[#allocation2 + $0x1b0] sm:$0xff] %v683
  %748 = vst [vmem:[#allocation2 + $0x1b8] sm:$0xff] %v684
  %749 = vst [vmem:[#allocation2 + $0x1c0] sm:$0xff] %v685
  %750 = vst [vmem:[#allocation2 + $0x1c8] sm:$0xff] %v686
  %751 = vst [vmem:[#allocation2 + $0x1d0] sm:$0xff] %v687
  %752 = vst [vmem:[#allocation2 + $0x1d8] sm:$0xff] %v688
  %753 = vst [vmem:[#allocation2 + $0x1e0] sm:$0xff] %v689
  %754 = vst [vmem:[#allocation2 + $0x1e8] sm:$0xff] %v690
  %755 = vst [vmem:[#allocation2 + $0x1f0] sm:$0xff] %v691
  %756 = vst [vmem:[#allocation2 + $0x1f8] sm:$0xff] %v692
  // Predicated region
  $region18: #{decoder_rnn_forward.3} parent=0 // pred_check
    %p757 = pneg %p15
  $region19: #{decoder_rnn_forward.3} parent=0 // pred_check_branch
    %759 = sbr.rel (%p757) target = $region21
  $region20: #{decoder_rnn_forward.3} parent=0 // pred_region
    %v760 = vld [vmem:[#allocation2] sm:$0xff]
    %v761 = vld [vmem:[#allocation2 + $0x8] sm:$0xff]
    %v762 = vld [vmem:[#allocation2 + $0x10] sm:$0xff]
    %v763 = vld [vmem:[#allocation2 + $0x18] sm:$0xff]
    %v764 = vld [vmem:[#allocation2 + $0x20] sm:$0xff]
    %v765 = vld [vmem:[#allocation2 + $0x28] sm:$0xff]
    %v766 = vld [vmem:[#allocation2 + $0x30] sm:$0xff]
    %v767 = vld [vmem:[#allocation2 + $0x38] sm:$0xff]
    %v768 = vld [vmem:[#allocation2 + $0x40] sm:$0xff]
    %v769 = vld [vmem:[#allocation2 + $0x48] sm:$0xff]
    %v770 = vld [vmem:[#allocation2 + $0x50] sm:$0xff]
    %v771 = vld [vmem:[#allocation2 + $0x58] sm:$0xff]
    %v772 = vld [vmem:[#allocation2 + $0x60] sm:$0xff]
    %v773 = vld [vmem:[#allocation2 + $0x68] sm:$0xff]
    %v774 = vld [vmem:[#allocation2 + $0x70] sm:$0xff]
    %v775 = vld [vmem:[#allocation2 + $0x78] sm:$0xff]
    %v776 = vld [vmem:[#allocation2 + $0x80] sm:$0xff]
    %v777 = vld [vmem:[#allocation2 + $0x88] sm:$0xff]
    %v778 = vld [vmem:[#allocation2 + $0x90] sm:$0xff]
    %v779 = vld [vmem:[#allocation2 + $0x98] sm:$0xff]
    %v780 = vld [vmem:[#allocation2 + $0xa0] sm:$0xff]
    %v781 = vld [vmem:[#allocation2 + $0xa8] sm:$0xff]
    %v782 = vld [vmem:[#allocation2 + $0xb0] sm:$0xff]
    %v783 = vld [vmem:[#allocation2 + $0xb8] sm:$0xff]
    %v784 = vld [vmem:[#allocation2 + $0xc0] sm:$0xff]
    %v785 = vld [vmem:[#allocation2 + $0xc8] sm:$0xff]
    %v786 = vld [vmem:[#allocation2 + $0xd0] sm:$0xff]
    %v787 = vld [vmem:[#allocation2 + $0xd8] sm:$0xff]
    %v788 = vld [vmem:[#allocation2 + $0xe0] sm:$0xff]
    %v789 = vld [vmem:[#allocation2 + $0xe8] sm:$0xff]
    %v790 = vld [vmem:[#allocation2 + $0xf0] sm:$0xff]
    %v791 = vld [vmem:[#allocation2 + $0xf8] sm:$0xff]
    %v792 = vld [vmem:[#allocation2 + $0x100] sm:$0xff]
    %v793 = vld [vmem:[#allocation2 + $0x108] sm:$0xff]
    %v794 = vld [vmem:[#allocation2 + $0x110] sm:$0xff]
    %v795 = vld [vmem:[#allocation2 + $0x118] sm:$0xff]
    %v796 = vld [vmem:[#allocation2 + $0x120] sm:$0xff]
    %v797 = vld [vmem:[#allocation2 + $0x128] sm:$0xff]
    %v798 = vld [vmem:[#allocation2 + $0x130] sm:$0xff]
    %v799 = vld [vmem:[#allocation2 + $0x138] sm:$0xff]
    %v800 = vld [vmem:[#allocation2 + $0x140] sm:$0xff]
    %v801 = vld [vmem:[#allocation2 + $0x148] sm:$0xff]
    %v802 = vld [vmem:[#allocation2 + $0x150] sm:$0xff]
    %v803 = vld [vmem:[#allocation2 + $0x158] sm:$0xff]
    %v804 = vld [vmem:[#allocation2 + $0x160] sm:$0xff]
    %v805 = vld [vmem:[#allocation2 + $0x168] sm:$0xff]
    %v806 = vld [vmem:[#allocation2 + $0x170] sm:$0xff]
    %v807 = vld [vmem:[#allocation2 + $0x178] sm:$0xff]
    %v808 = vld [vmem:[#allocation2 + $0x180] sm:$0xff]
    %v809 = vld [vmem:[#allocation2 + $0x188] sm:$0xff]
    %v810 = vld [vmem:[#allocation2 + $0x190] sm:$0xff]
    %v811 = vld [vmem:[#allocation2 + $0x198] sm:$0xff]
    %v812 = vld [vmem:[#allocation2 + $0x1a0] sm:$0xff]
    %v813 = vld [vmem:[#allocation2 + $0x1a8] sm:$0xff]
    %v814 = vld [vmem:[#allocation2 + $0x1b0] sm:$0xff]
    %v815 = vld [vmem:[#allocation2 + $0x1b8] sm:$0xff]
    %v816 = vld [vmem:[#allocation2 + $0x1c0] sm:$0xff]
    %v817 = vld [vmem:[#allocation2 + $0x1c8] sm:$0xff]
    %v818 = vld [vmem:[#allocation2 + $0x1d0] sm:$0xff]
    %v819 = vld [vmem:[#allocation2 + $0x1d8] sm:$0xff]
    %v820 = vld [vmem:[#allocation2 + $0x1e0] sm:$0xff]
    %v821 = vld [vmem:[#allocation2 + $0x1e8] sm:$0xff]
    %v822 = vld [vmem:[#allocation2 + $0x1f0] sm:$0xff]
    %v823 = vld [vmem:[#allocation2 + $0x1f8] sm:$0xff]
    %v824 = vld [vmem:[%s2] sm:$0xf]
    %v826 = vlaneseq
    %v827 = vshrl.u32 %v826, 7
    %v828 = vsub.s32 0, %v827
    %v829 = vrot.slane %v824, %v828
    %v830 = vlaneseq
    %v831 = vshrl.u32 %v830, 7
    %v832 = vsub.s32 1, %v831
    %v833 = vrot.slane %v824, %v832
    %v834 = vlaneseq
    %v835 = vshrl.u32 %v834, 7
    %v836 = vsub.s32 2, %v835
    %v837 = vrot.slane %v824, %v836
    %v838 = vlaneseq
    %v839 = vshrl.u32 %v838, 7
    %v840 = vsub.s32 3, %v839
    %v841 = vrot.slane %v824, %v840
    %v846 = vadd.f32 %v760, %v829
    %v847 = vadd.f32 %v761, %v833
    %v848 = vadd.f32 %v762, %v837
    %v849 = vadd.f32 %v763, %v841
    %v850 = vadd.f32 %v764, %v829
    %v851 = vadd.f32 %v765, %v833
    %v852 = vadd.f32 %v766, %v837
    %v853 = vadd.f32 %v767, %v841
    %v854 = vadd.f32 %v768, %v829
    %v855 = vadd.f32 %v769, %v833
    %v856 = vadd.f32 %v770, %v837
    %v857 = vadd.f32 %v771, %v841
    %v858 = vadd.f32 %v772, %v829
    %v859 = vadd.f32 %v773, %v833
    %v860 = vadd.f32 %v774, %v837
    %v861 = vadd.f32 %v775, %v841
    %v862 = vadd.f32 %v776, %v829
    %v863 = vadd.f32 %v777, %v833
    %v864 = vadd.f32 %v778, %v837
    %v865 = vadd.f32 %v779, %v841
    %v866 = vadd.f32 %v780, %v829
    %v867 = vadd.f32 %v781, %v833
    %v868 = vadd.f32 %v782, %v837
    %v869 = vadd.f32 %v783, %v841
    %v870 = vadd.f32 %v784, %v829
    %v871 = vadd.f32 %v785, %v833
    %v872 = vadd.f32 %v786, %v837
    %v873 = vadd.f32 %v787, %v841
    %v874 = vadd.f32 %v788, %v829
    %v875 = vadd.f32 %v789, %v833
    %v876 = vadd.f32 %v790, %v837
    %v877 = vadd.f32 %v791, %v841
    %v878 = vadd.f32 %v792, %v829
    %v879 = vadd.f32 %v793, %v833
    %v880 = vadd.f32 %v794, %v837
    %v881 = vadd.f32 %v795, %v841
    %v882 = vadd.f32 %v796, %v829
    %v883 = vadd.f32 %v797, %v833
    %v884 = vadd.f32 %v798, %v837
    %v885 = vadd.f32 %v799, %v841
    %v886 = vadd.f32 %v800, %v829
    %v887 = vadd.f32 %v801, %v833
    %v888 = vadd.f32 %v802, %v837
    %v889 = vadd.f32 %v803, %v841
    %v890 = vadd.f32 %v804, %v829
    %v891 = vadd.f32 %v805, %v833
    %v892 = vadd.f32 %v806, %v837
    %v893 = vadd.f32 %v807, %v841
    %v894 = vadd.f32 %v808, %v829
    %v895 = vadd.f32 %v809, %v833
    %v896 = vadd.f32 %v810, %v837
    %v897 = vadd.f32 %v811, %v841
    %v898 = vadd.f32 %v812, %v829
    %v899 = vadd.f32 %v813, %v833
    %v900 = vadd.f32 %v814, %v837
    %v901 = vadd.f32 %v815, %v841
    %v902 = vadd.f32 %v816, %v829
    %v903 = vadd.f32 %v817, %v833
    %v904 = vadd.f32 %v818, %v837
    %v905 = vadd.f32 %v819, %v841
    %v906 = vadd.f32 %v820, %v829
    %v907 = vadd.f32 %v821, %v833
    %v908 = vadd.f32 %v822, %v837
    %v909 = vadd.f32 %v823, %v841
    %910 = vst [vmem:[%s3] sm:$0xff] %v846
    %911 = vst [vmem:[%s3 + $0x8] sm:$0xff] %v847
    %912 = vst [vmem:[%s3 + $0x10] sm:$0xff] %v848
    %913 = vst [vmem:[%s3 + $0x18] sm:$0xff] %v849
    %914 = vst [vmem:[%s3 + $0x20] sm:$0xff] %v850
    %915 = vst [vmem:[%s3 + $0x28] sm:$0xff] %v851
    %916 = vst [vmem:[%s3 + $0x30] sm:$0xff] %v852
    %917 = vst [vmem:[%s3 + $0x38] sm:$0xff] %v853
    %918 = vst [vmem:[%s3 + $0x40] sm:$0xff] %v854
    %919 = vst [vmem:[%s3 + $0x48] sm:$0xff] %v855
    %920 = vst [vmem:[%s3 + $0x50] sm:$0xff] %v856
    %921 = vst [vmem:[%s3 + $0x58] sm:$0xff] %v857
    %922 = vst [vmem:[%s3 + $0x60] sm:$0xff] %v858
    %923 = vst [vmem:[%s3 + $0x68] sm:$0xff] %v859
    %924 = vst [vmem:[%s3 + $0x70] sm:$0xff] %v860
    %925 = vst [vmem:[%s3 + $0x78] sm:$0xff] %v861
    %926 = vst [vmem:[%s3 + $0x80] sm:$0xff] %v862
    %927 = vst [vmem:[%s3 + $0x88] sm:$0xff] %v863
    %928 = vst [vmem:[%s3 + $0x90] sm:$0xff] %v864
    %929 = vst [vmem:[%s3 + $0x98] sm:$0xff] %v865
    %930 = vst [vmem:[%s3 + $0xa0] sm:$0xff] %v866
    %931 = vst [vmem:[%s3 + $0xa8] sm:$0xff] %v867
    %932 = vst [vmem:[%s3 + $0xb0] sm:$0xff] %v868
    %933 = vst [vmem:[%s3 + $0xb8] sm:$0xff] %v869
    %934 = vst [vmem:[%s3 + $0xc0] sm:$0xff] %v870
    %935 = vst [vmem:[%s3 + $0xc8] sm:$0xff] %v871
    %936 = vst [vmem:[%s3 + $0xd0] sm:$0xff] %v872
    %937 = vst [vmem:[%s3 + $0xd8] sm:$0xff] %v873
    %938 = vst [vmem:[%s3 + $0xe0] sm:$0xff] %v874
    %939 = vst [vmem:[%s3 + $0xe8] sm:$0xff] %v875
    %940 = vst [vmem:[%s3 + $0xf0] sm:$0xff] %v876
    %941 = vst [vmem:[%s3 + $0xf8] sm:$0xff] %v877
    %942 = vst [vmem:[%s3 + $0x100] sm:$0xff] %v878
    %943 = vst [vmem:[%s3 + $0x108] sm:$0xff] %v879
    %944 = vst [vmem:[%s3 + $0x110] sm:$0xff] %v880
    %945 = vst [vmem:[%s3 + $0x118] sm:$0xff] %v881
    %946 = vst [vmem:[%s3 + $0x120] sm:$0xff] %v882
    %947 = vst [vmem:[%s3 + $0x128] sm:$0xff] %v883
    %948 = vst [vmem:[%s3 + $0x130] sm:$0xff] %v884
    %949 = vst [vmem:[%s3 + $0x138] sm:$0xff] %v885
    %950 = vst [vmem:[%s3 + $0x140] sm:$0xff] %v886
    %951 = vst [vmem:[%s3 + $0x148] sm:$0xff] %v887
    %952 = vst [vmem:[%s3 + $0x150] sm:$0xff] %v888
    %953 = vst [vmem:[%s3 + $0x158] sm:$0xff] %v889
    %954 = vst [vmem:[%s3 + $0x160] sm:$0xff] %v890
    %955 = vst [vmem:[%s3 + $0x168] sm:$0xff] %v891
    %956 = vst [vmem:[%s3 + $0x170] sm:$0xff] %v892
    %957 = vst [vmem:[%s3 + $0x178] sm:$0xff] %v893
    %958 = vst [vmem:[%s3 + $0x180] sm:$0xff] %v894
    %959 = vst [vmem:[%s3 + $0x188] sm:$0xff] %v895
    %960 = vst [vmem:[%s3 + $0x190] sm:$0xff] %v896
    %961 = vst [vmem:[%s3 + $0x198] sm:$0xff] %v897
    %962 = vst [vmem:[%s3 + $0x1a0] sm:$0xff] %v898
    %963 = vst [vmem:[%s3 + $0x1a8] sm:$0xff] %v899
    %964 = vst [vmem:[%s3 + $0x1b0] sm:$0xff] %v900
    %965 = vst [vmem:[%s3 + $0x1b8] sm:$0xff] %v901
    %966 = vst [vmem:[%s3 + $0x1c0] sm:$0xff] %v902
    %967 = vst [vmem:[%s3 + $0x1c8] sm:$0xff] %v903
    %968 = vst [vmem:[%s3 + $0x1d0] sm:$0xff] %v904
    %969 = vst [vmem:[%s3 + $0x1d8] sm:$0xff] %v905
    %970 = vst [vmem:[%s3 + $0x1e0] sm:$0xff] %v906
    %971 = vst [vmem:[%s3 + $0x1e8] sm:$0xff] %v907
    %972 = vst [vmem:[%s3 + $0x1f0] sm:$0xff] %v908
    %973 = vst [vmem:[%s3 + $0x1f8] sm:$0xff] %v909
  $region21: #{decoder_rnn_forward.3} parent=0 // pred_fallthru
    _
  // Predicated region
  $region22: #{decoder_rnn_forward.3} parent=0 // pred_check
    _
  $region23: #{decoder_rnn_forward.3} parent=0 // pred_check_branch
    %975 = sbr.rel (0) target = $region25
  $region24: #{decoder_rnn_forward.3} parent=0 // pred_region
    _
  $region25: #{decoder_rnn_forward.3} parent=0 // pred_fallthru
    _
  // Predicated region
  $region26: #{decoder_rnn_forward.3} parent=0 // pred_check
    _
  $region27: #{decoder_rnn_forward.3} parent=0 // pred_check_branch
    %977 = sbr.rel (0) target = $region29
  $region28: #{decoder_rnn_forward.3} parent=0 // pred_region
    _
  $region29: #{decoder_rnn_forward.3} parent=0 // pred_fallthru
    _

// kernel: decoder_rnn_forward.4
$region0: #{decoder_rnn_forward.4}
  #allocation0 [shape = 'u32[]', space=smem, size = 0x4, offset = 0x4, fixed_abs, tag = 'smem constant byte address 0x4 - core index']
  #allocation1 [shape = 'u32[144,128]{1,0:T(1,128)}', space=vmem, size = 0x12000, scoped, tag = 'internal scratch']
  #allocation2 [shape = 'f32[16,128]{1,0:T(8,128)}', space=vmem, size = 0x2000, scoped, tag = 'scratch operand']
  #allocation3 [shape = 'f32[16,128]{1,0:T(8,128)}', space=vmem, size = 0x2000, scoped, tag = 'scratch operand']
  %s0 = inlined_call_operand.vmem [shape: f32[8,16,512], index: 0, kind: input, shape index: {}]
  %s1 = inlined_call_operand.vmem [shape: bf16[128,512], index: 1, kind: input, shape index: {}]
  %s2 = inlined_call_operand.vmem [shape: bf16[8,16,128], index: 2, kind: output, shape index: {}]
  %s3 = sld [smem:[#allocation0]]
  $region22: #{decoder_rnn_forward.4} parent=0
    _
  %s5 = ssub.s32 1, %s3
  %s6 = scalar_select 0, %s5, %s3
  // Predicated region
  $region2: #{decoder_rnn_forward.4} parent=0 // pred_check
    _
  $region3: #{decoder_rnn_forward.4} parent=0 // pred_check_branch
    %8 = sbr.rel (0) target = $region5
  $region4: #{decoder_rnn_forward.4} parent=0 // pred_region
    _
  $region5: #{decoder_rnn_forward.4} parent=0 // pred_fallthru
    _
  // Predicated region
  $region6: #{decoder_rnn_forward.4} parent=0 // pred_check
    _
  $region7: #{decoder_rnn_forward.4} parent=0 // pred_check_branch
    %10 = sbr.rel (0) target = $region9
  $region8: #{decoder_rnn_forward.4} parent=0 // pred_region
    _
  $region9: #{decoder_rnn_forward.4} parent=0 // pred_fallthru
    _
  %p12 = scmp.eq.s32.totalorder 0, 0
  // Predicated region
  $region10: #{decoder_rnn_forward.4} parent=0 // pred_check
    %p13 = pneg %p12
  $region11: #{decoder_rnn_forward.4} parent=0 // pred_check_branch
    %15 = sbr.rel (%p13) target = $region13
  $region12: #{decoder_rnn_forward.4} parent=0 // pred_region
    %16 = vst [vmem:[#allocation2] sm:$0xff] 0.0
    %17 = vst [vmem:[#allocation2 + $0x8] sm:$0xff] 0.0
    %18 = vst [vmem:[#allocation3] sm:$0xff] 0.0
    %19 = vst [vmem:[#allocation3 + $0x8] sm:$0xff] 0.0
  $region13: #{decoder_rnn_forward.4} parent=0 // pred_fallthru
    _
  %v20 = vld [vmem:[#allocation2] sm:$0xff]
  %v21 = vld [vmem:[#allocation2 + $0x8] sm:$0xff]
  %v22 = vld [vmem:[#allocation3] sm:$0xff]
  %v23 = vld [vmem:[#allocation3 + $0x8] sm:$0xff]
  %v24 = vld [vmem:[%s0] sm:$0xff]
  %v25 = vld [vmem:[%s0 + $0x8] sm:$0xff]
  %v26 = vld [vmem:[%s0 + $0x10] sm:$0xff]
  %v27 = vld [vmem:[%s0 + $0x18] sm:$0xff]
  %v28 = vld [vmem:[%s0 + $0x20] sm:$0xff]
  %v29 = vld [vmem:[%s0 + $0x28] sm:$0xff]
  %v30 = vld [vmem:[%s0 + $0x30] sm:$0xff]
  %v31 = vld [vmem:[%s0 + $0x38] sm:$0xff]
  %v32 = vpack.c.bf16 %v21, %v20
  %v33 = vld [vmem:[%s1] sm:$0xff]
  %v34 = vld [vmem:[%s1 + $0x8] sm:$0xff]
  %v35 = vld [vmem:[%s1 + $0x10] sm:$0xff]
  %v36 = vld [vmem:[%s1 + $0x18] sm:$0xff]
  %v37 = vld [vmem:[%s1 + $0x20] sm:$0xff]
  %v38 = vld [vmem:[%s1 + $0x28] sm:$0xff]
  %v39 = vld [vmem:[%s1 + $0x30] sm:$0xff]
  %v40 = vld [vmem:[%s1 + $0x38] sm:$0xff]
  %v41 = vld [vmem:[%s1 + $0x40] sm:$0xff]
  %v42 = vld [vmem:[%s1 + $0x48] sm:$0xff]
  %v43 = vld [vmem:[%s1 + $0x50] sm:$0xff]
  %v44 = vld [vmem:[%s1 + $0x58] sm:$0xff]
  %v45 = vld [vmem:[%s1 + $0x60] sm:$0xff]
  %v46 = vld [vmem:[%s1 + $0x68] sm:$0xff]
  %v47 = vld [vmem:[%s1 + $0x70] sm:$0xff]
  %v48 = vld [vmem:[%s1 + $0x78] sm:$0xff]
  %v49 = vld [vmem:[%s1 + $0x80] sm:$0xff]
  %v50 = vld [vmem:[%s1 + $0x88] sm:$0xff]
  %v51 = vld [vmem:[%s1 + $0x90] sm:$0xff]
  %v52 = vld [vmem:[%s1 + $0x98] sm:$0xff]
  %v53 = vld [vmem:[%s1 + $0xa0] sm:$0xff]
  %v54 = vld [vmem:[%s1 + $0xa8] sm:$0xff]
  %v55 = vld [vmem:[%s1 + $0xb0] sm:$0xff]
  %v56 = vld [vmem:[%s1 + $0xb8] sm:$0xff]
  %v57 = vld [vmem:[%s1 + $0xc0] sm:$0xff]
  %v58 = vld [vmem:[%s1 + $0xc8] sm:$0xff]
  %v59 = vld [vmem:[%s1 + $0xd0] sm:$0xff]
  %v60 = vld [vmem:[%s1 + $0xd8] sm:$0xff]
  %v61 = vld [vmem:[%s1 + $0xe0] sm:$0xff]
  %v62 = vld [vmem:[%s1 + $0xe8] sm:$0xff]
  %v63 = vld [vmem:[%s1 + $0xf0] sm:$0xff]
  %v64 = vld [vmem:[%s1 + $0xf8] sm:$0xff]
  %v97 = vunpack.c.l.b16 %v33
  %v98 = vunpack.c.h.b16 %v33
  %v99 = vunpack.c.l.b16 %v34
  %v100 = vunpack.c.h.b16 %v34
  %v101 = vunpack.c.l.b16 %v35
  %v102 = vunpack.c.h.b16 %v35
  %v103 = vunpack.c.l.b16 %v36
  %v104 = vunpack.c.h.b16 %v36
  %v105 = vunpack.c.l.b16 %v37
  %v106 = vunpack.c.h.b16 %v37
  %v107 = vunpack.c.l.b16 %v38
  %v108 = vunpack.c.h.b16 %v38
  %v109 = vunpack.c.l.b16 %v39
  %v110 = vunpack.c.h.b16 %v39
  %v111 = vunpack.c.l.b16 %v40
  %v112 = vunpack.c.h.b16 %v40
  %v113 = vunpack.c.l.b16 %v41
  %v114 = vunpack.c.h.b16 %v41
  %v115 = vunpack.c.l.b16 %v42
  %v116 = vunpack.c.h.b16 %v42
  %v117 = vunpack.c.l.b16 %v43
  %v118 = vunpack.c.h.b16 %v43
  %v119 = vunpack.c.l.b16 %v44
  %v120 = vunpack.c.h.b16 %v44
  %v121 = vunpack.c.l.b16 %v45
  %v122 = vunpack.c.h.b16 %v45
  %v123 = vunpack.c.l.b16 %v46
  %v124 = vunpack.c.h.b16 %v46
  %v125 = vunpack.c.l.b16 %v47
  %v126 = vunpack.c.h.b16 %v47
  %v127 = vunpack.c.l.b16 %v48
  %v128 = vunpack.c.h.b16 %v48
  %v129 = vunpack.c.l.b16 %v49
  %v130 = vunpack.c.h.b16 %v49
  %v131 = vunpack.c.l.b16 %v50
  %v132 = vunpack.c.h.b16 %v50
  %v133 = vunpack.c.l.b16 %v51
  %v134 = vunpack.c.h.b16 %v51
  %v135 = vunpack.c.l.b16 %v52
  %v136 = vunpack.c.h.b16 %v52
  %v137 = vunpack.c.l.b16 %v53
  %v138 = vunpack.c.h.b16 %v53
  %v139 = vunpack.c.l.b16 %v54
  %v140 = vunpack.c.h.b16 %v54
  %v141 = vunpack.c.l.b16 %v55
  %v142 = vunpack.c.h.b16 %v55
  %v143 = vunpack.c.l.b16 %v56
  %v144 = vunpack.c.h.b16 %v56
  %v145 = vunpack.c.l.b16 %v57
  %v146 = vunpack.c.h.b16 %v57
  %v147 = vunpack.c.l.b16 %v58
  %v148 = vunpack.c.h.b16 %v58
  %v149 = vunpack.c.l.b16 %v59
  %v150 = vunpack.c.h.b16 %v59
  %v151 = vunpack.c.l.b16 %v60
  %v152 = vunpack.c.h.b16 %v60
  %v153 = vunpack.c.l.b16 %v61
  %v154 = vunpack.c.h.b16 %v61
  %v155 = vunpack.c.l.b16 %v62
  %v156 = vunpack.c.h.b16 %v62
  %v157 = vunpack.c.l.b16 %v63
  %v158 = vunpack.c.h.b16 %v63
  %v159 = vunpack.c.l.b16 %v64
  %v160 = vunpack.c.h.b16 %v64
  %v161 = vpack.c.b16 %v101, %v97
  %v162 = vpack.c.b16 %v102, %v98
  %v163 = vpack.c.b16 %v103, %v99
  %v164 = vpack.c.b16 %v104, %v100
  %v165 = vpack.c.b16 %v109, %v105
  %v166 = vpack.c.b16 %v110, %v106
  %v167 = vpack.c.b16 %v111, %v107
  %v168 = vpack.c.b16 %v112, %v108
  %v169 = vpack.c.b16 %v117, %v113
  %v170 = vpack.c.b16 %v118, %v114
  %v171 = vpack.c.b16 %v119, %v115
  %v172 = vpack.c.b16 %v120, %v116
  %v173 = vpack.c.b16 %v125, %v121
  %v174 = vpack.c.b16 %v126, %v122
  %v175 = vpack.c.b16 %v127, %v123
  %v176 = vpack.c.b16 %v128, %v124
  %v177 = vpack.c.b16 %v133, %v129
  %v178 = vpack.c.b16 %v134, %v130
  %v179 = vpack.c.b16 %v135, %v131
  %v180 = vpack.c.b16 %v136, %v132
  %v181 = vpack.c.b16 %v141, %v137
  %v182 = vpack.c.b16 %v142, %v138
  %v183 = vpack.c.b16 %v143, %v139
  %v184 = vpack.c.b16 %v144, %v140
  %v185 = vpack.c.b16 %v149, %v145
  %v186 = vpack.c.b16 %v150, %v146
  %v187 = vpack.c.b16 %v151, %v147
  %v188 = vpack.c.b16 %v152, %v148
  %v189 = vpack.c.b16 %v157, %v153
  %v190 = vpack.c.b16 %v158, %v154
  %v191 = vpack.c.b16 %v159, %v155
  %v192 = vpack.c.b16 %v160, %v156
  %225 = vmatprep.subr.bf16.mxu0 %v162
  %226 = vmatpush1.bf16.msra.mxu0 %v161
  %227 = vmatprep.subr.bf16.mxu0 %v166
  %228 = vmatpush1.bf16.msra.mxu0 %v165
  %229 = vmatprep.subr.bf16.mxu0 %v170
  %230 = vmatpush1.bf16.msra.mxu0 %v169
  %231 = vmatprep.subr.bf16.mxu0 %v174
  %232 = vmatpush1.bf16.msra.mxu0 %v173
  %233 = vmatprep.subr.bf16.mxu0 %v178
  %234 = vmatpush1.bf16.msra.mxu0 %v177
  %235 = vmatprep.subr.bf16.mxu0 %v182
  %236 = vmatpush1.bf16.msra.mxu0 %v181
  %237 = vmatprep.subr.bf16.mxu0 %v186
  %238 = vmatpush1.bf16.msra.mxu0 %v185
  %239 = vmatprep.subr.bf16.mxu0 %v190
  %240 = vmatpush1.bf16.msra.mxu0 %v189
  %241 = vmatprep.subr.bf16.mxu0 0
  %242 = vmatpush1.bf16.msra.mxu0 0
  %243 = vmatprep.subr.bf16.mxu0 0
  %244 = vmatpush1.bf16.msra.mxu0 0
  %245 = vmatprep.subr.bf16.mxu0 0
  %246 = vmatpush1.bf16.msra.mxu0 0
  %247 = vmatprep.subr.bf16.mxu0 0
  %248 = vmatpush1.bf16.msra.mxu0 0
  %249 = vmatprep.subr.bf16.mxu0 0
  %250 = vmatpush1.bf16.msra.mxu0 0
  %251 = vmatprep.subr.bf16.mxu0 0
  %252 = vmatpush1.bf16.msra.mxu0 0
  %253 = vmatprep.subr.bf16.mxu0 0
  %254 = vmatpush1.bf16.msra.mxu0 0
  %255 = vmatprep.subr.bf16.mxu0 0
  %256 = vmatpush1.bf16.msra.mxu0 0
  %257 = vmatprep.mubr.bf16.mxu0 0
  %258 = vmatmul.mubr.bf16.gmra.mrb[0].mxu0 %v32
  %v259 = vpop.f32.mrb[0].mxu0
  %v260 = vadd.f32 0.0, %v259
  %v261 = vpop.f32.mrb[0].mxu0
  %v262 = vadd.f32 0.0, %v261
  %v263 = vpop.f32.mrb[0].mxu0
  %v264 = vadd.f32 0.0, %v263
  %v265 = vpop.f32.mrb[0].mxu0
  %v266 = vadd.f32 0.0, %v265
  %267 = vdwg.mxu0
  %268 = vmatprep.subr.bf16.mxu0 %v164
  %269 = vmatpush1.bf16.msra.mxu0 %v163
  %270 = vmatprep.subr.bf16.mxu0 %v168
  %271 = vmatpush1.bf16.msra.mxu0 %v167
  %272 = vmatprep.subr.bf16.mxu0 %v172
  %273 = vmatpush1.bf16.msra.mxu0 %v171
  %274 = vmatprep.subr.bf16.mxu0 %v176
  %275 = vmatpush1.bf16.msra.mxu0 %v175
  %276 = vmatprep.subr.bf16.mxu0 %v180
  %277 = vmatpush1.bf16.msra.mxu0 %v179
  %278 = vmatprep.subr.bf16.mxu0 %v184
  %279 = vmatpush1.bf16.msra.mxu0 %v183
  %280 = vmatprep.subr.bf16.mxu0 %v188
  %281 = vmatpush1.bf16.msra.mxu0 %v187
  %282 = vmatprep.subr.bf16.mxu0 %v192
  %283 = vmatpush1.bf16.msra.mxu0 %v191
  %284 = vmatprep.subr.bf16.mxu0 0
  %285 = vmatpush1.bf16.msra.mxu0 0
  %286 = vmatprep.subr.bf16.mxu0 0
  %287 = vmatpush1.bf16.msra.mxu0 0
  %288 = vmatprep.subr.bf16.mxu0 0
  %289 = vmatpush1.bf16.msra.mxu0 0
  %290 = vmatprep.subr.bf16.mxu0 0
  %291 = vmatpush1.bf16.msra.mxu0 0
  %292 = vmatprep.subr.bf16.mxu0 0
  %293 = vmatpush1.bf16.msra.mxu0 0
  %294 = vmatprep.subr.bf16.mxu0 0
  %295 = vmatpush1.bf16.msra.mxu0 0
  %296 = vmatprep.subr.bf16.mxu0 0
  %297 = vmatpush1.bf16.msra.mxu0 0
  %298 = vmatprep.subr.bf16.mxu0 0
  %299 = vmatpush1.bf16.msra.mxu0 0
  %300 = vmatprep.mubr.bf16.mxu0 0
  %301 = vmatmul.mubr.bf16.gmra.mrb[0].mxu0 %v32
  %v302 = vpop.f32.mrb[0].mxu0
  %v303 = vadd.f32 0.0, %v302
  %v304 = vpop.f32.mrb[0].mxu0
  %v305 = vadd.f32 0.0, %v304
  %v306 = vpop.f32.mrb[0].mxu0
  %v307 = vadd.f32 0.0, %v306
  %v308 = vpop.f32.mrb[0].mxu0
  %v309 = vadd.f32 0.0, %v308
  %310 = vdwg.mxu0
  %v311 = vadd.f32 %v24, %v260
  %v312 = vadd.f32 %v25, %v262
  %v313 = vadd.f32 %v26, %v303
  %v314 = vadd.f32 %v27, %v305
  %v315 = vadd.f32 %v28, %v264
  %v316 = vadd.f32 %v29, %v266
  %v317 = vadd.f32 %v30, %v307
  %v318 = vadd.f32 %v31, %v309
  %v319 = vxor.u32 %v311, 2147483648
  %v320 = vxor.u32 %v315, 2147483648
  %v321 = vmul.f32 %v319, 1.442695
  %v322 = vpow.pop %v321
  %v323 = vmul.f32 %v320, 1.442695
  %v324 = vpow.pop %v323
  %v325 = vadd.f32 %v322, 1.0
  %v326 = vadd.f32 %v324, 1.0
  %v327 = vrcp.pop %v325
  %v328 = vmul.f32 1.0, %v327
  %v329 = vrcp.pop %v326
  %v330 = vmul.f32 1.0, %v329
  %v331 = vxor.u32 %v312, 2147483648
  %v332 = vxor.u32 %v316, 2147483648
  %v333 = vmul.f32 %v331, 1.442695
  %v334 = vpow.pop %v333
  %v335 = vmul.f32 %v332, 1.442695
  %v336 = vpow.pop %v335
  %v337 = vadd.f32 %v334, 1.0
  %v338 = vadd.f32 %v336, 1.0
  %v339 = vrcp.pop %v337
  %v340 = vmul.f32 1.0, %v339
  %v341 = vrcp.pop %v338
  %v342 = vmul.f32 1.0, %v341
  %v343 = vtanh.pop %v313
  %v344 = vtanh.pop %v317
  %v345 = vxor.u32 %v314, 2147483648
  %v346 = vxor.u32 %v318, 2147483648
  %v347 = vmul.f32 %v345, 1.442695
  %v348 = vpow.pop %v347
  %v349 = vmul.f32 %v346, 1.442695
  %v350 = vpow.pop %v349
  %v351 = vadd.f32 %v348, 1.0
  %v352 = vadd.f32 %v350, 1.0
  %v353 = vrcp.pop %v351
  %v354 = vmul.f32 1.0, %v353
  %v355 = vrcp.pop %v352
  %v356 = vmul.f32 1.0, %v355
  %v357 = vmul.f32 %v340, %v22
  %v358 = vmul.f32 %v342, %v23
  %v359 = vmul.f32 %v328, %v343
  %v360 = vmul.f32 %v330, %v344
  %v361 = vadd.f32 %v357, %v359
  %v362 = vadd.f32 %v358, %v360
  %v363 = vtanh.pop %v361
  %v364 = vtanh.pop %v362
  %v365 = vmul.f32 %v354, %v363
  %v366 = vmul.f32 %v356, %v364
  %v367 = vpack.c.bf16 %v366, %v365
  %v369 = vunpack.c.l.b16 %v367
  %v370 = vunpack.c.h.b16 %v367
  %v371 = vpack.c.b16 %v369, %v369
  %v372 = vpack.c.b16 %v370, %v370
  %375 = vst [vmem:[%s2] sm:$0xf] %v371
  %376 = vst [vmem:[%s2 + $0x4] sm:$0xf] %v372
  %s377 = scalar_lea.vmem %s0, 64
  %v378 = vld [vmem:[%s377] sm:$0xff]
  %v379 = vld [vmem:[%s377 + $0x8] sm:$0xff]
  %v380 = vld [vmem:[%s377 + $0x10] sm:$0xff]
  %v381 = vld [vmem:[%s377 + $0x18] sm:$0xff]
  %v382 = vld [vmem:[%s377 + $0x20] sm:$0xff]
  %v383 = vld [vmem:[%s377 + $0x28] sm:$0xff]
  %v384 = vld [vmem:[%s377 + $0x30] sm:$0xff]
  %v385 = vld [vmem:[%s377 + $0x38] sm:$0xff]
  %v386 = vld [vmem:[%s1] sm:$0xff]
  %v387 = vld [vmem:[%s1 + $0x8] sm:$0xff]
  %v388 = vld [vmem:[%s1 + $0x10] sm:$0xff]
  %v389 = vld [vmem:[%s1 + $0x18] sm:$0xff]
  %v390 = vld [vmem:[%s1 + $0x20] sm:$0xff]
  %v391 = vld [vmem:[%s1 + $0x28] sm:$0xff]
  %v392 = vld [vmem:[%s1 + $0x30] sm:$0xff]
  %v393 = vld [vmem:[%s1 + $0x38] sm:$0xff]
  %v394 = vld [vmem:[%s1 + $0x40] sm:$0xff]
  %v395 = vld [vmem:[%s1 + $0x48] sm:$0xff]
  %v396 = vld [vmem:[%s1 + $0x50] sm:$0xff]
  %v397 = vld [vmem:[%s1 + $0x58] sm:$0xff]
  %v398 = vld [vmem:[%s1 + $0x60] sm:$0xff]
  %v399 = vld [vmem:[%s1 + $0x68] sm:$0xff]
  %v400 = vld [vmem:[%s1 + $0x70] sm:$0xff]
  %v401 = vld [vmem:[%s1 + $0x78] sm:$0xff]
  %v402 = vld [vmem:[%s1 + $0x80] sm:$0xff]
  %v403 = vld [vmem:[%s1 + $0x88] sm:$0xff]
  %v404 = vld [vmem:[%s1 + $0x90] sm:$0xff]
  %v405 = vld [vmem:[%s1 + $0x98] sm:$0xff]
  %v406 = vld [vmem:[%s1 + $0xa0] sm:$0xff]
  %v407 = vld [vmem:[%s1 + $0xa8] sm:$0xff]
  %v408 = vld [vmem:[%s1 + $0xb0] sm:$0xff]
  %v409 = vld [vmem:[%s1 + $0xb8] sm:$0xff]
  %v410 = vld [vmem:[%s1 + $0xc0] sm:$0xff]
  %v411 = vld [vmem:[%s1 + $0xc8] sm:$0xff]
  %v412 = vld [vmem:[%s1 + $0xd0] sm:$0xff]
  %v413 = vld [vmem:[%s1 + $0xd8] sm:$0xff]
  %v414 = vld [vmem:[%s1 + $0xe0] sm:$0xff]
  %v415 = vld [vmem:[%s1 + $0xe8] sm:$0xff]
  %v416 = vld [vmem:[%s1 + $0xf0] sm:$0xff]
  %v417 = vld [vmem:[%s1 + $0xf8] sm:$0xff]
  %v450 = vunpack.c.l.b16 %v386
  %v451 = vunpack.c.h.b16 %v386
  %v452 = vunpack.c.l.b16 %v387
  %v453 = vunpack.c.h.b16 %v387
  %v454 = vunpack.c.l.b16 %v388
  %v455 = vunpack.c.h.b16 %v388
  %v456 = vunpack.c.l.b16 %v389
  %v457 = vunpack.c.h.b16 %v389
  %v458 = vunpack.c.l.b16 %v390
  %v459 = vunpack.c.h.b16 %v390
  %v460 = vunpack.c.l.b16 %v391
  %v461 = vunpack.c.h.b16 %v391
  %v462 = vunpack.c.l.b16 %v392
  %v463 = vunpack.c.h.b16 %v392
  %v464 = vunpack.c.l.b16 %v393
  %v465 = vunpack.c.h.b16 %v393
  %v466 = vunpack.c.l.b16 %v394
  %v467 = vunpack.c.h.b16 %v394
  %v468 = vunpack.c.l.b16 %v395
  %v469 = vunpack.c.h.b16 %v395
  %v470 = vunpack.c.l.b16 %v396
  %v471 = vunpack.c.h.b16 %v396
  %v472 = vunpack.c.l.b16 %v397
  %v473 = vunpack.c.h.b16 %v397
  %v474 = vunpack.c.l.b16 %v398
  %v475 = vunpack.c.h.b16 %v398
  %v476 = vunpack.c.l.b16 %v399
  %v477 = vunpack.c.h.b16 %v399
  %v478 = vunpack.c.l.b16 %v400
  %v479 = vunpack.c.h.b16 %v400
  %v480 = vunpack.c.l.b16 %v401
  %v481 = vunpack.c.h.b16 %v401
  %v482 = vunpack.c.l.b16 %v402
  %v483 = vunpack.c.h.b16 %v402
  %v484 = vunpack.c.l.b16 %v403
  %v485 = vunpack.c.h.b16 %v403
  %v486 = vunpack.c.l.b16 %v404
  %v487 = vunpack.c.h.b16 %v404
  %v488 = vunpack.c.l.b16 %v405
  %v489 = vunpack.c.h.b16 %v405
  %v490 = vunpack.c.l.b16 %v406
  %v491 = vunpack.c.h.b16 %v406
  %v492 = vunpack.c.l.b16 %v407
  %v493 = vunpack.c.h.b16 %v407
  %v494 = vunpack.c.l.b16 %v408
  %v495 = vunpack.c.h.b16 %v408
  %v496 = vunpack.c.l.b16 %v409
  %v497 = vunpack.c.h.b16 %v409
  %v498 = vunpack.c.l.b16 %v410
  %v499 = vunpack.c.h.b16 %v410
  %v500 = vunpack.c.l.b16 %v411
  %v501 = vunpack.c.h.b16 %v411
  %v502 = vunpack.c.l.b16 %v412
  %v503 = vunpack.c.h.b16 %v412
  %v504 = vunpack.c.l.b16 %v413
  %v505 = vunpack.c.h.b16 %v413
  %v506 = vunpack.c.l.b16 %v414
  %v507 = vunpack.c.h.b16 %v414
  %v508 = vunpack.c.l.b16 %v415
  %v509 = vunpack.c.h.b16 %v415
  %v510 = vunpack.c.l.b16 %v416
  %v511 = vunpack.c.h.b16 %v416
  %v512 = vunpack.c.l.b16 %v417
  %v513 = vunpack.c.h.b16 %v417
  %v514 = vpack.c.b16 %v454, %v450
  %v515 = vpack.c.b16 %v455, %v451
  %v516 = vpack.c.b16 %v456, %v452
  %v517 = vpack.c.b16 %v457, %v453
  %v518 = vpack.c.b16 %v462, %v458
  %v519 = vpack.c.b16 %v463, %v459
  %v520 = vpack.c.b16 %v464, %v460
  %v521 = vpack.c.b16 %v465, %v461
  %v522 = vpack.c.b16 %v470, %v466
  %v523 = vpack.c.b16 %v471, %v467
  %v524 = vpack.c.b16 %v472, %v468
  %v525 = vpack.c.b16 %v473, %v469
  %v526 = vpack.c.b16 %v478, %v474
  %v527 = vpack.c.b16 %v479, %v475
  %v528 = vpack.c.b16 %v480, %v476
  %v529 = vpack.c.b16 %v481, %v477
  %v530 = vpack.c.b16 %v486, %v482
  %v531 = vpack.c.b16 %v487, %v483
  %v532 = vpack.c.b16 %v488, %v484
  %v533 = vpack.c.b16 %v489, %v485
  %v534 = vpack.c.b16 %v494, %v490
  %v535 = vpack.c.b16 %v495, %v491
  %v536 = vpack.c.b16 %v496, %v492
  %v537 = vpack.c.b16 %v497, %v493
  %v538 = vpack.c.b16 %v502, %v498
  %v539 = vpack.c.b16 %v503, %v499
  %v540 = vpack.c.b16 %v504, %v500
  %v541 = vpack.c.b16 %v505, %v501
  %v542 = vpack.c.b16 %v510, %v506
  %v543 = vpack.c.b16 %v511, %v507
  %v544 = vpack.c.b16 %v512, %v508
  %v545 = vpack.c.b16 %v513, %v509
  %578 = vmatprep.subr.bf16.mxu0 %v515
  %579 = vmatpush1.bf16.msra.mxu0 %v514
  %580 = vmatprep.subr.bf16.mxu0 %v519
  %581 = vmatpush1.bf16.msra.mxu0 %v518
  %582 = vmatprep.subr.bf16.mxu0 %v523
  %583 = vmatpush1.bf16.msra.mxu0 %v522
  %584 = vmatprep.subr.bf16.mxu0 %v527
  %585 = vmatpush1.bf16.msra.mxu0 %v526
  %586 = vmatprep.subr.bf16.mxu0 %v531
  %587 = vmatpush1.bf16.msra.mxu0 %v530
  %588 = vmatprep.subr.bf16.mxu0 %v535
  %589 = vmatpush1.bf16.msra.mxu0 %v534
  %590 = vmatprep.subr.bf16.mxu0 %v539
  %591 = vmatpush1.bf16.msra.mxu0 %v538
  %592 = vmatprep.subr.bf16.mxu0 %v543
  %593 = vmatpush1.bf16.msra.mxu0 %v542
  %594 = vmatprep.subr.bf16.mxu0 0
  %595 = vmatpush1.bf16.msra.mxu0 0
  %596 = vmatprep.subr.bf16.mxu0 0
  %597 = vmatpush1.bf16.msra.mxu0 0
  %598 = vmatprep.subr.bf16.mxu0 0
  %599 = vmatpush1.bf16.msra.mxu0 0
  %600 = vmatprep.subr.bf16.mxu0 0
  %601 = vmatpush1.bf16.msra.mxu0 0
  %602 = vmatprep.subr.bf16.mxu0 0
  %603 = vmatpush1.bf16.msra.mxu0 0
  %604 = vmatprep.subr.bf16.mxu0 0
  %605 = vmatpush1.bf16.msra.mxu0 0
  %606 = vmatprep.subr.bf16.mxu0 0
  %607 = vmatpush1.bf16.msra.mxu0 0
  %608 = vmatprep.subr.bf16.mxu0 0
  %609 = vmatpush1.bf16.msra.mxu0 0
  %610 = vmatprep.mubr.bf16.mxu0 0
  %611 = vmatmul.mubr.bf16.gmra.mrb[0].mxu0 %v367
  %v612 = vpop.f32.mrb[0].mxu0
  %v613 = vadd.f32 0.0, %v612
  %v614 = vpop.f32.mrb[0].mxu0
  %v615 = vadd.f32 0.0, %v614
  %v616 = vpop.f32.mrb[0].mxu0
  %v617 = vadd.f32 0.0, %v616
  %v618 = vpop.f32.mrb[0].mxu0
  %v619 = vadd.f32 0.0, %v618
  %620 = vdwg.mxu0
  %621 = vmatprep.subr.bf16.mxu0 %v517
  %622 = vmatpush1.bf16.msra.mxu0 %v516
  %623 = vmatprep.subr.bf16.mxu0 %v521
  %624 = vmatpush1.bf16.msra.mxu0 %v520
  %625 = vmatprep.subr.bf16.mxu0 %v525
  %626 = vmatpush1.bf16.msra.mxu0 %v524
  %627 = vmatprep.subr.bf16.mxu0 %v529
  %628 = vmatpush1.bf16.msra.mxu0 %v528
  %629 = vmatprep.subr.bf16.mxu0 %v533
  %630 = vmatpush1.bf16.msra.mxu0 %v532
  %631 = vmatprep.subr.bf16.mxu0 %v537
  %632 = vmatpush1.bf16.msra.mxu0 %v536
  %633 = vmatprep.subr.bf16.mxu0 %v541
  %634 = vmatpush1.bf16.msra.mxu0 %v540
  %635 = vmatprep.subr.bf16.mxu0 %v545
  %636 = vmatpush1.bf16.msra.mxu0 %v544
  %637 = vmatprep.subr.bf16.mxu0 0
  %638 = vmatpush1.bf16.msra.mxu0 0
  %639 = vmatprep.subr.bf16.mxu0 0
  %640 = vmatpush1.bf16.msra.mxu0 0
  %641 = vmatprep.subr.bf16.mxu0 0
  %642 = vmatpush1.bf16.msra.mxu0 0
  %643 = vmatprep.subr.bf16.mxu0 0
  %644 = vmatpush1.bf16.msra.mxu0 0
  %645 = vmatprep.subr.bf16.mxu0 0
  %646 = vmatpush1.bf16.msra.mxu0 0
  %647 = vmatprep.subr.bf16.mxu0 0
  %648 = vmatpush1.bf16.msra.mxu0 0
  %649 = vmatprep.subr.bf16.mxu0 0
  %650 = vmatpush1.bf16.msra.mxu0 0
  %651 = vmatprep.subr.bf16.mxu0 0
  %652 = vmatpush1.bf16.msra.mxu0 0
  %653 = vmatprep.mubr.bf16.mxu0 0
  %654 = vmatmul.mubr.bf16.gmra.mrb[0].mxu0 %v367
  %v655 = vpop.f32.mrb[0].mxu0
  %v656 = vadd.f32 0.0, %v655
  %v657 = vpop.f32.mrb[0].mxu0
  %v658 = vadd.f32 0.0, %v657
  %v659 = vpop.f32.mrb[0].mxu0
  %v660 = vadd.f32 0.0, %v659
  %v661 = vpop.f32.mrb[0].mxu0
  %v662 = vadd.f32 0.0, %v661
  %663 = vdwg.mxu0
  %v664 = vadd.f32 %v378, %v613
  %v665 = vadd.f32 %v379, %v615
  %v666 = vadd.f32 %v380, %v656
  %v667 = vadd.f32 %v381, %v658
  %v668 = vadd.f32 %v382, %v617
  %v669 = vadd.f32 %v383, %v619
  %v670 = vadd.f32 %v384, %v660
  %v671 = vadd.f32 %v385, %v662
  %v672 = vxor.u32 %v664, 2147483648
  %v673 = vxor.u32 %v668, 2147483648
  %v674 = vmul.f32 %v672, 1.442695
  %v675 = vpow.pop %v674
  %v676 = vmul.f32 %v673, 1.442695
  %v677 = vpow.pop %v676
  %v678 = vadd.f32 %v675, 1.0
  %v679 = vadd.f32 %v677, 1.0
  %v680 = vrcp.pop %v678
  %v681 = vmul.f32 1.0, %v680
  %v682 = vrcp.pop %v679
  %v683 = vmul.f32 1.0, %v682
  %v684 = vxor.u32 %v665, 2147483648
  %v685 = vxor.u32 %v669, 2147483648
  %v686 = vmul.f32 %v684, 1.442695
  %v687 = vpow.pop %v686
  %v688 = vmul.f32 %v685, 1.442695
  %v689 = vpow.pop %v688
  %v690 = vadd.f32 %v687, 1.0
  %v691 = vadd.f32 %v689, 1.0
  %v692 = vrcp.pop %v690
  %v693 = vmul.f32 1.0, %v692
  %v694 = vrcp.pop %v691
  %v695 = vmul.f32 1.0, %v694
  %v696 = vtanh.pop %v666
  %v697 = vtanh.pop %v670
  %v698 = vxor.u32 %v667, 2147483648
  %v699 = vxor.u32 %v671, 2147483648
  %v700 = vmul.f32 %v698, 1.442695
  %v701 = vpow.pop %v700
  %v702 = vmul.f32 %v699, 1.442695
  %v703 = vpow.pop %v702
  %v704 = vadd.f32 %v701, 1.0
  %v705 = vadd.f32 %v703, 1.0
  %v706 = vrcp.pop %v704
  %v707 = vmul.f32 1.0, %v706
  %v708 = vrcp.pop %v705
  %v709 = vmul.f32 1.0, %v708
  %v710 = vmul.f32 %v693, %v361
  %v711 = vmul.f32 %v695, %v362
  %v712 = vmul.f32 %v681, %v696
  %v713 = vmul.f32 %v683, %v697
  %v714 = vadd.f32 %v710, %v712
  %v715 = vadd.f32 %v711, %v713
  %v716 = vtanh.pop %v714
  %v717 = vtanh.pop %v715
  %v718 = vmul.f32 %v707, %v716
  %v719 = vmul.f32 %v709, %v717
  %v720 = vpack.c.bf16 %v719, %v718
  %v722 = vunpack.c.l.b16 %v720
  %v723 = vunpack.c.h.b16 %v720
  %v724 = vpack.c.b16 %v722, %v722
  %v725 = vpack.c.b16 %v723, %v723
  %s728 = scalar_lea.vmem %s2, 8
  %729 = vst [vmem:[%s728] sm:$0xf] %v724
  %730 = vst [vmem:[%s728 + $0x4] sm:$0xf] %v725
  %s731 = scalar_lea.vmem %s0, 128
  %v732 = vld [vmem:[%s731] sm:$0xff]
  %v733 = vld [vmem:[%s731 + $0x8] sm:$0xff]
  %v734 = vld [vmem:[%s731 + $0x10] sm:$0xff]
  %v735 = vld [vmem:[%s731 + $0x18] sm:$0xff]
  %v736 = vld [vmem:[%s731 + $0x20] sm:$0xff]
  %v737 = vld [vmem:[%s731 + $0x28] sm:$0xff]
  %v738 = vld [vmem:[%s731 + $0x30] sm:$0xff]
  %v739 = vld [vmem:[%s731 + $0x38] sm:$0xff]
  %v740 = vld [vmem:[%s1] sm:$0xff]
  %v741 = vld [vmem:[%s1 + $0x8] sm:$0xff]
  %v742 = vld [vmem:[%s1 + $0x10] sm:$0xff]
  %v743 = vld [vmem:[%s1 + $0x18] sm:$0xff]
  %v744 = vld [vmem:[%s1 + $0x20] sm:$0xff]
  %v745 = vld [vmem:[%s1 + $0x28] sm:$0xff]
  %v746 = vld [vmem:[%s1 + $0x30] sm:$0xff]
  %v747 = vld [vmem:[%s1 + $0x38] sm:$0xff]
  %v748 = vld [vmem:[%s1 + $0x40] sm:$0xff]
  %v749 = vld [vmem:[%s1 + $0x48] sm:$0xff]
  %v750 = vld [vmem:[%s1 + $0x50] sm:$0xff]
  %v751 = vld [vmem:[%s1 + $0x58] sm:$0xff]
  %v752 = vld [vmem:[%s1 + $0x60] sm:$0xff]
  %v753 = vld [vmem:[%s1 + $0x68] sm:$0xff]
  %v754 = vld [vmem:[%s1 + $0x70] sm:$0xff]
  %v755 = vld [vmem:[%s1 + $0x78] sm:$0xff]
  %v756 = vld [vmem:[%s1 + $0x80] sm:$0xff]
  %v757 = vld [vmem:[%s1 + $0x88] sm:$0xff]
  %v758 = vld [vmem:[%s1 + $0x90] sm:$0xff]
  %v759 = vld [vmem:[%s1 + $0x98] sm:$0xff]
  %v760 = vld [vmem:[%s1 + $0xa0] sm:$0xff]
  %v761 = vld [vmem:[%s1 + $0xa8] sm:$0xff]
  %v762 = vld [vmem:[%s1 + $0xb0] sm:$0xff]
  %v763 = vld [vmem:[%s1 + $0xb8] sm:$0xff]
  %v764 = vld [vmem:[%s1 + $0xc0] sm:$0xff]
  %v765 = vld [vmem:[%s1 + $0xc8] sm:$0xff]
  %v766 = vld [vmem:[%s1 + $0xd0] sm:$0xff]
  %v767 = vld [vmem:[%s1 + $0xd8] sm:$0xff]
  %v768 = vld [vmem:[%s1 + $0xe0] sm:$0xff]
  %v769 = vld [vmem:[%s1 + $0xe8] sm:$0xff]
  %v770 = vld [vmem:[%s1 + $0xf0] sm:$0xff]
  %v771 = vld [vmem:[%s1 + $0xf8] sm:$0xff]
  %v804 = vunpack.c.l.b16 %v740
  %v805 = vunpack.c.h.b16 %v740
  %v806 = vunpack.c.l.b16 %v741
  %v807 = vunpack.c.h.b16 %v741
  %v808 = vunpack.c.l.b16 %v742
  %v809 = vunpack.c.h.b16 %v742
  %v810 = vunpack.c.l.b16 %v743
  %v811 = vunpack.c.h.b16 %v743
  %v812 = vunpack.c.l.b16 %v744
  %v813 = vunpack.c.h.b16 %v744
  %v814 = vunpack.c.l.b16 %v745
  %v815 = vunpack.c.h.b16 %v745
  %v816 = vunpack.c.l.b16 %v746
  %v817 = vunpack.c.h.b16 %v746
  %v818 = vunpack.c.l.b16 %v747
  %v819 = vunpack.c.h.b16 %v747
  %v820 = vunpack.c.l.b16 %v748
  %v821 = vunpack.c.h.b16 %v748
  %v822 = vunpack.c.l.b16 %v749
  %v823 = vunpack.c.h.b16 %v749
  %v824 = vunpack.c.l.b16 %v750
  %v825 = vunpack.c.h.b16 %v750
  %v826 = vunpack.c.l.b16 %v751
  %v827 = vunpack.c.h.b16 %v751
  %v828 = vunpack.c.l.b16 %v752
  %v829 = vunpack.c.h.b16 %v752
  %v830 = vunpack.c.l.b16 %v753
  %v831 = vunpack.c.h.b16 %v753
  %v832 = vunpack.c.l.b16 %v754
  %v833 = vunpack.c.h.b16 %v754
  %v834 = vunpack.c.l.b16 %v755
  %v835 = vunpack.c.h.b16 %v755
  %v836 = vunpack.c.l.b16 %v756
  %v837 = vunpack.c.h.b16 %v756
  %v838 = vunpack.c.l.b16 %v757
  %v839 = vunpack.c.h.b16 %v757
  %v840 = vunpack.c.l.b16 %v758
  %v841 = vunpack.c.h.b16 %v758
  %v842 = vunpack.c.l.b16 %v759
  %v843 = vunpack.c.h.b16 %v759
  %v844 = vunpack.c.l.b16 %v760
  %v845 = vunpack.c.h.b16 %v760
  %v846 = vunpack.c.l.b16 %v761
  %v847 = vunpack.c.h.b16 %v761
  %v848 = vunpack.c.l.b16 %v762
  %v849 = vunpack.c.h.b16 %v762
  %v850 = vunpack.c.l.b16 %v763
  %v851 = vunpack.c.h.b16 %v763
  %v852 = vunpack.c.l.b16 %v764
  %v853 = vunpack.c.h.b16 %v764
  %v854 = vunpack.c.l.b16 %v765
  %v855 = vunpack.c.h.b16 %v765
  %v856 = vunpack.c.l.b16 %v766
  %v857 = vunpack.c.h.b16 %v766
  %v858 = vunpack.c.l.b16 %v767
  %v859 = vunpack.c.h.b16 %v767
  %v860 = vunpack.c.l.b16 %v768
  %v861 = vunpack.c.h.b16 %v768
  %v862 = vunpack.c.l.b16 %v769
  %v863 = vunpack.c.h.b16 %v769
  %v864 = vunpack.c.l.b16 %v770
  %v865 = vunpack.c.h.b16 %v770
  %v866 = vunpack.c.l.b16 %v771
  %v867 = vunpack.c.h.b16 %v771
  %v868 = vpack.c.b16 %v808, %v804
  %v869 = vpack.c.b16 %v809, %v805
  %v870 = vpack.c.b16 %v810, %v806
  %v871 = vpack.c.b16 %v811, %v807
  %v872 = vpack.c.b16 %v816, %v812
  %v873 = vpack.c.b16 %v817, %v813
  %v874 = vpack.c.b16 %v818, %v814
  %v875 = vpack.c.b16 %v819, %v815
  %v876 = vpack.c.b16 %v824, %v820
  %v877 = vpack.c.b16 %v825, %v821
  %v878 = vpack.c.b16 %v826, %v822
  %v879 = vpack.c.b16 %v827, %v823
  %v880 = vpack.c.b16 %v832, %v828
  %v881 = vpack.c.b16 %v833, %v829
  %v882 = vpack.c.b16 %v834, %v830
  %v883 = vpack.c.b16 %v835, %v831
  %v884 = vpack.c.b16 %v840, %v836
  %v885 = vpack.c.b16 %v841, %v837
  %v886 = vpack.c.b16 %v842, %v838
  %v887 = vpack.c.b16 %v843, %v839
  %v888 = vpack.c.b16 %v848, %v844
  %v889 = vpack.c.b16 %v849, %v845
  %v890 = vpack.c.b16 %v850, %v846
  %v891 = vpack.c.b16 %v851, %v847
  %v892 = vpack.c.b16 %v856, %v852
  %v893 = vpack.c.b16 %v857, %v853
  %v894 = vpack.c.b16 %v858, %v854
  %v895 = vpack.c.b16 %v859, %v855
  %v896 = vpack.c.b16 %v864, %v860
  %v897 = vpack.c.b16 %v865, %v861
  %v898 = vpack.c.b16 %v866, %v862
  %v899 = vpack.c.b16 %v867, %v863
  %932 = vmatprep.subr.bf16.mxu0 %v869
  %933 = vmatpush1.bf16.msra.mxu0 %v868
  %934 = vmatprep.subr.bf16.mxu0 %v873
  %935 = vmatpush1.bf16.msra.mxu0 %v872
  %936 = vmatprep.subr.bf16.mxu0 %v877
  %937 = vmatpush1.bf16.msra.mxu0 %v876
  %938 = vmatprep.subr.bf16.mxu0 %v881
  %939 = vmatpush1.bf16.msra.mxu0 %v880
  %940 = vmatprep.subr.bf16.mxu0 %v885
  %941 = vmatpush1.bf16.msra.mxu0 %v884
  %942 = vmatprep.subr.bf16.mxu0 %v889
  %943 = vmatpush1.bf16.msra.mxu0 %v888
  %944 = vmatprep.subr.bf16.mxu0 %v893
  %945 = vmatpush1.bf16.msra.mxu0 %v892
  %946 = vmatprep.subr.bf16.mxu0 %v897
  %947 = vmatpush1.bf16.msra.mxu0 %v896
  %948 = vmatprep.subr.bf16.mxu0 0
  %949 = vmatpush1.bf16.msra.mxu0 0
  %950 = vmatprep.subr.bf16.mxu0 0
  %951 = vmatpush1.bf16.msra.mxu0 0
  %952 = vmatprep.subr.bf16.mxu0 0
  %953 = vmatpush1.bf16.msra.mxu0 0
  %954 = vmatprep.subr.bf16.mxu0 0
  %955 = vmatpush1.bf16.msra.mxu0 0
  %956 = vmatprep.subr.bf16.mxu0 0
  %957 = vmatpush1.bf16.msra.mxu0 0
  %958 = vmatprep.subr.bf16.mxu0 0
  %959 = vmatpush1.bf16.msra.mxu0 0
  %960 = vmatprep.subr.bf16.mxu0 0
  %961 = vmatpush1.bf16.msra.mxu0 0
  %962 = vmatprep.subr.bf16.mxu0 0
  %963 = vmatpush1.bf16.msra.mxu0 0
  %964 = vmatprep.mubr.bf16.mxu0 0
  %965 = vmatmul.mubr.bf16.gmra.mrb[0].mxu0 %v720
  %v966 = vpop.f32.mrb[0].mxu0
  %v967 = vadd.f32 0.0, %v966
  %v968 = vpop.f32.mrb[0].mxu0
  %v969 = vadd.f32 0.0, %v968
  %v970 = vpop.f32.mrb[0].mxu0
  %v971 = vadd.f32 0.0, %v970
  %v972 = vpop.f32.mrb[0].mxu0
  %v973 = vadd.f32 0.0, %v972
  %974 = vdwg.mxu0
  %975 = vmatprep.subr.bf16.mxu0 %v871
  %976 = vmatpush1.bf16.msra.mxu0 %v870
  %977 = vmatprep.subr.bf16.mxu0 %v875
  %978 = vmatpush1.bf16.msra.mxu0 %v874
  %979 = vmatprep.subr.bf16.mxu0 %v879
  %980 = vmatpush1.bf16.msra.mxu0 %v878
  %981 = vmatprep.subr.bf16.mxu0 %v883
  %982 = vmatpush1.bf16.msra.mxu0 %v882
  %983 = vmatprep.subr.bf16.mxu0 %v887
  %984 = vmatpush1.bf16.msra.mxu0 %v886
  %985 = vmatprep.subr.bf16.mxu0 %v891
  %986 = vmatpush1.bf16.msra.mxu0 %v890
  %987 = vmatprep.subr.bf16.mxu0 %v895
  %988 = vmatpush1.bf16.msra.mxu0 %v894
  %989 = vmatprep.subr.bf16.mxu0 %v899
  %990 = vmatpush1.bf16.msra.mxu0 %v898
  %991 = vmatprep.subr.bf16.mxu0 0
  %992 = vmatpush1.bf16.msra.mxu0 0
  %993 = vmatprep.subr.bf16.mxu0 0
  %994 = vmatpush1.bf16.msra.mxu0 0
  %995 = vmatprep.subr.bf16.mxu0 0
  %996 = vmatpush1.bf16.msra.mxu0 0
  %997 = vmatprep.subr.bf16.mxu0 0
  %998 = vmatpush1.bf16.msra.mxu0 0
  %999 = vmatprep.subr.bf16.mxu0 0
  %1000 = vmatpush1.bf16.msra.mxu0 0
  %1001 = vmatprep.subr.bf16.mxu0 0
  %1002 = vmatpush1.bf16.msra.mxu0 0
  %1003 = vmatprep.subr.bf16.mxu0 0
  %1004 = vmatpush1.bf16.msra.mxu0 0
  %1005 = vmatprep.subr.bf16.mxu0 0
  %1006 = vmatpush1.bf16.msra.mxu0 0
  %1007 = vmatprep.mubr.bf16.mxu0 0
  %1008 = vmatmul.mubr.bf16.gmra.mrb[0].mxu0 %v720
  %v1009 = vpop.f32.mrb[0].mxu0
  %v1010 = vadd.f32 0.0, %v1009
  %v1011 = vpop.f32.mrb[0].mxu0
  %v1012 = vadd.f32 0.0, %v1011
  %v1013 = vpop.f32.mrb[0].mxu0
  %v1014 = vadd.f32 0.0, %v1013
  %v1015 = vpop.f32.mrb[0].mxu0
  %v1016 = vadd.f32 0.0, %v1015
  %1017 = vdwg.mxu0
  %v1018 = vadd.f32 %v732, %v967
  %v1019 = vadd.f32 %v733, %v969
  %v1020 = vadd.f32 %v734, %v1010
  %v1021 = vadd.f32 %v735, %v1012
  %v1022 = vadd.f32 %v736, %v971
  %v1023 = vadd.f32 %v737, %v973
  %v1024 = vadd.f32 %v738, %v1014
  %v1025 = vadd.f32 %v739, %v1016
  %v1026 = vxor.u32 %v1018, 2147483648
  %v1027 = vxor.u32 %v1022, 2147483648
  %v1028 = vmul.f32 %v1026, 1.442695
  %v1029 = vpow.pop %v1028
  %v1030 = vmul.f32 %v1027, 1.442695
  %v1031 = vpow.pop %v1030
  %v1032 = vadd.f32 %v1029, 1.0
  %v1033 = vadd.f32 %v1031, 1.0
  %v1034 = vrcp.pop %v1032
  %v1035 = vmul.f32 1.0, %v1034
  %v1036 = vrcp.pop %v1033
  %v1037 = vmul.f32 1.0, %v1036
  %v1038 = vxor.u32 %v1019, 2147483648
  %v1039 = vxor.u32 %v1023, 2147483648
  %v1040 = vmul.f32 %v1038, 1.442695
  %v1041 = vpow.pop %v1040
  %v1042 = vmul.f32 %v1039, 1.442695
  %v1043 = vpow.pop %v1042
  %v1044 = vadd.f32 %v1041, 1.0
  %v1045 = vadd.f32 %v1043, 1.0
  %v1046 = vrcp.pop %v1044
  %v1047 = vmul.f32 1.0, %v1046
  %v1048 = vrcp.pop %v1045
  %v1049 = vmul.f32 1.0, %v1048
  %v1050 = vtanh.pop %v1020
  %v1051 = vtanh.pop %v1024
  %v1052 = vxor.u32 %v1021, 2147483648
  %v1053 = vxor.u32 %v1025, 2147483648
  %v1054 = vmul.f32 %v1052, 1.442695
  %v1055 = vpow.pop %v1054
  %v1056 = vmul.f32 %v1053, 1.442695
  %v1057 = vpow.pop %v1056
  %v1058 = vadd.f32 %v1055, 1.0
  %v1059 = vadd.f32 %v1057, 1.0
  %v1060 = vrcp.pop %v1058
  %v1061 = vmul.f32 1.0, %v1060
  %v1062 = vrcp.pop %v1059
  %v1063 = vmul.f32 1.0, %v1062
  %v1064 = vmul.f32 %v1047, %v714
  %v1065 = vmul.f32 %v1049, %v715
  %v1066 = vmul.f32 %v1035, %v1050
  %v1067 = vmul.f32 %v1037, %v1051
  %v1068 = vadd.f32 %v1064, %v1066
  %v1069 = vadd.f32 %v1065, %v1067
  %v1070 = vtanh.pop %v1068
  %v1071 = vtanh.pop %v1069
  %v1072 = vmul.f32 %v1061, %v1070
  %v1073 = vmul.f32 %v1063, %v1071
  %v1074 = vpack.c.bf16 %v1073, %v1072
  %v1076 = vunpack.c.l.b16 %v1074
  %v1077 = vunpack.c.h.b16 %v1074
  %v1078 = vpack.c.b16 %v1076, %v1076
  %v1079 = vpack.c.b16 %v1077, %v1077
  %s1082 = scalar_lea.vmem %s2, 16
  %1083 = vst [vmem:[%s1082] sm:$0xf] %v1078
  %1084 = vst [vmem:[%s1082 + $0x4] sm:$0xf] %v1079
  %s1085 = scalar_lea.vmem %s0, 192
  %v1086 = vld [vmem:[%s1085] sm:$0xff]
  %v1087 = vld [vmem:[%s1085 + $0x8] sm:$0xff]
  %v1088 = vld [vmem:[%s1085 + $0x10] sm:$0xff]
  %v1089 = vld [vmem:[%s1085 + $0x18] sm:$0xff]
  %v1090 = vld [vmem:[%s1085 + $0x20] sm:$0xff]
  %v1091 = vld [vmem:[%s1085 + $0x28] sm:$0xff]
  %v1092 = vld [vmem:[%s1085 + $0x30] sm:$0xff]
  %v1093 = vld [vmem:[%s1085 + $0x38] sm:$0xff]
  %v1094 = vld [vmem:[%s1] sm:$0xff]
  %v1095 = vld [vmem:[%s1 + $0x8] sm:$0xff]
  %v1096 = vld [vmem:[%s1 + $0x10] sm:$0xff]
  %v1097 = vld [vmem:[%s1 + $0x18] sm:$0xff]
  %v1098 = vld [vmem:[%s1 + $0x20] sm:$0xff]
  %v1099 = vld [vmem:[%s1 + $0x28] sm:$0xff]
  %v1100 = vld [vmem:[%s1 + $0x30] sm:$0xff]
  %v1101 = vld [vmem:[%s1 + $0x38] sm:$0xff]
  %v1102 = vld [vmem:[%s1 + $0x40] sm:$0xff]
  %v1103 = vld [vmem:[%s1 + $0x48] sm:$0xff]
  %v1104 = vld [vmem:[%s1 + $0x50] sm:$0xff]
  %v1105 = vld [vmem:[%s1 + $0x58] sm:$0xff]
  %v1106 = vld [vmem:[%s1 + $0x60] sm:$0xff]
  %v1107 = vld [vmem:[%s1 + $0x68] sm:$0xff]
  %v1108 = vld [vmem:[%s1 + $0x70] sm:$0xff]
  %v1109 = vld [vmem:[%s1 + $0x78] sm:$0xff]
  %v1110 = vld [vmem:[%s1 + $0x80] sm:$0xff]
  %v1111 = vld [vmem:[%s1 + $0x88] sm:$0xff]
  %v1112 = vld [vmem:[%s1 + $0x90] sm:$0xff]
  %v1113 = vld [vmem:[%s1 + $0x98] sm:$0xff]
  %v1114 = vld [vmem:[%s1 + $0xa0] sm:$0xff]
  %v1115 = vld [vmem:[%s1 + $0xa8] sm:$0xff]
  %v1116 = vld [vmem:[%s1 + $0xb0] sm:$0xff]
  %v1117 = vld [vmem:[%s1 + $0xb8] sm:$0xff]
  %v1118 = vld [vmem:[%s1 + $0xc0] sm:$0xff]
  %v1119 = vld [vmem:[%s1 + $0xc8] sm:$0xff]
  %v1120 = vld [vmem:[%s1 + $0xd0] sm:$0xff]
  %v1121 = vld [vmem:[%s1 + $0xd8] sm:$0xff]
  %v1122 = vld [vmem:[%s1 + $0xe0] sm:$0xff]
  %v1123 = vld [vmem:[%s1 + $0xe8] sm:$0xff]
  %v1124 = vld [vmem:[%s1 + $0xf0] sm:$0xff]
  %v1125 = vld [vmem:[%s1 + $0xf8] sm:$0xff]
  %v1158 = vunpack.c.l.b16 %v1094
  %v1159 = vunpack.c.h.b16 %v1094
  %v1160 = vunpack.c.l.b16 %v1095
  %v1161 = vunpack.c.h.b16 %v1095
  %v1162 = vunpack.c.l.b16 %v1096
  %v1163 = vunpack.c.h.b16 %v1096
  %v1164 = vunpack.c.l.b16 %v1097
  %v1165 = vunpack.c.h.b16 %v1097
  %v1166 = vunpack.c.l.b16 %v1098
  %v1167 = vunpack.c.h.b16 %v1098
  %v1168 = vunpack.c.l.b16 %v1099
  %v1169 = vunpack.c.h.b16 %v1099
  %v1170 = vunpack.c.l.b16 %v1100
  %v1171 = vunpack.c.h.b16 %v1100
  %v1172 = vunpack.c.l.b16 %v1101
  %v1173 = vunpack.c.h.b16 %v1101
  %v1174 = vunpack.c.l.b16 %v1102
  %v1175 = vunpack.c.h.b16 %v1102
  %v1176 = vunpack.c.l.b16 %v1103
  %v1177 = vunpack.c.h.b16 %v1103
  %v1178 = vunpack.c.l.b16 %v1104
  %v1179 = vunpack.c.h.b16 %v1104
  %v1180 = vunpack.c.l.b16 %v1105
  %v1181 = vunpack.c.h.b16 %v1105
  %v1182 = vunpack.c.l.b16 %v1106
  %v1183 = vunpack.c.h.b16 %v1106
  %v1184 = vunpack.c.l.b16 %v1107
  %v1185 = vunpack.c.h.b16 %v1107
  %v1186 = vunpack.c.l.b16 %v1108
  %v1187 = vunpack.c.h.b16 %v1108
  %v1188 = vunpack.c.l.b16 %v1109
  %v1189 = vunpack.c.h.b16 %v1109
  %v1190 = vunpack.c.l.b16 %v1110
  %v1191 = vunpack.c.h.b16 %v1110
  %v1192 = vunpack.c.l.b16 %v1111
  %v1193 = vunpack.c.h.b16 %v1111
  %v1194 = vunpack.c.l.b16 %v1112
  %v1195 = vunpack.c.h.b16 %v1112
  %v1196 = vunpack.c.l.b16 %v1113
  %v1197 = vunpack.c.h.b16 %v1113
  %v1198 = vunpack.c.l.b16 %v1114
  %v1199 = vunpack.c.h.b16 %v1114
  %v1200 = vunpack.c.l.b16 %v1115
  %v1201 = vunpack.c.h.b16 %v1115
  %v1202 = vunpack.c.l.b16 %v1116
  %v1203 = vunpack.c.h.b16 %v1116
  %v1204 = vunpack.c.l.b16 %v1117
  %v1205 = vunpack.c.h.b16 %v1117
  %v1206 = vunpack.c.l.b16 %v1118
  %v1207 = vunpack.c.h.b16 %v1118
  %v1208 = vunpack.c.l.b16 %v1119
  %v1209 = vunpack.c.h.b16 %v1119
  %v1210 = vunpack.c.l.b16 %v1120
  %v1211 = vunpack.c.h.b16 %v1120
  %v1212 = vunpack.c.l.b16 %v1121
  %v1213 = vunpack.c.h.b16 %v1121
  %v1214 = vunpack.c.l.b16 %v1122
  %v1215 = vunpack.c.h.b16 %v1122
  %v1216 = vunpack.c.l.b16 %v1123
  %v1217 = vunpack.c.h.b16 %v1123
  %v1218 = vunpack.c.l.b16 %v1124
  %v1219 = vunpack.c.h.b16 %v1124
  %v1220 = vunpack.c.l.b16 %v1125
  %v1221 = vunpack.c.h.b16 %v1125
  %v1222 = vpack.c.b16 %v1162, %v1158
  %v1223 = vpack.c.b16 %v1163, %v1159
  %v1224 = vpack.c.b16 %v1164, %v1160
  %v1225 = vpack.c.b16 %v1165, %v1161
  %v1226 = vpack.c.b16 %v1170, %v1166
  %v1227 = vpack.c.b16 %v1171, %v1167
  %v1228 = vpack.c.b16 %v1172, %v1168
  %v1229 = vpack.c.b16 %v1173, %v1169
  %v1230 = vpack.c.b16 %v1178, %v1174
  %v1231 = vpack.c.b16 %v1179, %v1175
  %v1232 = vpack.c.b16 %v1180, %v1176
  %v1233 = vpack.c.b16 %v1181, %v1177
  %v1234 = vpack.c.b16 %v1186, %v1182
  %v1235 = vpack.c.b16 %v1187, %v1183
  %v1236 = vpack.c.b16 %v1188, %v1184
  %v1237 = vpack.c.b16 %v1189, %v1185
  %v1238 = vpack.c.b16 %v1194, %v1190
  %v1239 = vpack.c.b16 %v1195, %v1191
  %v1240 = vpack.c.b16 %v1196, %v1192
  %v1241 = vpack.c.b16 %v1197, %v1193
  %v1242 = vpack.c.b16 %v1202, %v1198
  %v1243 = vpack.c.b16 %v1203, %v1199
  %v1244 = vpack.c.b16 %v1204, %v1200
  %v1245 = vpack.c.b16 %v1205, %v1201
  %v1246 = vpack.c.b16 %v1210, %v1206
  %v1247 = vpack.c.b16 %v1211, %v1207
  %v1248 = vpack.c.b16 %v1212, %v1208
  %v1249 = vpack.c.b16 %v1213, %v1209
  %v1250 = vpack.c.b16 %v1218, %v1214
  %v1251 = vpack.c.b16 %v1219, %v1215
  %v1252 = vpack.c.b16 %v1220, %v1216
  %v1253 = vpack.c.b16 %v1221, %v1217
  %1286 = vmatprep.subr.bf16.mxu0 %v1223
  %1287 = vmatpush1.bf16.msra.mxu0 %v1222
  %1288 = vmatprep.subr.bf16.mxu0 %v1227
  %1289 = vmatpush1.bf16.msra.mxu0 %v1226
  %1290 = vmatprep.subr.bf16.mxu0 %v1231
  %1291 = vmatpush1.bf16.msra.mxu0 %v1230
  %1292 = vmatprep.subr.bf16.mxu0 %v1235
  %1293 = vmatpush1.bf16.msra.mxu0 %v1234
  %1294 = vmatprep.subr.bf16.mxu0 %v1239
  %1295 = vmatpush1.bf16.msra.mxu0 %v1238
  %1296 = vmatprep.subr.bf16.mxu0 %v1243
  %1297 = vmatpush1.bf16.msra.mxu0 %v1242
  %1298 = vmatprep.subr.bf16.mxu0 %v1247
  %1299 = vmatpush1.bf16.msra.mxu0 %v1246
  %1300 = vmatprep.subr.bf16.mxu0 %v1251
  %1301 = vmatpush1.bf16.msra.mxu0 %v1250
  %1302 = vmatprep.subr.bf16.mxu0 0
  %1303 = vmatpush1.bf16.msra.mxu0 0
  %1304 = vmatprep.subr.bf16.mxu0 0
  %1305 = vmatpush1.bf16.msra.mxu0 0
  %1306 = vmatprep.subr.bf16.mxu0 0
  %1307 = vmatpush1.bf16.msra.mxu0 0
  %1308 = vmatprep.subr.bf16.mxu0 0
  %1309 = vmatpush1.bf16.msra.mxu0 0
  %1310 = vmatprep.subr.bf16.mxu0 0
  %1311 = vmatpush1.bf16.msra.mxu0 0
  %1312 = vmatprep.subr.bf16.mxu0 0
  %1313 = vmatpush1.bf16.msra.mxu0 0
  %1314 = vmatprep.subr.bf16.mxu0 0
  %1315 = vmatpush1.bf16.msra.mxu0 0
  %1316 = vmatprep.subr.bf16.mxu0 0
  %1317 = vmatpush1.bf16.msra.mxu0 0
  %1318 = vmatprep.mubr.bf16.mxu0 0
  %1319 = vmatmul.mubr.bf16.gmra.mrb[0].mxu0 %v1074
  %v1320 = vpop.f32.mrb[0].mxu0
  %v1321 = vadd.f32 0.0, %v1320
  %v1322 = vpop.f32.mrb[0].mxu0
  %v1323 = vadd.f32 0.0, %v1322
  %v1324 = vpop.f32.mrb[0].mxu0
  %v1325 = vadd.f32 0.0, %v1324
  %v1326 = vpop.f32.mrb[0].mxu0
  %v1327 = vadd.f32 0.0, %v1326
  %1328 = vdwg.mxu0
  %1329 = vmatprep.subr.bf16.mxu0 %v1225
  %1330 = vmatpush1.bf16.msra.mxu0 %v1224
  %1331 = vmatprep.subr.bf16.mxu0 %v1229
  %1332 = vmatpush1.bf16.msra.mxu0 %v1228
  %1333 = vmatprep.subr.bf16.mxu0 %v1233
  %1334 = vmatpush1.bf16.msra.mxu0 %v1232
  %1335 = vmatprep.subr.bf16.mxu0 %v1237
  %1336 = vmatpush1.bf16.msra.mxu0 %v1236
  %1337 = vmatprep.subr.bf16.mxu0 %v1241
  %1338 = vmatpush1.bf16.msra.mxu0 %v1240
  %1339 = vmatprep.subr.bf16.mxu0 %v1245
  %1340 = vmatpush1.bf16.msra.mxu0 %v1244
  %1341 = vmatprep.subr.bf16.mxu0 %v1249
  %1342 = vmatpush1.bf16.msra.mxu0 %v1248
  %1343 = vmatprep.subr.bf16.mxu0 %v1253
  %1344 = vmatpush1.bf16.msra.mxu0 %v1252
  %1345 = vmatprep.subr.bf16.mxu0 0
  %1346 = vmatpush1.bf16.msra.mxu0 0
  %1347 = vmatprep.subr.bf16.mxu0 0
  %1348 = vmatpush1.bf16.msra.mxu0 0
  %1349 = vmatprep.subr.bf16.mxu0 0
  %1350 = vmatpush1.bf16.msra.mxu0 0
  %1351 = vmatprep.subr.bf16.mxu0 0
  %1352 = vmatpush1.bf16.msra.mxu0 0
  %1353 = vmatprep.subr.bf16.mxu0 0
  %1354 = vmatpush1.bf16.msra.mxu0 0
  %1355 = vmatprep.subr.bf16.mxu0 0
  %1356 = vmatpush1.bf16.msra.mxu0 0
  %1357 = vmatprep.subr.bf16.mxu0 0
  %1358 = vmatpush1.bf16.msra.mxu0 0
  %1359 = vmatprep.subr.bf16.mxu0 0
  %1360 = vmatpush1.bf16.msra.mxu0 0
  %1361 = vmatprep.mubr.bf16.mxu0 0
  %1362 = vmatmul.mubr.bf16.gmra.mrb[0].mxu0 %v1074
  %v1363 = vpop.f32.mrb[0].mxu0
  %v1364 = vadd.f32 0.0, %v1363
  %v1365 = vpop.f32.mrb[0].mxu0
  %v1366 = vadd.f32 0.0, %v1365
  %v1367 = vpop.f32.mrb[0].mxu0
  %v1368 = vadd.f32 0.0, %v1367
  %v1369 = vpop.f32.mrb[0].mxu0
  %v1370 = vadd.f32 0.0, %v1369
  %1371 = vdwg.mxu0
  %v1372 = vadd.f32 %v1086, %v1321
  %v1373 = vadd.f32 %v1087, %v1323
  %v1374 = vadd.f32 %v1088, %v1364
  %v1375 = vadd.f32 %v1089, %v1366
  %v1376 = vadd.f32 %v1090, %v1325
  %v1377 = vadd.f32 %v1091, %v1327
  %v1378 = vadd.f32 %v1092, %v1368
  %v1379 = vadd.f32 %v1093, %v1370
  %v1380 = vxor.u32 %v1372, 2147483648
  %v1381 = vxor.u32 %v1376, 2147483648
  %v1382 = vmul.f32 %v1380, 1.442695
  %v1383 = vpow.pop %v1382
  %v1384 = vmul.f32 %v1381, 1.442695
  %v1385 = vpow.pop %v1384
  %v1386 = vadd.f32 %v1383, 1.0
  %v1387 = vadd.f32 %v1385, 1.0
  %v1388 = vrcp.pop %v1386
  %v1389 = vmul.f32 1.0, %v1388
  %v1390 = vrcp.pop %v1387
  %v1391 = vmul.f32 1.0, %v1390
  %v1392 = vxor.u32 %v1373, 2147483648
  %v1393 = vxor.u32 %v1377, 2147483648
  %v1394 = vmul.f32 %v1392, 1.442695
  %v1395 = vpow.pop %v1394
  %v1396 = vmul.f32 %v1393, 1.442695
  %v1397 = vpow.pop %v1396
  %v1398 = vadd.f32 %v1395, 1.0
  %v1399 = vadd.f32 %v1397, 1.0
  %v1400 = vrcp.pop %v1398
  %v1401 = vmul.f32 1.0, %v1400
  %v1402 = vrcp.pop %v1399
  %v1403 = vmul.f32 1.0, %v1402
  %v1404 = vtanh.pop %v1374
  %v1405 = vtanh.pop %v1378
  %v1406 = vxor.u32 %v1375, 2147483648
  %v1407 = vxor.u32 %v1379, 2147483648
  %v1408 = vmul.f32 %v1406, 1.442695
  %v1409 = vpow.pop %v1408
  %v1410 = vmul.f32 %v1407, 1.442695
  %v1411 = vpow.pop %v1410
  %v1412 = vadd.f32 %v1409, 1.0
  %v1413 = vadd.f32 %v1411, 1.0
  %v1414 = vrcp.pop %v1412
  %v1415 = vmul.f32 1.0, %v1414
  %v1416 = vrcp.pop %v1413
  %v1417 = vmul.f32 1.0, %v1416
  %v1418 = vmul.f32 %v1401, %v1068
  %v1419 = vmul.f32 %v1403, %v1069
  %v1420 = vmul.f32 %v1389, %v1404
  %v1421 = vmul.f32 %v1391, %v1405
  %v1422 = vadd.f32 %v1418, %v1420
  %v1423 = vadd.f32 %v1419, %v1421
  %v1424 = vtanh.pop %v1422
  %v1425 = vtanh.pop %v1423
  %v1426 = vmul.f32 %v1415, %v1424
  %v1427 = vmul.f32 %v1417, %v1425
  %v1428 = vpack.c.bf16 %v1427, %v1426
  %v1430 = vunpack.c.l.b16 %v1428
  %v1431 = vunpack.c.h.b16 %v1428
  %v1432 = vpack.c.b16 %v1430, %v1430
  %v1433 = vpack.c.b16 %v1431, %v1431
  %s1436 = scalar_lea.vmem %s2, 24
  %1437 = vst [vmem:[%s1436] sm:$0xf] %v1432
  %1438 = vst [vmem:[%s1436 + $0x4] sm:$0xf] %v1433
  %s1439 = scalar_lea.vmem %s0, 256
  %v1440 = vld [vmem:[%s1439] sm:$0xff]
  %v1441 = vld [vmem:[%s1439 + $0x8] sm:$0xff]
  %v1442 = vld [vmem:[%s1439 + $0x10] sm:$0xff]
  %v1443 = vld [vmem:[%s1439 + $0x18] sm:$0xff]
  %v1444 = vld [vmem:[%s1439 + $0x20] sm:$0xff]
  %v1445 = vld [vmem:[%s1439 + $0x28] sm:$0xff]
  %v1446 = vld [vmem:[%s1439 + $0x30] sm:$0xff]
  %v1447 = vld [vmem:[%s1439 + $0x38] sm:$0xff]
  %v1448 = vld [vmem:[%s1] sm:$0xff]
  %v1449 = vld [vmem:[%s1 + $0x8] sm:$0xff]
  %v1450 = vld [vmem:[%s1 + $0x10] sm:$0xff]
  %v1451 = vld [vmem:[%s1 + $0x18] sm:$0xff]
  %v1452 = vld [vmem:[%s1 + $0x20] sm:$0xff]
  %v1453 = vld [vmem:[%s1 + $0x28] sm:$0xff]
  %v1454 = vld [vmem:[%s1 + $0x30] sm:$0xff]
  %v1455 = vld [vmem:[%s1 + $0x38] sm:$0xff]
  %v1456 = vld [vmem:[%s1 + $0x40] sm:$0xff]
  %v1457 = vld [vmem:[%s1 + $0x48] sm:$0xff]
  %v1458 = vld [vmem:[%s1 + $0x50] sm:$0xff]
  %v1459 = vld [vmem:[%s1 + $0x58] sm:$0xff]
  %v1460 = vld [vmem:[%s1 + $0x60] sm:$0xff]
  %v1461 = vld [vmem:[%s1 + $0x68] sm:$0xff]
  %v1462 = vld [vmem:[%s1 + $0x70] sm:$0xff]
  %v1463 = vld [vmem:[%s1 + $0x78] sm:$0xff]
  %v1464 = vld [vmem:[%s1 + $0x80] sm:$0xff]
  %v1465 = vld [vmem:[%s1 + $0x88] sm:$0xff]
  %v1466 = vld [vmem:[%s1 + $0x90] sm:$0xff]
  %v1467 = vld [vmem:[%s1 + $0x98] sm:$0xff]
  %v1468 = vld [vmem:[%s1 + $0xa0] sm:$0xff]
  %v1469 = vld [vmem:[%s1 + $0xa8] sm:$0xff]
  %v1470 = vld [vmem:[%s1 + $0xb0] sm:$0xff]
  %v1471 = vld [vmem:[%s1 + $0xb8] sm:$0xff]
  %v1472 = vld [vmem:[%s1 + $0xc0] sm:$0xff]
  %v1473 = vld [vmem:[%s1 + $0xc8] sm:$0xff]
  %v1474 = vld [vmem:[%s1 + $0xd0] sm:$0xff]
  %v1475 = vld [vmem:[%s1 + $0xd8] sm:$0xff]
  %v1476 = vld [vmem:[%s1 + $0xe0] sm:$0xff]
  %v1477 = vld [vmem:[%s1 + $0xe8] sm:$0xff]
  %v1478 = vld [vmem:[%s1 + $0xf0] sm:$0xff]
  %v1479 = vld [vmem:[%s1 + $0xf8] sm:$0xff]
  %v1512 = vunpack.c.l.b16 %v1448
  %v1513 = vunpack.c.h.b16 %v1448
  %v1514 = vunpack.c.l.b16 %v1449
  %v1515 = vunpack.c.h.b16 %v1449
  %v1516 = vunpack.c.l.b16 %v1450
  %v1517 = vunpack.c.h.b16 %v1450
  %v1518 = vunpack.c.l.b16 %v1451
  %v1519 = vunpack.c.h.b16 %v1451
  %v1520 = vunpack.c.l.b16 %v1452
  %v1521 = vunpack.c.h.b16 %v1452
  %v1522 = vunpack.c.l.b16 %v1453
  %v1523 = vunpack.c.h.b16 %v1453
  %v1524 = vunpack.c.l.b16 %v1454
  %v1525 = vunpack.c.h.b16 %v1454
  %v1526 = vunpack.c.l.b16 %v1455
  %v1527 = vunpack.c.h.b16 %v1455
  %v1528 = vunpack.c.l.b16 %v1456
  %v1529 = vunpack.c.h.b16 %v1456
  %v1530 = vunpack.c.l.b16 %v1457
  %v1531 = vunpack.c.h.b16 %v1457
  %v1532 = vunpack.c.l.b16 %v1458
  %v1533 = vunpack.c.h.b16 %v1458
  %v1534 = vunpack.c.l.b16 %v1459
  %v1535 = vunpack.c.h.b16 %v1459
  %v1536 = vunpack.c.l.b16 %v1460
  %v1537 = vunpack.c.h.b16 %v1460
  %v1538 = vunpack.c.l.b16 %v1461
  %v1539 = vunpack.c.h.b16 %v1461
  %v1540 = vunpack.c.l.b16 %v1462
  %v1541 = vunpack.c.h.b16 %v1462
  %v1542 = vunpack.c.l.b16 %v1463
  %v1543 = vunpack.c.h.b16 %v1463
  %v1544 = vunpack.c.l.b16 %v1464
  %v1545 = vunpack.c.h.b16 %v1464
  %v1546 = vunpack.c.l.b16 %v1465
  %v1547 = vunpack.c.h.b16 %v1465
  %v1548 = vunpack.c.l.b16 %v1466
  %v1549 = vunpack.c.h.b16 %v1466
  %v1550 = vunpack.c.l.b16 %v1467
  %v1551 = vunpack.c.h.b16 %v1467
  %v1552 = vunpack.c.l.b16 %v1468
  %v1553 = vunpack.c.h.b16 %v1468
  %v1554 = vunpack.c.l.b16 %v1469
  %v1555 = vunpack.c.h.b16 %v1469
  %v1556 = vunpack.c.l.b16 %v1470
  %v1557 = vunpack.c.h.b16 %v1470
  %v1558 = vunpack.c.l.b16 %v1471
  %v1559 = vunpack.c.h.b16 %v1471
  %v1560 = vunpack.c.l.b16 %v1472
  %v1561 = vunpack.c.h.b16 %v1472
  %v1562 = vunpack.c.l.b16 %v1473
  %v1563 = vunpack.c.h.b16 %v1473
  %v1564 = vunpack.c.l.b16 %v1474
  %v1565 = vunpack.c.h.b16 %v1474
  %v1566 = vunpack.c.l.b16 %v1475
  %v1567 = vunpack.c.h.b16 %v1475
  %v1568 = vunpack.c.l.b16 %v1476
  %v1569 = vunpack.c.h.b16 %v1476
  %v1570 = vunpack.c.l.b16 %v1477
  %v1571 = vunpack.c.h.b16 %v1477
  %v1572 = vunpack.c.l.b16 %v1478
  %v1573 = vunpack.c.h.b16 %v1478
  %v1574 = vunpack.c.l.b16 %v1479
  %v1575 = vunpack.c.h.b16 %v1479
  %v1576 = vpack.c.b16 %v1516, %v1512
  %v1577 = vpack.c.b16 %v1517, %v1513
  %v1578 = vpack.c.b16 %v1518, %v1514
  %v1579 = vpack.c.b16 %v1519, %v1515
  %v1580 = vpack.c.b16 %v1524, %v1520
  %v1581 = vpack.c.b16 %v1525, %v1521
  %v1582 = vpack.c.b16 %v1526, %v1522
  %v1583 = vpack.c.b16 %v1527, %v1523
  %v1584 = vpack.c.b16 %v1532, %v1528
  %v1585 = vpack.c.b16 %v1533, %v1529
  %v1586 = vpack.c.b16 %v1534, %v1530
  %v1587 = vpack.c.b16 %v1535, %v1531
  %v1588 = vpack.c.b16 %v1540, %v1536
  %v1589 = vpack.c.b16 %v1541, %v1537
  %v1590 = vpack.c.b16 %v1542, %v1538
  %v1591 = vpack.c.b16 %v1543, %v1539
  %v1592 = vpack.c.b16 %v1548, %v1544
  %v1593 = vpack.c.b16 %v1549, %v1545
  %v1594 = vpack.c.b16 %v1550, %v1546
  %v1595 = vpack.c.b16 %v1551, %v1547
  %v1596 = vpack.c.b16 %v1556, %v1552
  %v1597 = vpack.c.b16 %v1557, %v1553
  %v1598 = vpack.c.b16 %v1558, %v1554
  %v1599 = vpack.c.b16 %v1559, %v1555
  %v1600 = vpack.c.b16 %v1564, %v1560
  %v1601 = vpack.c.b16 %v1565, %v1561
  %v1602 = vpack.c.b16 %v1566, %v1562
  %v1603 = vpack.c.b16 %v1567, %v1563
  %v1604 = vpack.c.b16 %v1572, %v1568
  %v1605 = vpack.c.b16 %v1573, %v1569
  %v1606 = vpack.c.b16 %v1574, %v1570
  %v1607 = vpack.c.b16 %v1575, %v1571
  %1640 = vmatprep.subr.bf16.mxu0 %v1577
  %1641 = vmatpush1.bf16.msra.mxu0 %v1576
  %1642 = vmatprep.subr.bf16.mxu0 %v1581
  %1643 = vmatpush1.bf16.msra.mxu0 %v1580
  %1644 = vmatprep.subr.bf16.mxu0 %v1585
  %1645 = vmatpush1.bf16.msra.mxu0 %v1584
  %1646 = vmatprep.subr.bf16.mxu0 %v1589
  %1647 = vmatpush1.bf16.msra.mxu0 %v1588
  %1648 = vmatprep.subr.bf16.mxu0 %v1593
  %1649 = vmatpush1.bf16.msra.mxu0 %v1592
  %1650 = vmatprep.subr.bf16.mxu0 %v1597
  %1651 = vmatpush1.bf16.msra.mxu0 %v1596
  %1652 = vmatprep.subr.bf16.mxu0 %v1601
  %1653 = vmatpush1.bf16.msra.mxu0 %v1600
  %1654 = vmatprep.subr.bf16.mxu0 %v1605
  %1655 = vmatpush1.bf16.msra.mxu0 %v1604
  %1656 = vmatprep.subr.bf16.mxu0 0
  %1657 = vmatpush1.bf16.msra.mxu0 0
  %1658 = vmatprep.subr.bf16.mxu0 0
  %1659 = vmatpush1.bf16.msra.mxu0 0
  %1660 = vmatprep.subr.bf16.mxu0 0
  %1661 = vmatpush1.bf16.msra.mxu0 0
  %1662 = vmatprep.subr.bf16.mxu0 0
  %1663 = vmatpush1.bf16.msra.mxu0 0
  %1664 = vmatprep.subr.bf16.mxu0 0
  %1665 = vmatpush1.bf16.msra.mxu0 0
  %1666 = vmatprep.subr.bf16.mxu0 0
  %1667 = vmatpush1.bf16.msra.mxu0 0
  %1668 = vmatprep.subr.bf16.mxu0 0
  %1669 = vmatpush1.bf16.msra.mxu0 0
  %1670 = vmatprep.subr.bf16.mxu0 0
  %1671 = vmatpush1.bf16.msra.mxu0 0
  %1672 = vmatprep.mubr.bf16.mxu0 0
  %1673 = vmatmul.mubr.bf16.gmra.mrb[0].mxu0 %v1428
  %v1674 = vpop.f32.mrb[0].mxu0
  %v1675 = vadd.f32 0.0, %v1674
  %v1676 = vpop.f32.mrb[0].mxu0
  %v1677 = vadd.f32 0.0, %v1676
  %v1678 = vpop.f32.mrb[0].mxu0
  %v1679 = vadd.f32 0.0, %v1678
  %v1680 = vpop.f32.mrb[0].mxu0
  %v1681 = vadd.f32 0.0, %v1680
  %1682 = vdwg.mxu0
  %1683 = vmatprep.subr.bf16.mxu0 %v1579
  %1684 = vmatpush1.bf16.msra.mxu0 %v1578
  %1685 = vmatprep.subr.bf16.mxu0 %v1583
  %1686 = vmatpush1.bf16.msra.mxu0 %v1582
  %1687 = vmatprep.subr.bf16.mxu0 %v1587
  %1688 = vmatpush1.bf16.msra.mxu0 %v1586
  %1689 = vmatprep.subr.bf16.mxu0 %v1591
  %1690 = vmatpush1.bf16.msra.mxu0 %v1590
  %1691 = vmatprep.subr.bf16.mxu0 %v1595
  %1692 = vmatpush1.bf16.msra.mxu0 %v1594
  %1693 = vmatprep.subr.bf16.mxu0 %v1599
  %1694 = vmatpush1.bf16.msra.mxu0 %v1598
  %1695 = vmatprep.subr.bf16.mxu0 %v1603
  %1696 = vmatpush1.bf16.msra.mxu0 %v1602
  %1697 = vmatprep.subr.bf16.mxu0 %v1607
  %1698 = vmatpush1.bf16.msra.mxu0 %v1606
  %1699 = vmatprep.subr.bf16.mxu0 0
  %1700 = vmatpush1.bf16.msra.mxu0 0
  %1701 = vmatprep.subr.bf16.mxu0 0
  %1702 = vmatpush1.bf16.msra.mxu0 0
  %1703 = vmatprep.subr.bf16.mxu0 0
  %1704 = vmatpush1.bf16.msra.mxu0 0
  %1705 = vmatprep.subr.bf16.mxu0 0
  %1706 = vmatpush1.bf16.msra.mxu0 0
  %1707 = vmatprep.subr.bf16.mxu0 0
  %1708 = vmatpush1.bf16.msra.mxu0 0
  %1709 = vmatprep.subr.bf16.mxu0 0
  %1710 = vmatpush1.bf16.msra.mxu0 0
  %1711 = vmatprep.subr.bf16.mxu0 0
  %1712 = vmatpush1.bf16.msra.mxu0 0
  %1713 = vmatprep.subr.bf16.mxu0 0
  %1714 = vmatpush1.bf16.msra.mxu0 0
  %1715 = vmatprep.mubr.bf16.mxu0 0
  %1716 = vmatmul.mubr.bf16.gmra.mrb[0].mxu0 %v1428
  %v1717 = vpop.f32.mrb[0].mxu0
  %v1718 = vadd.f32 0.0, %v1717
  %v1719 = vpop.f32.mrb[0].mxu0
  %v1720 = vadd.f32 0.0, %v1719
  %v1721 = vpop.f32.mrb[0].mxu0
  %v1722 = vadd.f32 0.0, %v1721
  %v1723 = vpop.f32.mrb[0].mxu0
  %v1724 = vadd.f32 0.0, %v1723
  %1725 = vdwg.mxu0
  %v1726 = vadd.f32 %v1440, %v1675
  %v1727 = vadd.f32 %v1441, %v1677
  %v1728 = vadd.f32 %v1442, %v1718
  %v1729 = vadd.f32 %v1443, %v1720
  %v1730 = vadd.f32 %v1444, %v1679
  %v1731 = vadd.f32 %v1445, %v1681
  %v1732 = vadd.f32 %v1446, %v1722
  %v1733 = vadd.f32 %v1447, %v1724
  %v1734 = vxor.u32 %v1726, 2147483648
  %v1735 = vxor.u32 %v1730, 2147483648
  %v1736 = vmul.f32 %v1734, 1.442695
  %v1737 = vpow.pop %v1736
  %v1738 = vmul.f32 %v1735, 1.442695
  %v1739 = vpow.pop %v1738
  %v1740 = vadd.f32 %v1737, 1.0
  %v1741 = vadd.f32 %v1739, 1.0
  %v1742 = vrcp.pop %v1740
  %v1743 = vmul.f32 1.0, %v1742
  %v1744 = vrcp.pop %v1741
  %v1745 = vmul.f32 1.0, %v1744
  %v1746 = vxor.u32 %v1727, 2147483648
  %v1747 = vxor.u32 %v1731, 2147483648
  %v1748 = vmul.f32 %v1746, 1.442695
  %v1749 = vpow.pop %v1748
  %v1750 = vmul.f32 %v1747, 1.442695
  %v1751 = vpow.pop %v1750
  %v1752 = vadd.f32 %v1749, 1.0
  %v1753 = vadd.f32 %v1751, 1.0
  %v1754 = vrcp.pop %v1752
  %v1755 = vmul.f32 1.0, %v1754
  %v1756 = vrcp.pop %v1753
  %v1757 = vmul.f32 1.0, %v1756
  %v1758 = vtanh.pop %v1728
  %v1759 = vtanh.pop %v1732
  %v1760 = vxor.u32 %v1729, 2147483648
  %v1761 = vxor.u32 %v1733, 2147483648
  %v1762 = vmul.f32 %v1760, 1.442695
  %v1763 = vpow.pop %v1762
  %v1764 = vmul.f32 %v1761, 1.442695
  %v1765 = vpow.pop %v1764
  %v1766 = vadd.f32 %v1763, 1.0
  %v1767 = vadd.f32 %v1765, 1.0
  %v1768 = vrcp.pop %v1766
  %v1769 = vmul.f32 1.0, %v1768
  %v1770 = vrcp.pop %v1767
  %v1771 = vmul.f32 1.0, %v1770
  %v1772 = vmul.f32 %v1755, %v1422
  %v1773 = vmul.f32 %v1757, %v1423
  %v1774 = vmul.f32 %v1743, %v1758
  %v1775 = vmul.f32 %v1745, %v1759
  %v1776 = vadd.f32 %v1772, %v1774
  %v1777 = vadd.f32 %v1773, %v1775
  %v1778 = vtanh.pop %v1776
  %v1779 = vtanh.pop %v1777
  %v1780 = vmul.f32 %v1769, %v1778
  %v1781 = vmul.f32 %v1771, %v1779
  %v1782 = vpack.c.bf16 %v1781, %v1780
  %v1784 = vunpack.c.l.b16 %v1782
  %v1785 = vunpack.c.h.b16 %v1782
  %v1786 = vpack.c.b16 %v1784, %v1784
  %v1787 = vpack.c.b16 %v1785, %v1785
  %s1790 = scalar_lea.vmem %s2, 32
  %1791 = vst [vmem:[%s1790] sm:$0xf] %v1786
  %1792 = vst [vmem:[%s1790 + $0x4] sm:$0xf] %v1787
  %s1793 = scalar_lea.vmem %s0, 320
  %v1794 = vld [vmem:[%s1793] sm:$0xff]
  %v1795 = vld [vmem:[%s1793 + $0x8] sm:$0xff]
  %v1796 = vld [vmem:[%s1793 + $0x10] sm:$0xff]
  %v1797 = vld [vmem:[%s1793 + $0x18] sm:$0xff]
  %v1798 = vld [vmem:[%s1793 + $0x20] sm:$0xff]
  %v1799 = vld [vmem:[%s1793 + $0x28] sm:$0xff]
  %v1800 = vld [vmem:[%s1793 + $0x30] sm:$0xff]
  %v1801 = vld [vmem:[%s1793 + $0x38] sm:$0xff]
  %v1802 = vld [vmem:[%s1] sm:$0xff]
  %v1803 = vld [vmem:[%s1 + $0x8] sm:$0xff]
  %v1804 = vld [vmem:[%s1 + $0x10] sm:$0xff]
  %v1805 = vld [vmem:[%s1 + $0x18] sm:$0xff]
  %v1806 = vld [vmem:[%s1 + $0x20] sm:$0xff]
  %v1807 = vld [vmem:[%s1 + $0x28] sm:$0xff]
  %v1808 = vld [vmem:[%s1 + $0x30] sm:$0xff]
  %v1809 = vld [vmem:[%s1 + $0x38] sm:$0xff]
  %v1810 = vld [vmem:[%s1 + $0x40] sm:$0xff]
  %v1811 = vld [vmem:[%s1 + $0x48] sm:$0xff]
  %v1812 = vld [vmem:[%s1 + $0x50] sm:$0xff]
  %v1813 = vld [vmem:[%s1 + $0x58] sm:$0xff]
  %v1814 = vld [vmem:[%s1 + $0x60] sm:$0xff]
  %v1815 = vld [vmem:[%s1 + $0x68] sm:$0xff]
  %v1816 = vld [vmem:[%s1 + $0x70] sm:$0xff]
  %v1817 = vld [vmem:[%s1 + $0x78] sm:$0xff]
  %v1818 = vld [vmem:[%s1 + $0x80] sm:$0xff]
  %v1819 = vld [vmem:[%s1 + $0x88] sm:$0xff]
  %v1820 = vld [vmem:[%s1 + $0x90] sm:$0xff]
  %v1821 = vld [vmem:[%s1 + $0x98] sm:$0xff]
  %v1822 = vld [vmem:[%s1 + $0xa0] sm:$0xff]
  %v1823 = vld [vmem:[%s1 + $0xa8] sm:$0xff]
  %v1824 = vld [vmem:[%s1 + $0xb0] sm:$0xff]
  %v1825 = vld [vmem:[%s1 + $0xb8] sm:$0xff]
  %v1826 = vld [vmem:[%s1 + $0xc0] sm:$0xff]
  %v1827 = vld [vmem:[%s1 + $0xc8] sm:$0xff]
  %v1828 = vld [vmem:[%s1 + $0xd0] sm:$0xff]
  %v1829 = vld [vmem:[%s1 + $0xd8] sm:$0xff]
  %v1830 = vld [vmem:[%s1 + $0xe0] sm:$0xff]
  %v1831 = vld [vmem:[%s1 + $0xe8] sm:$0xff]
  %v1832 = vld [vmem:[%s1 + $0xf0] sm:$0xff]
  %v1833 = vld [vmem:[%s1 + $0xf8] sm:$0xff]
  %v1866 = vunpack.c.l.b16 %v1802
  %v1867 = vunpack.c.h.b16 %v1802
  %v1868 = vunpack.c.l.b16 %v1803
  %v1869 = vunpack.c.h.b16 %v1803
  %v1870 = vunpack.c.l.b16 %v1804
  %v1871 = vunpack.c.h.b16 %v1804
  %v1872 = vunpack.c.l.b16 %v1805
  %v1873 = vunpack.c.h.b16 %v1805
  %v1874 = vunpack.c.l.b16 %v1806
  %v1875 = vunpack.c.h.b16 %v1806
  %v1876 = vunpack.c.l.b16 %v1807
  %v1877 = vunpack.c.h.b16 %v1807
  %v1878 = vunpack.c.l.b16 %v1808
  %v1879 = vunpack.c.h.b16 %v1808
  %v1880 = vunpack.c.l.b16 %v1809
  %v1881 = vunpack.c.h.b16 %v1809
  %v1882 = vunpack.c.l.b16 %v1810
  %v1883 = vunpack.c.h.b16 %v1810
  %v1884 = vunpack.c.l.b16 %v1811
  %v1885 = vunpack.c.h.b16 %v1811
  %v1886 = vunpack.c.l.b16 %v1812
  %v1887 = vunpack.c.h.b16 %v1812
  %v1888 = vunpack.c.l.b16 %v1813
  %v1889 = vunpack.c.h.b16 %v1813
  %v1890 = vunpack.c.l.b16 %v1814
  %v1891 = vunpack.c.h.b16 %v1814
  %v1892 = vunpack.c.l.b16 %v1815
  %v1893 = vunpack.c.h.b16 %v1815
  %v1894 = vunpack.c.l.b16 %v1816
  %v1895 = vunpack.c.h.b16 %v1816
  %v1896 = vunpack.c.l.b16 %v1817
  %v1897 = vunpack.c.h.b16 %v1817
  %v1898 = vunpack.c.l.b16 %v1818
  %v1899 = vunpack.c.h.b16 %v1818
  %v1900 = vunpack.c.l.b16 %v1819
  %v1901 = vunpack.c.h.b16 %v1819
  %v1902 = vunpack.c.l.b16 %v1820
  %v1903 = vunpack.c.h.b16 %v1820
  %v1904 = vunpack.c.l.b16 %v1821
  %v1905 = vunpack.c.h.b16 %v1821
  %v1906 = vunpack.c.l.b16 %v1822
  %v1907 = vunpack.c.h.b16 %v1822
  %v1908 = vunpack.c.l.b16 %v1823
  %v1909 = vunpack.c.h.b16 %v1823
  %v1910 = vunpack.c.l.b16 %v1824
  %v1911 = vunpack.c.h.b16 %v1824
  %v1912 = vunpack.c.l.b16 %v1825
  %v1913 = vunpack.c.h.b16 %v1825
  %v1914 = vunpack.c.l.b16 %v1826
  %v1915 = vunpack.c.h.b16 %v1826
  %v1916 = vunpack.c.l.b16 %v1827
  %v1917 = vunpack.c.h.b16 %v1827
  %v1918 = vunpack.c.l.b16 %v1828
  %v1919 = vunpack.c.h.b16 %v1828
  %v1920 = vunpack.c.l.b16 %v1829
  %v1921 = vunpack.c.h.b16 %v1829
  %v1922 = vunpack.c.l.b16 %v1830
  %v1923 = vunpack.c.h.b16 %v1830
  %v1924 = vunpack.c.l.b16 %v1831
  %v1925 = vunpack.c.h.b16 %v1831
  %v1926 = vunpack.c.l.b16 %v1832
  %v1927 = vunpack.c.h.b16 %v1832
  %v1928 = vunpack.c.l.b16 %v1833
  %v1929 = vunpack.c.h.b16 %v1833
  %v1930 = vpack.c.b16 %v1870, %v1866
  %v1931 = vpack.c.b16 %v1871, %v1867
  %v1932 = vpack.c.b16 %v1872, %v1868
  %v1933 = vpack.c.b16 %v1873, %v1869
  %v1934 = vpack.c.b16 %v1878, %v1874
  %v1935 = vpack.c.b16 %v1879, %v1875
  %v1936 = vpack.c.b16 %v1880, %v1876
  %v1937 = vpack.c.b16 %v1881, %v1877
  %v1938 = vpack.c.b16 %v1886, %v1882
  %v1939 = vpack.c.b16 %v1887, %v1883
  %v1940 = vpack.c.b16 %v1888, %v1884
  %v1941 = vpack.c.b16 %v1889, %v1885
  %v1942 = vpack.c.b16 %v1894, %v1890
  %v1943 = vpack.c.b16 %v1895, %v1891
  %v1944 = vpack.c.b16 %v1896, %v1892
  %v1945 = vpack.c.b16 %v1897, %v1893
  %v1946 = vpack.c.b16 %v1902, %v1898
  %v1947 = vpack.c.b16 %v1903, %v1899
  %v1948 = vpack.c.b16 %v1904, %v1900
  %v1949 = vpack.c.b16 %v1905, %v1901
  %v1950 = vpack.c.b16 %v1910, %v1906
  %v1951 = vpack.c.b16 %v1911, %v1907
  %v1952 = vpack.c.b16 %v1912, %v1908
  %v1953 = vpack.c.b16 %v1913, %v1909
  %v1954 = vpack.c.b16 %v1918, %v1914
  %v1955 = vpack.c.b16 %v1919, %v1915
  %v1956 = vpack.c.b16 %v1920, %v1916
  %v1957 = vpack.c.b16 %v1921, %v1917
  %v1958 = vpack.c.b16 %v1926, %v1922
  %v1959 = vpack.c.b16 %v1927, %v1923
  %v1960 = vpack.c.b16 %v1928, %v1924
  %v1961 = vpack.c.b16 %v1929, %v1925
  %1994 = vmatprep.subr.bf16.mxu0 %v1931
  %1995 = vmatpush1.bf16.msra.mxu0 %v1930
  %1996 = vmatprep.subr.bf16.mxu0 %v1935
  %1997 = vmatpush1.bf16.msra.mxu0 %v1934
  %1998 = vmatprep.subr.bf16.mxu0 %v1939
  %1999 = vmatpush1.bf16.msra.mxu0 %v1938
  %2000 = vmatprep.subr.bf16.mxu0 %v1943
  %2001 = vmatpush1.bf16.msra.mxu0 %v1942
  %2002 = vmatprep.subr.bf16.mxu0 %v1947
  %2003 = vmatpush1.bf16.msra.mxu0 %v1946
  %2004 = vmatprep.subr.bf16.mxu0 %v1951
  %2005 = vmatpush1.bf16.msra.mxu0 %v1950
  %2006 = vmatprep.subr.bf16.mxu0 %v1955
  %2007 = vmatpush1.bf16.msra.mxu0 %v1954
  %2008 = vmatprep.subr.bf16.mxu0 %v1959
  %2009 = vmatpush1.bf16.msra.mxu0 %v1958
  %2010 = vmatprep.subr.bf16.mxu0 0
  %2011 = vmatpush1.bf16.msra.mxu0 0
  %2012 = vmatprep.subr.bf16.mxu0 0
  %2013 = vmatpush1.bf16.msra.mxu0 0
  %2014 = vmatprep.subr.bf16.mxu0 0
  %2015 = vmatpush1.bf16.msra.mxu0 0
  %2016 = vmatprep.subr.bf16.mxu0 0
  %2017 = vmatpush1.bf16.msra.mxu0 0
  %2018 = vmatprep.subr.bf16.mxu0 0
  %2019 = vmatpush1.bf16.msra.mxu0 0
  %2020 = vmatprep.subr.bf16.mxu0 0
  %2021 = vmatpush1.bf16.msra.mxu0 0
  %2022 = vmatprep.subr.bf16.mxu0 0
  %2023 = vmatpush1.bf16.msra.mxu0 0
  %2024 = vmatprep.subr.bf16.mxu0 0
  %2025 = vmatpush1.bf16.msra.mxu0 0
  %2026 = vmatprep.mubr.bf16.mxu0 0
  %2027 = vmatmul.mubr.bf16.gmra.mrb[0].mxu0 %v1782
  %v2028 = vpop.f32.mrb[0].mxu0
  %v2029 = vadd.f32 0.0, %v2028
  %v2030 = vpop.f32.mrb[0].mxu0
  %v2031 = vadd.f32 0.0, %v2030
  %v2032 = vpop.f32.mrb[0].mxu0
  %v2033 = vadd.f32 0.0, %v2032
  %v2034 = vpop.f32.mrb[0].mxu0
  %v2035 = vadd.f32 0.0, %v2034
  %2036 = vdwg.mxu0
  %2037 = vmatprep.subr.bf16.mxu0 %v1933
  %2038 = vmatpush1.bf16.msra.mxu0 %v1932
  %2039 = vmatprep.subr.bf16.mxu0 %v1937
  %2040 = vmatpush1.bf16.msra.mxu0 %v1936
  %2041 = vmatprep.subr.bf16.mxu0 %v1941
  %2042 = vmatpush1.bf16.msra.mxu0 %v1940
  %2043 = vmatprep.subr.bf16.mxu0 %v1945
  %2044 = vmatpush1.bf16.msra.mxu0 %v1944
  %2045 = vmatprep.subr.bf16.mxu0 %v1949
  %2046 = vmatpush1.bf16.msra.mxu0 %v1948
  %2047 = vmatprep.subr.bf16.mxu0 %v1953
  %2048 = vmatpush1.bf16.msra.mxu0 %v1952
  %2049 = vmatprep.subr.bf16.mxu0 %v1957
  %2050 = vmatpush1.bf16.msra.mxu0 %v1956
  %2051 = vmatprep.subr.bf16.mxu0 %v1961
  %2052 = vmatpush1.bf16.msra.mxu0 %v1960
  %2053 = vmatprep.subr.bf16.mxu0 0
  %2054 = vmatpush1.bf16.msra.mxu0 0
  %2055 = vmatprep.subr.bf16.mxu0 0
  %2056 = vmatpush1.bf16.msra.mxu0 0
  %2057 = vmatprep.subr.bf16.mxu0 0
  %2058 = vmatpush1.bf16.msra.mxu0 0
  %2059 = vmatprep.subr.bf16.mxu0 0
  %2060 = vmatpush1.bf16.msra.mxu0 0
  %2061 = vmatprep.subr.bf16.mxu0 0
  %2062 = vmatpush1.bf16.msra.mxu0 0
  %2063 = vmatprep.subr.bf16.mxu0 0
  %2064 = vmatpush1.bf16.msra.mxu0 0
  %2065 = vmatprep.subr.bf16.mxu0 0
  %2066 = vmatpush1.bf16.msra.mxu0 0
  %2067 = vmatprep.subr.bf16.mxu0 0
  %2068 = vmatpush1.bf16.msra.mxu0 0
  %2069 = vmatprep.mubr.bf16.mxu0 0
  %2070 = vmatmul.mubr.bf16.gmra.mrb[0].mxu0 %v1782
  %v2071 = vpop.f32.mrb[0].mxu0
  %v2072 = vadd.f32 0.0, %v2071
  %v2073 = vpop.f32.mrb[0].mxu0
  %v2074 = vadd.f32 0.0, %v2073
  %v2075 = vpop.f32.mrb[0].mxu0
  %v2076 = vadd.f32 0.0, %v2075
  %v2077 = vpop.f32.mrb[0].mxu0
  %v2078 = vadd.f32 0.0, %v2077
  %2079 = vdwg.mxu0
  %v2080 = vadd.f32 %v1794, %v2029
  %v2081 = vadd.f32 %v1795, %v2031
  %v2082 = vadd.f32 %v1796, %v2072
  %v2083 = vadd.f32 %v1797, %v2074
  %v2084 = vadd.f32 %v1798, %v2033
  %v2085 = vadd.f32 %v1799, %v2035
  %v2086 = vadd.f32 %v1800, %v2076
  %v2087 = vadd.f32 %v1801, %v2078
  %v2088 = vxor.u32 %v2080, 2147483648
  %v2089 = vxor.u32 %v2084, 2147483648
  %v2090 = vmul.f32 %v2088, 1.442695
  %v2091 = vpow.pop %v2090
  %v2092 = vmul.f32 %v2089, 1.442695
  %v2093 = vpow.pop %v2092
  %v2094 = vadd.f32 %v2091, 1.0
  %v2095 = vadd.f32 %v2093, 1.0
  %v2096 = vrcp.pop %v2094
  %v2097 = vmul.f32 1.0, %v2096
  %v2098 = vrcp.pop %v2095
  %v2099 = vmul.f32 1.0, %v2098
  %v2100 = vxor.u32 %v2081, 2147483648
  %v2101 = vxor.u32 %v2085, 2147483648
  %v2102 = vmul.f32 %v2100, 1.442695
  %v2103 = vpow.pop %v2102
  %v2104 = vmul.f32 %v2101, 1.442695
  %v2105 = vpow.pop %v2104
  %v2106 = vadd.f32 %v2103, 1.0
  %v2107 = vadd.f32 %v2105, 1.0
  %v2108 = vrcp.pop %v2106
  %v2109 = vmul.f32 1.0, %v2108
  %v2110 = vrcp.pop %v2107
  %v2111 = vmul.f32 1.0, %v2110
  %v2112 = vtanh.pop %v2082
  %v2113 = vtanh.pop %v2086
  %v2114 = vxor.u32 %v2083, 2147483648
  %v2115 = vxor.u32 %v2087, 2147483648
  %v2116 = vmul.f32 %v2114, 1.442695
  %v2117 = vpow.pop %v2116
  %v2118 = vmul.f32 %v2115, 1.442695
  %v2119 = vpow.pop %v2118
  %v2120 = vadd.f32 %v2117, 1.0
  %v2121 = vadd.f32 %v2119, 1.0
  %v2122 = vrcp.pop %v2120
  %v2123 = vmul.f32 1.0, %v2122
  %v2124 = vrcp.pop %v2121
  %v2125 = vmul.f32 1.0, %v2124
  %v2126 = vmul.f32 %v2109, %v1776
  %v2127 = vmul.f32 %v2111, %v1777
  %v2128 = vmul.f32 %v2097, %v2112
  %v2129 = vmul.f32 %v2099, %v2113
  %v2130 = vadd.f32 %v2126, %v2128
  %v2131 = vadd.f32 %v2127, %v2129
  %v2132 = vtanh.pop %v2130
  %v2133 = vtanh.pop %v2131
  %v2134 = vmul.f32 %v2123, %v2132
  %v2135 = vmul.f32 %v2125, %v2133
  %v2136 = vpack.c.bf16 %v2135, %v2134
  %v2138 = vunpack.c.l.b16 %v2136
  %v2139 = vunpack.c.h.b16 %v2136
  %v2140 = vpack.c.b16 %v2138, %v2138
  %v2141 = vpack.c.b16 %v2139, %v2139
  %s2144 = scalar_lea.vmem %s2, 40
  %2145 = vst [vmem:[%s2144] sm:$0xf] %v2140
  %2146 = vst [vmem:[%s2144 + $0x4] sm:$0xf] %v2141
  %s2147 = scalar_lea.vmem %s0, 384
  %v2148 = vld [vmem:[%s2147] sm:$0xff]
  %v2149 = vld [vmem:[%s2147 + $0x8] sm:$0xff]
  %v2150 = vld [vmem:[%s2147 + $0x10] sm:$0xff]
  %v2151 = vld [vmem:[%s2147 + $0x18] sm:$0xff]
  %v2152 = vld [vmem:[%s2147 + $0x20] sm:$0xff]
  %v2153 = vld [vmem:[%s2147 + $0x28] sm:$0xff]
  %v2154 = vld [vmem:[%s2147 + $0x30] sm:$0xff]
  %v2155 = vld [vmem:[%s2147 + $0x38] sm:$0xff]
  %v2156 = vld [vmem:[%s1] sm:$0xff]
  %v2157 = vld [vmem:[%s1 + $0x8] sm:$0xff]
  %v2158 = vld [vmem:[%s1 + $0x10] sm:$0xff]
  %v2159 = vld [vmem:[%s1 + $0x18] sm:$0xff]
  %v2160 = vld [vmem:[%s1 + $0x20] sm:$0xff]
  %v2161 = vld [vmem:[%s1 + $0x28] sm:$0xff]
  %v2162 = vld [vmem:[%s1 + $0x30] sm:$0xff]
  %v2163 = vld [vmem:[%s1 + $0x38] sm:$0xff]
  %v2164 = vld [vmem:[%s1 + $0x40] sm:$0xff]
  %v2165 = vld [vmem:[%s1 + $0x48] sm:$0xff]
  %v2166 = vld [vmem:[%s1 + $0x50] sm:$0xff]
  %v2167 = vld [vmem:[%s1 + $0x58] sm:$0xff]
  %v2168 = vld [vmem:[%s1 + $0x60] sm:$0xff]
  %v2169 = vld [vmem:[%s1 + $0x68] sm:$0xff]
  %v2170 = vld [vmem:[%s1 + $0x70] sm:$0xff]
  %v2171 = vld [vmem:[%s1 + $0x78] sm:$0xff]
  %v2172 = vld [vmem:[%s1 + $0x80] sm:$0xff]
  %v2173 = vld [vmem:[%s1 + $0x88] sm:$0xff]
  %v2174 = vld [vmem:[%s1 + $0x90] sm:$0xff]
  %v2175 = vld [vmem:[%s1 + $0x98] sm:$0xff]
  %v2176 = vld [vmem:[%s1 + $0xa0] sm:$0xff]
  %v2177 = vld [vmem:[%s1 + $0xa8] sm:$0xff]
  %v2178 = vld [vmem:[%s1 + $0xb0] sm:$0xff]
  %v2179 = vld [vmem:[%s1 + $0xb8] sm:$0xff]
  %v2180 = vld [vmem:[%s1 + $0xc0] sm:$0xff]
  %v2181 = vld [vmem:[%s1 + $0xc8] sm:$0xff]
  %v2182 = vld [vmem:[%s1 + $0xd0] sm:$0xff]
  %v2183 = vld [vmem:[%s1 + $0xd8] sm:$0xff]
  %v2184 = vld [vmem:[%s1 + $0xe0] sm:$0xff]
  %v2185 = vld [vmem:[%s1 + $0xe8] sm:$0xff]
  %v2186 = vld [vmem:[%s1 + $0xf0] sm:$0xff]
  %v2187 = vld [vmem:[%s1 + $0xf8] sm:$0xff]
  %v2220 = vunpack.c.l.b16 %v2156
  %v2221 = vunpack.c.h.b16 %v2156
  %v2222 = vunpack.c.l.b16 %v2157
  %v2223 = vunpack.c.h.b16 %v2157
  %v2224 = vunpack.c.l.b16 %v2158
  %v2225 = vunpack.c.h.b16 %v2158
  %v2226 = vunpack.c.l.b16 %v2159
  %v2227 = vunpack.c.h.b16 %v2159
  %v2228 = vunpack.c.l.b16 %v2160
  %v2229 = vunpack.c.h.b16 %v2160
  %v2230 = vunpack.c.l.b16 %v2161
  %v2231 = vunpack.c.h.b16 %v2161
  %v2232 = vunpack.c.l.b16 %v2162
  %v2233 = vunpack.c.h.b16 %v2162
  %v2234 = vunpack.c.l.b16 %v2163
  %v2235 = vunpack.c.h.b16 %v2163
  %v2236 = vunpack.c.l.b16 %v2164
  %v2237 = vunpack.c.h.b16 %v2164
  %v2238 = vunpack.c.l.b16 %v2165
  %v2239 = vunpack.c.h.b16 %v2165
  %v2240 = vunpack.c.l.b16 %v2166
  %v2241 = vunpack.c.h.b16 %v2166
  %v2242 = vunpack.c.l.b16 %v2167
  %v2243 = vunpack.c.h.b16 %v2167
  %v2244 = vunpack.c.l.b16 %v2168
  %v2245 = vunpack.c.h.b16 %v2168
  %v2246 = vunpack.c.l.b16 %v2169
  %v2247 = vunpack.c.h.b16 %v2169
  %v2248 = vunpack.c.l.b16 %v2170
  %v2249 = vunpack.c.h.b16 %v2170
  %v2250 = vunpack.c.l.b16 %v2171
  %v2251 = vunpack.c.h.b16 %v2171
  %v2252 = vunpack.c.l.b16 %v2172
  %v2253 = vunpack.c.h.b16 %v2172
  %v2254 = vunpack.c.l.b16 %v2173
  %v2255 = vunpack.c.h.b16 %v2173
  %v2256 = vunpack.c.l.b16 %v2174
  %v2257 = vunpack.c.h.b16 %v2174
  %v2258 = vunpack.c.l.b16 %v2175
  %v2259 = vunpack.c.h.b16 %v2175
  %v2260 = vunpack.c.l.b16 %v2176
  %v2261 = vunpack.c.h.b16 %v2176
  %v2262 = vunpack.c.l.b16 %v2177
  %v2263 = vunpack.c.h.b16 %v2177
  %v2264 = vunpack.c.l.b16 %v2178
  %v2265 = vunpack.c.h.b16 %v2178
  %v2266 = vunpack.c.l.b16 %v2179
  %v2267 = vunpack.c.h.b16 %v2179
  %v2268 = vunpack.c.l.b16 %v2180
  %v2269 = vunpack.c.h.b16 %v2180
  %v2270 = vunpack.c.l.b16 %v2181
  %v2271 = vunpack.c.h.b16 %v2181
  %v2272 = vunpack.c.l.b16 %v2182
  %v2273 = vunpack.c.h.b16 %v2182
  %v2274 = vunpack.c.l.b16 %v2183
  %v2275 = vunpack.c.h.b16 %v2183
  %v2276 = vunpack.c.l.b16 %v2184
  %v2277 = vunpack.c.h.b16 %v2184
  %v2278 = vunpack.c.l.b16 %v2185
  %v2279 = vunpack.c.h.b16 %v2185
  %v2280 = vunpack.c.l.b16 %v2186
  %v2281 = vunpack.c.h.b16 %v2186
  %v2282 = vunpack.c.l.b16 %v2187
  %v2283 = vunpack.c.h.b16 %v2187
  %v2284 = vpack.c.b16 %v2224, %v2220
  %v2285 = vpack.c.b16 %v2225, %v2221
  %v2286 = vpack.c.b16 %v2226, %v2222
  %v2287 = vpack.c.b16 %v2227, %v2223
  %v2288 = vpack.c.b16 %v2232, %v2228
  %v2289 = vpack.c.b16 %v2233, %v2229
  %v2290 = vpack.c.b16 %v2234, %v2230
  %v2291 = vpack.c.b16 %v2235, %v2231
  %v2292 = vpack.c.b16 %v2240, %v2236
  %v2293 = vpack.c.b16 %v2241, %v2237
  %v2294 = vpack.c.b16 %v2242, %v2238
  %v2295 = vpack.c.b16 %v2243, %v2239
  %v2296 = vpack.c.b16 %v2248, %v2244
  %v2297 = vpack.c.b16 %v2249, %v2245
  %v2298 = vpack.c.b16 %v2250, %v2246
  %v2299 = vpack.c.b16 %v2251, %v2247
  %v2300 = vpack.c.b16 %v2256, %v2252
  %v2301 = vpack.c.b16 %v2257, %v2253
  %v2302 = vpack.c.b16 %v2258, %v2254
  %v2303 = vpack.c.b16 %v2259, %v2255
  %v2304 = vpack.c.b16 %v2264, %v2260
  %v2305 = vpack.c.b16 %v2265, %v2261
  %v2306 = vpack.c.b16 %v2266, %v2262
  %v2307 = vpack.c.b16 %v2267, %v2263
  %v2308 = vpack.c.b16 %v2272, %v2268
  %v2309 = vpack.c.b16 %v2273, %v2269
  %v2310 = vpack.c.b16 %v2274, %v2270
  %v2311 = vpack.c.b16 %v2275, %v2271
  %v2312 = vpack.c.b16 %v2280, %v2276
  %v2313 = vpack.c.b16 %v2281, %v2277
  %v2314 = vpack.c.b16 %v2282, %v2278
  %v2315 = vpack.c.b16 %v2283, %v2279
  %2348 = vmatprep.subr.bf16.mxu0 %v2285
  %2349 = vmatpush1.bf16.msra.mxu0 %v2284
  %2350 = vmatprep.subr.bf16.mxu0 %v2289
  %2351 = vmatpush1.bf16.msra.mxu0 %v2288
  %2352 = vmatprep.subr.bf16.mxu0 %v2293
  %2353 = vmatpush1.bf16.msra.mxu0 %v2292
  %2354 = vmatprep.subr.bf16.mxu0 %v2297
  %2355 = vmatpush1.bf16.msra.mxu0 %v2296
  %2356 = vmatprep.subr.bf16.mxu0 %v2301
  %2357 = vmatpush1.bf16.msra.mxu0 %v2300
  %2358 = vmatprep.subr.bf16.mxu0 %v2305
  %2359 = vmatpush1.bf16.msra.mxu0 %v2304
  %2360 = vmatprep.subr.bf16.mxu0 %v2309
  %2361 = vmatpush1.bf16.msra.mxu0 %v2308
  %2362 = vmatprep.subr.bf16.mxu0 %v2313
  %2363 = vmatpush1.bf16.msra.mxu0 %v2312
  %2364 = vmatprep.subr.bf16.mxu0 0
  %2365 = vmatpush1.bf16.msra.mxu0 0
  %2366 = vmatprep.subr.bf16.mxu0 0
  %2367 = vmatpush1.bf16.msra.mxu0 0
  %2368 = vmatprep.subr.bf16.mxu0 0
  %2369 = vmatpush1.bf16.msra.mxu0 0
  %2370 = vmatprep.subr.bf16.mxu0 0
  %2371 = vmatpush1.bf16.msra.mxu0 0
  %2372 = vmatprep.subr.bf16.mxu0 0
  %2373 = vmatpush1.bf16.msra.mxu0 0
  %2374 = vmatprep.subr.bf16.mxu0 0
  %2375 = vmatpush1.bf16.msra.mxu0 0
  %2376 = vmatprep.subr.bf16.mxu0 0
  %2377 = vmatpush1.bf16.msra.mxu0 0
  %2378 = vmatprep.subr.bf16.mxu0 0
  %2379 = vmatpush1.bf16.msra.mxu0 0
  %2380 = vmatprep.mubr.bf16.mxu0 0
  %2381 = vmatmul.mubr.bf16.gmra.mrb[0].mxu0 %v2136
  %v2382 = vpop.f32.mrb[0].mxu0
  %v2383 = vadd.f32 0.0, %v2382
  %v2384 = vpop.f32.mrb[0].mxu0
  %v2385 = vadd.f32 0.0, %v2384
  %v2386 = vpop.f32.mrb[0].mxu0
  %v2387 = vadd.f32 0.0, %v2386
  %v2388 = vpop.f32.mrb[0].mxu0
  %v2389 = vadd.f32 0.0, %v2388
  %2390 = vdwg.mxu0
  %2391 = vmatprep.subr.bf16.mxu0 %v2287
  %2392 = vmatpush1.bf16.msra.mxu0 %v2286
  %2393 = vmatprep.subr.bf16.mxu0 %v2291
  %2394 = vmatpush1.bf16.msra.mxu0 %v2290
  %2395 = vmatprep.subr.bf16.mxu0 %v2295
  %2396 = vmatpush1.bf16.msra.mxu0 %v2294
  %2397 = vmatprep.subr.bf16.mxu0 %v2299
  %2398 = vmatpush1.bf16.msra.mxu0 %v2298
  %2399 = vmatprep.subr.bf16.mxu0 %v2303
  %2400 = vmatpush1.bf16.msra.mxu0 %v2302
  %2401 = vmatprep.subr.bf16.mxu0 %v2307
  %2402 = vmatpush1.bf16.msra.mxu0 %v2306
  %2403 = vmatprep.subr.bf16.mxu0 %v2311
  %2404 = vmatpush1.bf16.msra.mxu0 %v2310
  %2405 = vmatprep.subr.bf16.mxu0 %v2315
  %2406 = vmatpush1.bf16.msra.mxu0 %v2314
  %2407 = vmatprep.subr.bf16.mxu0 0
  %2408 = vmatpush1.bf16.msra.mxu0 0
  %2409 = vmatprep.subr.bf16.mxu0 0
  %2410 = vmatpush1.bf16.msra.mxu0 0
  %2411 = vmatprep.subr.bf16.mxu0 0
  %2412 = vmatpush1.bf16.msra.mxu0 0
  %2413 = vmatprep.subr.bf16.mxu0 0
  %2414 = vmatpush1.bf16.msra.mxu0 0
  %2415 = vmatprep.subr.bf16.mxu0 0
  %2416 = vmatpush1.bf16.msra.mxu0 0
  %2417 = vmatprep.subr.bf16.mxu0 0
  %2418 = vmatpush1.bf16.msra.mxu0 0
  %2419 = vmatprep.subr.bf16.mxu0 0
  %2420 = vmatpush1.bf16.msra.mxu0 0
  %2421 = vmatprep.subr.bf16.mxu0 0
  %2422 = vmatpush1.bf16.msra.mxu0 0
  %2423 = vmatprep.mubr.bf16.mxu0 0
  %2424 = vmatmul.mubr.bf16.gmra.mrb[0].mxu0 %v2136
  %v2425 = vpop.f32.mrb[0].mxu0
  %v2426 = vadd.f32 0.0, %v2425
  %v2427 = vpop.f32.mrb[0].mxu0
  %v2428 = vadd.f32 0.0, %v2427
  %v2429 = vpop.f32.mrb[0].mxu0
  %v2430 = vadd.f32 0.0, %v2429
  %v2431 = vpop.f32.mrb[0].mxu0
  %v2432 = vadd.f32 0.0, %v2431
  %2433 = vdwg.mxu0
  %v2434 = vadd.f32 %v2148, %v2383
  %v2435 = vadd.f32 %v2149, %v2385
  %v2436 = vadd.f32 %v2150, %v2426
  %v2437 = vadd.f32 %v2151, %v2428
  %v2438 = vadd.f32 %v2152, %v2387
  %v2439 = vadd.f32 %v2153, %v2389
  %v2440 = vadd.f32 %v2154, %v2430
  %v2441 = vadd.f32 %v2155, %v2432
  %v2442 = vxor.u32 %v2434, 2147483648
  %v2443 = vxor.u32 %v2438, 2147483648
  %v2444 = vmul.f32 %v2442, 1.442695
  %v2445 = vpow.pop %v2444
  %v2446 = vmul.f32 %v2443, 1.442695
  %v2447 = vpow.pop %v2446
  %v2448 = vadd.f32 %v2445, 1.0
  %v2449 = vadd.f32 %v2447, 1.0
  %v2450 = vrcp.pop %v2448
  %v2451 = vmul.f32 1.0, %v2450
  %v2452 = vrcp.pop %v2449
  %v2453 = vmul.f32 1.0, %v2452
  %v2454 = vxor.u32 %v2435, 2147483648
  %v2455 = vxor.u32 %v2439, 2147483648
  %v2456 = vmul.f32 %v2454, 1.442695
  %v2457 = vpow.pop %v2456
  %v2458 = vmul.f32 %v2455, 1.442695
  %v2459 = vpow.pop %v2458
  %v2460 = vadd.f32 %v2457, 1.0
  %v2461 = vadd.f32 %v2459, 1.0
  %v2462 = vrcp.pop %v2460
  %v2463 = vmul.f32 1.0, %v2462
  %v2464 = vrcp.pop %v2461
  %v2465 = vmul.f32 1.0, %v2464
  %v2466 = vtanh.pop %v2436
  %v2467 = vtanh.pop %v2440
  %v2468 = vxor.u32 %v2437, 2147483648
  %v2469 = vxor.u32 %v2441, 2147483648
  %v2470 = vmul.f32 %v2468, 1.442695
  %v2471 = vpow.pop %v2470
  %v2472 = vmul.f32 %v2469, 1.442695
  %v2473 = vpow.pop %v2472
  %v2474 = vadd.f32 %v2471, 1.0
  %v2475 = vadd.f32 %v2473, 1.0
  %v2476 = vrcp.pop %v2474
  %v2477 = vmul.f32 1.0, %v2476
  %v2478 = vrcp.pop %v2475
  %v2479 = vmul.f32 1.0, %v2478
  %v2480 = vmul.f32 %v2463, %v2130
  %v2481 = vmul.f32 %v2465, %v2131
  %v2482 = vmul.f32 %v2451, %v2466
  %v2483 = vmul.f32 %v2453, %v2467
  %v2484 = vadd.f32 %v2480, %v2482
  %v2485 = vadd.f32 %v2481, %v2483
  %v2486 = vtanh.pop %v2484
  %v2487 = vtanh.pop %v2485
  %v2488 = vmul.f32 %v2477, %v2486
  %v2489 = vmul.f32 %v2479, %v2487
  %v2490 = vpack.c.bf16 %v2489, %v2488
  %v2492 = vunpack.c.l.b16 %v2490
  %v2493 = vunpack.c.h.b16 %v2490
  %v2494 = vpack.c.b16 %v2492, %v2492
  %v2495 = vpack.c.b16 %v2493, %v2493
  %s2498 = scalar_lea.vmem %s2, 48
  %2499 = vst [vmem:[%s2498] sm:$0xf] %v2494
  %2500 = vst [vmem:[%s2498 + $0x4] sm:$0xf] %v2495
  %s2501 = scalar_lea.vmem %s0, 448
  %v2502 = vld [vmem:[%s2501] sm:$0xff]
  %v2503 = vld [vmem:[%s2501 + $0x8] sm:$0xff]
  %v2504 = vld [vmem:[%s2501 + $0x10] sm:$0xff]
  %v2505 = vld [vmem:[%s2501 + $0x18] sm:$0xff]
  %v2506 = vld [vmem:[%s2501 + $0x20] sm:$0xff]
  %v2507 = vld [vmem:[%s2501 + $0x28] sm:$0xff]
  %v2508 = vld [vmem:[%s2501 + $0x30] sm:$0xff]
  %v2509 = vld [vmem:[%s2501 + $0x38] sm:$0xff]
  %v2510 = vld [vmem:[%s1] sm:$0xff]
  %v2511 = vld [vmem:[%s1 + $0x8] sm:$0xff]
  %v2512 = vld [vmem:[%s1 + $0x10] sm:$0xff]
  %v2513 = vld [vmem:[%s1 + $0x18] sm:$0xff]
  %v2514 = vld [vmem:[%s1 + $0x20] sm:$0xff]
  %v2515 = vld [vmem:[%s1 + $0x28] sm:$0xff]
  %v2516 = vld [vmem:[%s1 + $0x30] sm:$0xff]
  %v2517 = vld [vmem:[%s1 + $0x38] sm:$0xff]
  %v2518 = vld [vmem:[%s1 + $0x40] sm:$0xff]
  %v2519 = vld [vmem:[%s1 + $0x48] sm:$0xff]
  %v2520 = vld [vmem:[%s1 + $0x50] sm:$0xff]
  %v2521 = vld [vmem:[%s1 + $0x58] sm:$0xff]
  %v2522 = vld [vmem:[%s1 + $0x60] sm:$0xff]
  %v2523 = vld [vmem:[%s1 + $0x68] sm:$0xff]
  %v2524 = vld [vmem:[%s1 + $0x70] sm:$0xff]
  %v2525 = vld [vmem:[%s1 + $0x78] sm:$0xff]
  %v2526 = vld [vmem:[%s1 + $0x80] sm:$0xff]
  %v2527 = vld [vmem:[%s1 + $0x88] sm:$0xff]
  %v2528 = vld [vmem:[%s1 + $0x90] sm:$0xff]
  %v2529 = vld [vmem:[%s1 + $0x98] sm:$0xff]
  %v2530 = vld [vmem:[%s1 + $0xa0] sm:$0xff]
  %v2531 = vld [vmem:[%s1 + $0xa8] sm:$0xff]
  %v2532 = vld [vmem:[%s1 + $0xb0] sm:$0xff]
  %v2533 = vld [vmem:[%s1 + $0xb8] sm:$0xff]
  %v2534 = vld [vmem:[%s1 + $0xc0] sm:$0xff]
  %v2535 = vld [vmem:[%s1 + $0xc8] sm:$0xff]
  %v2536 = vld [vmem:[%s1 + $0xd0] sm:$0xff]
  %v2537 = vld [vmem:[%s1 + $0xd8] sm:$0xff]
  %v2538 = vld [vmem:[%s1 + $0xe0] sm:$0xff]
  %v2539 = vld [vmem:[%s1 + $0xe8] sm:$0xff]
  %v2540 = vld [vmem:[%s1 + $0xf0] sm:$0xff]
  %v2541 = vld [vmem:[%s1 + $0xf8] sm:$0xff]
  %v2574 = vunpack.c.l.b16 %v2510
  %v2575 = vunpack.c.h.b16 %v2510
  %v2576 = vunpack.c.l.b16 %v2511
  %v2577 = vunpack.c.h.b16 %v2511
  %v2578 = vunpack.c.l.b16 %v2512
  %v2579 = vunpack.c.h.b16 %v2512
  %v2580 = vunpack.c.l.b16 %v2513
  %v2581 = vunpack.c.h.b16 %v2513
  %v2582 = vunpack.c.l.b16 %v2514
  %v2583 = vunpack.c.h.b16 %v2514
  %v2584 = vunpack.c.l.b16 %v2515
  %v2585 = vunpack.c.h.b16 %v2515
  %v2586 = vunpack.c.l.b16 %v2516
  %v2587 = vunpack.c.h.b16 %v2516
  %v2588 = vunpack.c.l.b16 %v2517
  %v2589 = vunpack.c.h.b16 %v2517
  %v2590 = vunpack.c.l.b16 %v2518
  %v2591 = vunpack.c.h.b16 %v2518
  %v2592 = vunpack.c.l.b16 %v2519
  %v2593 = vunpack.c.h.b16 %v2519
  %v2594 = vunpack.c.l.b16 %v2520
  %v2595 = vunpack.c.h.b16 %v2520
  %v2596 = vunpack.c.l.b16 %v2521
  %v2597 = vunpack.c.h.b16 %v2521
  %v2598 = vunpack.c.l.b16 %v2522
  %v2599 = vunpack.c.h.b16 %v2522
  %v2600 = vunpack.c.l.b16 %v2523
  %v2601 = vunpack.c.h.b16 %v2523
  %v2602 = vunpack.c.l.b16 %v2524
  %v2603 = vunpack.c.h.b16 %v2524
  %v2604 = vunpack.c.l.b16 %v2525
  %v2605 = vunpack.c.h.b16 %v2525
  %v2606 = vunpack.c.l.b16 %v2526
  %v2607 = vunpack.c.h.b16 %v2526
  %v2608 = vunpack.c.l.b16 %v2527
  %v2609 = vunpack.c.h.b16 %v2527
  %v2610 = vunpack.c.l.b16 %v2528
  %v2611 = vunpack.c.h.b16 %v2528
  %v2612 = vunpack.c.l.b16 %v2529
  %v2613 = vunpack.c.h.b16 %v2529
  %v2614 = vunpack.c.l.b16 %v2530
  %v2615 = vunpack.c.h.b16 %v2530
  %v2616 = vunpack.c.l.b16 %v2531
  %v2617 = vunpack.c.h.b16 %v2531
  %v2618 = vunpack.c.l.b16 %v2532
  %v2619 = vunpack.c.h.b16 %v2532
  %v2620 = vunpack.c.l.b16 %v2533
  %v2621 = vunpack.c.h.b16 %v2533
  %v2622 = vunpack.c.l.b16 %v2534
  %v2623 = vunpack.c.h.b16 %v2534
  %v2624 = vunpack.c.l.b16 %v2535
  %v2625 = vunpack.c.h.b16 %v2535
  %v2626 = vunpack.c.l.b16 %v2536
  %v2627 = vunpack.c.h.b16 %v2536
  %v2628 = vunpack.c.l.b16 %v2537
  %v2629 = vunpack.c.h.b16 %v2537
  %v2630 = vunpack.c.l.b16 %v2538
  %v2631 = vunpack.c.h.b16 %v2538
  %v2632 = vunpack.c.l.b16 %v2539
  %v2633 = vunpack.c.h.b16 %v2539
  %v2634 = vunpack.c.l.b16 %v2540
  %v2635 = vunpack.c.h.b16 %v2540
  %v2636 = vunpack.c.l.b16 %v2541
  %v2637 = vunpack.c.h.b16 %v2541
  %v2638 = vpack.c.b16 %v2578, %v2574
  %v2639 = vpack.c.b16 %v2579, %v2575
  %v2640 = vpack.c.b16 %v2580, %v2576
  %v2641 = vpack.c.b16 %v2581, %v2577
  %v2642 = vpack.c.b16 %v2586, %v2582
  %v2643 = vpack.c.b16 %v2587, %v2583
  %v2644 = vpack.c.b16 %v2588, %v2584
  %v2645 = vpack.c.b16 %v2589, %v2585
  %v2646 = vpack.c.b16 %v2594, %v2590
  %v2647 = vpack.c.b16 %v2595, %v2591
  %v2648 = vpack.c.b16 %v2596, %v2592
  %v2649 = vpack.c.b16 %v2597, %v2593
  %v2650 = vpack.c.b16 %v2602, %v2598
  %v2651 = vpack.c.b16 %v2603, %v2599
  %v2652 = vpack.c.b16 %v2604, %v2600
  %v2653 = vpack.c.b16 %v2605, %v2601
  %v2654 = vpack.c.b16 %v2610, %v2606
  %v2655 = vpack.c.b16 %v2611, %v2607
  %v2656 = vpack.c.b16 %v2612, %v2608
  %v2657 = vpack.c.b16 %v2613, %v2609
  %v2658 = vpack.c.b16 %v2618, %v2614
  %v2659 = vpack.c.b16 %v2619, %v2615
  %v2660 = vpack.c.b16 %v2620, %v2616
  %v2661 = vpack.c.b16 %v2621, %v2617
  %v2662 = vpack.c.b16 %v2626, %v2622
  %v2663 = vpack.c.b16 %v2627, %v2623
  %v2664 = vpack.c.b16 %v2628, %v2624
  %v2665 = vpack.c.b16 %v2629, %v2625
  %v2666 = vpack.c.b16 %v2634, %v2630
  %v2667 = vpack.c.b16 %v2635, %v2631
  %v2668 = vpack.c.b16 %v2636, %v2632
  %v2669 = vpack.c.b16 %v2637, %v2633
  %2702 = vmatprep.subr.bf16.mxu0 %v2639
  %2703 = vmatpush1.bf16.msra.mxu0 %v2638
  %2704 = vmatprep.subr.bf16.mxu0 %v2643
  %2705 = vmatpush1.bf16.msra.mxu0 %v2642
  %2706 = vmatprep.subr.bf16.mxu0 %v2647
  %2707 = vmatpush1.bf16.msra.mxu0 %v2646
  %2708 = vmatprep.subr.bf16.mxu0 %v2651
  %2709 = vmatpush1.bf16.msra.mxu0 %v2650
  %2710 = vmatprep.subr.bf16.mxu0 %v2655
  %2711 = vmatpush1.bf16.msra.mxu0 %v2654
  %2712 = vmatprep.subr.bf16.mxu0 %v2659
  %2713 = vmatpush1.bf16.msra.mxu0 %v2658
  %2714 = vmatprep.subr.bf16.mxu0 %v2663
  %2715 = vmatpush1.bf16.msra.mxu0 %v2662
  %2716 = vmatprep.subr.bf16.mxu0 %v2667
  %2717 = vmatpush1.bf16.msra.mxu0 %v2666
  %2718 = vmatprep.subr.bf16.mxu0 0
  %2719 = vmatpush1.bf16.msra.mxu0 0
  %2720 = vmatprep.subr.bf16.mxu0 0
  %2721 = vmatpush1.bf16.msra.mxu0 0
  %2722 = vmatprep.subr.bf16.mxu0 0
  %2723 = vmatpush1.bf16.msra.mxu0 0
  %2724 = vmatprep.subr.bf16.mxu0 0
  %2725 = vmatpush1.bf16.msra.mxu0 0
  %2726 = vmatprep.subr.bf16.mxu0 0
  %2727 = vmatpush1.bf16.msra.mxu0 0
  %2728 = vmatprep.subr.bf16.mxu0 0
  %2729 = vmatpush1.bf16.msra.mxu0 0
  %2730 = vmatprep.subr.bf16.mxu0 0
  %2731 = vmatpush1.bf16.msra.mxu0 0
  %2732 = vmatprep.subr.bf16.mxu0 0
  %2733 = vmatpush1.bf16.msra.mxu0 0
  %2734 = vmatprep.mubr.bf16.mxu0 0
  %2735 = vmatmul.mubr.bf16.gmra.mrb[0].mxu0 %v2490
  %v2736 = vpop.f32.mrb[0].mxu0
  %v2737 = vadd.f32 0.0, %v2736
  %v2738 = vpop.f32.mrb[0].mxu0
  %v2739 = vadd.f32 0.0, %v2738
  %v2740 = vpop.f32.mrb[0].mxu0
  %v2741 = vadd.f32 0.0, %v2740
  %v2742 = vpop.f32.mrb[0].mxu0
  %v2743 = vadd.f32 0.0, %v2742
  %2744 = vdwg.mxu0
  %2745 = vmatprep.subr.bf16.mxu0 %v2641
  %2746 = vmatpush1.bf16.msra.mxu0 %v2640
  %2747 = vmatprep.subr.bf16.mxu0 %v2645
  %2748 = vmatpush1.bf16.msra.mxu0 %v2644
  %2749 = vmatprep.subr.bf16.mxu0 %v2649
  %2750 = vmatpush1.bf16.msra.mxu0 %v2648
  %2751 = vmatprep.subr.bf16.mxu0 %v2653
  %2752 = vmatpush1.bf16.msra.mxu0 %v2652
  %2753 = vmatprep.subr.bf16.mxu0 %v2657
  %2754 = vmatpush1.bf16.msra.mxu0 %v2656
  %2755 = vmatprep.subr.bf16.mxu0 %v2661
  %2756 = vmatpush1.bf16.msra.mxu0 %v2660
  %2757 = vmatprep.subr.bf16.mxu0 %v2665
  %2758 = vmatpush1.bf16.msra.mxu0 %v2664
  %2759 = vmatprep.subr.bf16.mxu0 %v2669
  %2760 = vmatpush1.bf16.msra.mxu0 %v2668
  %2761 = vmatprep.subr.bf16.mxu0 0
  %2762 = vmatpush1.bf16.msra.mxu0 0
  %2763 = vmatprep.subr.bf16.mxu0 0
  %2764 = vmatpush1.bf16.msra.mxu0 0
  %2765 = vmatprep.subr.bf16.mxu0 0
  %2766 = vmatpush1.bf16.msra.mxu0 0
  %2767 = vmatprep.subr.bf16.mxu0 0
  %2768 = vmatpush1.bf16.msra.mxu0 0
  %2769 = vmatprep.subr.bf16.mxu0 0
  %2770 = vmatpush1.bf16.msra.mxu0 0
  %2771 = vmatprep.subr.bf16.mxu0 0
  %2772 = vmatpush1.bf16.msra.mxu0 0
  %2773 = vmatprep.subr.bf16.mxu0 0
  %2774 = vmatpush1.bf16.msra.mxu0 0
  %2775 = vmatprep.subr.bf16.mxu0 0
  %2776 = vmatpush1.bf16.msra.mxu0 0
  %2777 = vmatprep.mubr.bf16.mxu0 0
  %2778 = vmatmul.mubr.bf16.gmra.mrb[0].mxu0 %v2490
  %v2779 = vpop.f32.mrb[0].mxu0
  %v2780 = vadd.f32 0.0, %v2779
  %v2781 = vpop.f32.mrb[0].mxu0
  %v2782 = vadd.f32 0.0, %v2781
  %v2783 = vpop.f32.mrb[0].mxu0
  %v2784 = vadd.f32 0.0, %v2783
  %v2785 = vpop.f32.mrb[0].mxu0
  %v2786 = vadd.f32 0.0, %v2785
  %2787 = vdwg.mxu0
  %v2788 = vadd.f32 %v2502, %v2737
  %v2789 = vadd.f32 %v2503, %v2739
  %v2790 = vadd.f32 %v2504, %v2780
  %v2791 = vadd.f32 %v2505, %v2782
  %v2792 = vadd.f32 %v2506, %v2741
  %v2793 = vadd.f32 %v2507, %v2743
  %v2794 = vadd.f32 %v2508, %v2784
  %v2795 = vadd.f32 %v2509, %v2786
  %v2796 = vxor.u32 %v2788, 2147483648
  %v2797 = vxor.u32 %v2792, 2147483648
  %v2798 = vmul.f32 %v2796, 1.442695
  %v2799 = vpow.pop %v2798
  %v2800 = vmul.f32 %v2797, 1.442695
  %v2801 = vpow.pop %v2800
  %v2802 = vadd.f32 %v2799, 1.0
  %v2803 = vadd.f32 %v2801, 1.0
  %v2804 = vrcp.pop %v2802
  %v2805 = vmul.f32 1.0, %v2804
  %v2806 = vrcp.pop %v2803
  %v2807 = vmul.f32 1.0, %v2806
  %v2808 = vxor.u32 %v2789, 2147483648
  %v2809 = vxor.u32 %v2793, 2147483648
  %v2810 = vmul.f32 %v2808, 1.442695
  %v2811 = vpow.pop %v2810
  %v2812 = vmul.f32 %v2809, 1.442695
  %v2813 = vpow.pop %v2812
  %v2814 = vadd.f32 %v2811, 1.0
  %v2815 = vadd.f32 %v2813, 1.0
  %v2816 = vrcp.pop %v2814
  %v2817 = vmul.f32 1.0, %v2816
  %v2818 = vrcp.pop %v2815
  %v2819 = vmul.f32 1.0, %v2818
  %v2820 = vtanh.pop %v2790
  %v2821 = vtanh.pop %v2794
  %v2822 = vxor.u32 %v2791, 2147483648
  %v2823 = vxor.u32 %v2795, 2147483648
  %v2824 = vmul.f32 %v2822, 1.442695
  %v2825 = vpow.pop %v2824
  %v2826 = vmul.f32 %v2823, 1.442695
  %v2827 = vpow.pop %v2826
  %v2828 = vadd.f32 %v2825, 1.0
  %v2829 = vadd.f32 %v2827, 1.0
  %v2830 = vrcp.pop %v2828
  %v2831 = vmul.f32 1.0, %v2830
  %v2832 = vrcp.pop %v2829
  %v2833 = vmul.f32 1.0, %v2832
  %v2834 = vmul.f32 %v2817, %v2484
  %v2835 = vmul.f32 %v2819, %v2485
  %v2836 = vmul.f32 %v2805, %v2820
  %v2837 = vmul.f32 %v2807, %v2821
  %v2838 = vadd.f32 %v2834, %v2836
  %v2839 = vadd.f32 %v2835, %v2837
  %v2840 = vtanh.pop %v2838
  %v2841 = vtanh.pop %v2839
  %v2842 = vmul.f32 %v2831, %v2840
  %v2843 = vmul.f32 %v2833, %v2841
  %v2844 = vpack.c.bf16 %v2843, %v2842
  %v2846 = vunpack.c.l.b16 %v2844
  %v2847 = vunpack.c.h.b16 %v2844
  %v2848 = vpack.c.b16 %v2846, %v2846
  %v2849 = vpack.c.b16 %v2847, %v2847
  %s2852 = scalar_lea.vmem %s2, 56
  %2853 = vst [vmem:[%s2852] sm:$0xf] %v2848
  %2854 = vst [vmem:[%s2852 + $0x4] sm:$0xf] %v2849
  %2855 = vst [vmem:[#allocation2] sm:$0xff] %v2842
  %2856 = vst [vmem:[#allocation2 + $0x8] sm:$0xff] %v2843
  %2857 = vst [vmem:[#allocation3] sm:$0xff] %v2838
  %2858 = vst [vmem:[#allocation3 + $0x8] sm:$0xff] %v2839
  // Predicated region
  $region14: #{decoder_rnn_forward.4} parent=0 // pred_check
    _
  $region15: #{decoder_rnn_forward.4} parent=0 // pred_check_branch
    %2860 = sbr.rel (0) target = $region17
  $region16: #{decoder_rnn_forward.4} parent=0 // pred_region
    _
  $region17: #{decoder_rnn_forward.4} parent=0 // pred_fallthru
    _
  // Predicated region
  $region18: #{decoder_rnn_forward.4} parent=0 // pred_check
    _
  $region19: #{decoder_rnn_forward.4} parent=0 // pred_check_branch
    %2862 = sbr.rel (0) target = $region21
  $region20: #{decoder_rnn_forward.4} parent=0 // pred_region
    _
  $region21: #{decoder_rnn_forward.4} parent=0 // pred_fallthru
    _

</llo_original>
